<compile_context>
chip_gen: v6e
topology: v6e:2x2x1
jax: 0.10.0
libtpu: 0.0.40
codegen_flags: <defaults>
</compile_context>

<pallas_src>
import functools

import jax
import jax.numpy as jnp
from jax.experimental import pallas as pl
from jax.experimental.pallas import tpu as pltpu


_VMEM_LIMIT = 64 * 1024 * 1024  # fits v7x physical VMEM, raises v5e's 16 MiB default


def _pick_hw_tile(hw, max_tile):
    """Largest multiple of 128 that divides hw and is <= max_tile, else hw."""
    if hw % 128 != 0:
        return hw
    best = None
    t = 128
    while t <= min(hw, max_tile):
        if hw % t == 0:
            best = t
        t += 128
    return best if best is not None else hw


# ----------------------------------------------------------------------------
# Kernel 1: pointwise (1x1) conv == channel matmul, tiled over (B, HW).
# ----------------------------------------------------------------------------
def _pointwise_kernel(x_ref, w_ref, b_ref, o_ref, *, compute_dtype):
    x = x_ref[0].astype(compute_dtype)        # (C_in, t_hw)
    w = w_ref[...].astype(compute_dtype)      # (C_out, C_in)
    out = jnp.dot(w, x, preferred_element_type=jnp.float32)
    out = out + b_ref[...]                    # (C_out, 1) f32 broadcast
    o_ref[0] = out.astype(o_ref.dtype)


def pointwise_conv(x, w, b, *, compute_dtype, max_hw_tile):
    # x: (B, C_in, HW), w: (C_out, C_in), b: (C_out,)
    B, Cin, HW = x.shape
    Cout = w.shape[0]
    t_hw = _pick_hw_tile(HW, max_hw_tile)
    n_hw = HW // t_hw
    b2 = b.reshape(Cout, 1).astype(jnp.float32)
    kernel = functools.partial(_pointwise_kernel, compute_dtype=compute_dtype)
    return pl.pallas_call(
        kernel,
        out_shape=jax.ShapeDtypeStruct((B, Cout, HW), x.dtype),
        grid=(B, n_hw),
        in_specs=[
            pl.BlockSpec((1, Cin, t_hw), lambda i, t: (i, 0, t)),
            pl.BlockSpec((Cout, Cin), lambda i, t: (0, 0)),   # resident
            pl.BlockSpec((Cout, 1), lambda i, t: (0, 0)),     # resident
        ],
        out_specs=pl.BlockSpec((1, Cout, t_hw), lambda i, t: (i, 0, t)),
        compiler_params=pltpu.CompilerParams(
            dimension_semantics=("parallel", "parallel"),
            vmem_limit_bytes=_VMEM_LIMIT),
    )(x, w, b2)


# ----------------------------------------------------------------------------
# Kernel 2: depthwise 3x3 conv (padding=1, stride=1) on a lane-dense (C, HW)
# slab.  Taps are pltpu.roll lane shifts; zero padding is realized with
# precomputed per-tap validity masks (row/col boundary handling).
# ----------------------------------------------------------------------------
def _dwconv_kernel(x_ref, w_ref, b_ref, m_ref, o_ref, *, H, W):
    x = x_ref[0].astype(jnp.float32)          # (C, HW)
    w = w_ref[...].astype(jnp.float32)        # (C, 9)   tap t = (di+1)*3 + (dj+1)
    masks = m_ref[...]                        # (9, HW)  f32 validity masks
    HW = H * W

    acc = x * w[:, 4:5]                       # center tap: no shift, mask == 1
    t = 0
    for di in (-1, 0, 1):
        for dj in (-1, 0, 1):
            if di == 0 and dj == 0:
                t += 1
                continue
            d = di * W + dj
            # shifted[p] = x[(p + d) mod HW]; the mask kills wrapped / cross-row
            # elements, which is exactly the zero-padding semantics.
            shifted = pltpu.roll(x, shift=(-d) % HW, axis=1)     # XLU, no relayout
            acc = acc + w[:, t:t + 1] * (shifted * masks[t:t + 1, :])
            t += 1
    acc = acc + b_ref[...]                    # (C, 1) f32 broadcast
    o_ref[0] = acc.astype(o_ref.dtype)


def _make_dw_masks(H, W):
    rows = jnp.arange(H)[:, None]
    cols = jnp.arange(W)[None, :]
    ms = []
    for di in (-1, 0, 1):
        for dj in (-1, 0, 1):
            valid = ((rows + di >= 0) & (rows + di < H) &
                     (cols + dj >= 0) & (cols + dj < W))
            ms.append(valid.reshape(H * W))
    return jnp.stack(ms).astype(jnp.float32)  # (9, HW)


def dwconv3x3(x, w, b, H, W):
    # x: (B, C, HW), w: (C, 3, 3), b: (C,)
    # TODO(synk): tile the H axis with a 1-row halo for very large images.
    B, C, HW = x.shape
    w9 = w.reshape(C, 9).astype(jnp.float32)
    b2 = b.reshape(C, 1).astype(jnp.float32)
    masks = _make_dw_masks(H, W)
    kernel = functools.partial(_dwconv_kernel, H=H, W=W)
    return pl.pallas_call(
        kernel,
        out_shape=jax.ShapeDtypeStruct((B, C, HW), x.dtype),
        grid=(B,),
        in_specs=[
            pl.BlockSpec((1, C, HW), lambda i: (i, 0, 0)),
            pl.BlockSpec((C, 9), lambda i: (0, 0)),
            pl.BlockSpec((C, 1), lambda i: (0, 0)),
            pl.BlockSpec((9, HW), lambda i: (0, 0)),
        ],
        out_specs=pl.BlockSpec((1, C, HW), lambda i: (i, 0, 0)),
        compiler_params=pltpu.CompilerParams(
            dimension_semantics=("parallel",),
            vmem_limit_bytes=_VMEM_LIMIT),
    )(x, w9, b2, masks)


# ----------------------------------------------------------------------------
# Kernel 3: attention scores.  Grid (B, HW tiles); the HW axis is a reduction:
# accumulate per-head G = q k^T and q/k sum-of-squares, then scale by
# temperature / (||q|| * ||k||) and softmax at the last step.
# ----------------------------------------------------------------------------
def _scores_kernel(q_ref, k_ref, temp_ref, attn_ref, g_acc, qss_acc, kss_acc,
                   *, num_heads, compute_dtype):
    t = pl.program_id(1)
    nt = pl.num_programs(1)

    @pl.when(t == 0)
    def _():
        g_acc[...] = jnp.zeros_like(g_acc)
        qss_acc[...] = jnp.zeros_like(qss_acc)
        kss_acc[...] = jnp.zeros_like(kss_acc)

    C, thw = q_ref.shape[1], q_ref.shape[2]
    Ch = C // num_heads
    q = q_ref[0].astype(compute_dtype).reshape(num_heads, Ch, thw)
    k = k_ref[0].astype(compute_dtype).reshape(num_heads, Ch, thw)

    # Per-head Gram matrix: contract the HW (lane) axis directly -- no k^T copy.
    g_acc[...] += jnp.einsum("hct,het->hce", q, k,
                             preferred_element_type=jnp.float32)

    qf = q.astype(jnp.float32)
    kf = k.astype(jnp.float32)
    qss_acc[...] += jnp.sum(qf * qf, axis=-1, keepdims=True)   # (h, Ch, 1)
    kss_acc[...] += jnp.sum(kf * kf, axis=-1)                  # (h, Ch)  lane-major

    @pl.when(t == nt - 1)
    def _():
        eps = jnp.float32(1e-12)
        temp = temp_ref[...]                                   # (h, 1) f32, resident
        # Fold F.normalize + temperature into the tiny (Ch, Ch) score matrix.
        inv_q = temp[:, :, None] / jnp.maximum(jnp.sqrt(qss_acc[...]), eps)
        inv_k = 1.0 / jnp.maximum(jnp.sqrt(kss_acc[...]), eps)  # (h, Ch)
        s = g_acc[...] * inv_q * inv_k[:, None, :]               # (h, Ch, Ch)
        s = s - jnp.max(s, axis=-1, keepdims=True)
        e = jnp.exp(s)
        p = e / jnp.sum(e, axis=-1, keepdims=True)
        attn_ref[0] = p.astype(attn_ref.dtype)


def attn_scores(qkv, temp, *, num_heads, compute_dtype, max_hw_tile):
    # qkv: (B, 3C, HW); q/k chunks are selected purely via BlockSpec indexing.
    B, C3, HW = qkv.shape
    C = C3 // 3
    Ch = C // num_heads
    t_hw = _pick_hw_tile(HW, max_hw_tile)
    n_hw = HW // t_hw
    kernel = functools.partial(_scores_kernel, num_heads=num_heads,
                               compute_dtype=compute_dtype)
    return pl.pallas_call(
        kernel,
        out_shape=jax.ShapeDtypeStruct((B, num_heads, Ch, Ch), jnp.float32),
        grid=(B, n_hw),
        in_specs=[
            pl.BlockSpec((1, C, t_hw), lambda b, t: (b, 0, t)),   # q chunk
            pl.BlockSpec((1, C, t_hw), lambda b, t: (b, 1, t)),   # k chunk
            pl.BlockSpec((num_heads, 1), lambda b, t: (0, 0)),    # temperature
        ],
        out_specs=pl.BlockSpec((1, num_heads, Ch, Ch), lambda b, t: (b, 0, 0, 0)),
        scratch_shapes=[
            pltpu.VMEM((num_heads, Ch, Ch), jnp.float32),
            pltpu.VMEM((num_heads, Ch, 1), jnp.float32),
            pltpu.VMEM((num_heads, Ch), jnp.float32),
        ],
        compiler_params=pltpu.CompilerParams(
            dimension_semantics=("parallel", "arbitrary"),
            vmem_limit_bytes=_VMEM_LIMIT),
    )(qkv, qkv, temp)


# ----------------------------------------------------------------------------
# Kernel 4: out = attn @ v fused with project_out (1x1 conv), tiled over (B, HW).
# ----------------------------------------------------------------------------
def _apply_kernel(attn_ref, v_ref, wp_ref, bp_ref, o_ref, *, num_heads,
                  compute_dtype):
    C, thw = v_ref.shape[1], v_ref.shape[2]
    Ch = C // num_heads
    A = attn_ref[0].astype(compute_dtype)                      # (h, Ch, Ch)
    v = v_ref[0].astype(compute_dtype).reshape(num_heads, Ch, thw)
    o = jnp.einsum("hce,het->hct", A, v,
                   preferred_element_type=jnp.float32)         # (h, Ch, t_hw)
    o = o.reshape(C, thw).astype(compute_dtype)
    y = jnp.dot(wp_ref[...].astype(compute_dtype), o,
                preferred_element_type=jnp.float32)            # project_out fused
    y = y + bp_ref[...]
    o_ref[0] = y.astype(o_ref.dtype)


def attn_apply_project(attn, qkv, w_proj, b_proj, *, num_heads, compute_dtype,
                       max_hw_tile):
    B, C3, HW = qkv.shape
    C = C3 // 3
    Ch = C // num_heads
    t_hw = _pick_hw_tile(HW, max_hw_tile)
    n_hw = HW // t_hw
    bp = b_proj.reshape(C, 1).astype(jnp.float32)
    kernel = functools.partial(_apply_kernel, num_heads=num_heads,
                               compute_dtype=compute_dtype)
    return pl.pallas_call(
        kernel,
        out_shape=jax.ShapeDtypeStruct((B, C, HW), qkv.dtype),
        grid=(B, n_hw),
        in_specs=[
            pl.BlockSpec((1, num_heads, Ch, Ch), lambda b, t: (b, 0, 0, 0)),
            pl.BlockSpec((1, C, t_hw), lambda b, t: (b, 2, t)),   # v chunk
            pl.BlockSpec((C, C), lambda b, t: (0, 0)),            # resident
            pl.BlockSpec((C, 1), lambda b, t: (0, 0)),            # resident
        ],
        out_specs=pl.BlockSpec((1, C, t_hw), lambda b, t: (b, 0, t)),
        compiler_params=pltpu.CompilerParams(
            dimension_semantics=("parallel", "parallel"),
            vmem_limit_bytes=_VMEM_LIMIT),
    )(attn, qkv, w_proj, bp)


# ----------------------------------------------------------------------------
# Full forward pass (glue in plain JAX, hot paths in the kernels above).
# ----------------------------------------------------------------------------
def attention_forward(x, params, num_heads, compute_dtype=None, max_hw_tile=2048):
    # x: (B, C, H, W)  -- NCHW, matching PyTorch
    B, C, H, W = x.shape
    HW = H * W
    assert C % num_heads == 0
    assert C % 8 == 0, "channel dim must be a multiple of 8 for fused qkv chunking"
    if compute_dtype is None:
        compute_dtype = x.dtype

    x2 = x.reshape(B, C, HW)

    # qkv = qkv_dwconv(qkv(x))   (stays in (B, 3C, HW) layout throughout)
    qkv = pointwise_conv(x2, params["w_qkv"], params["b_qkv"],
                         compute_dtype=compute_dtype, max_hw_tile=max_hw_tile)
    qkv = dwconv3x3(qkv, params["w_dw"], params["b_dw"], H, W)

    temp = params["temperature"].reshape(num_heads, 1).astype(jnp.float32)
    attn = attn_scores(qkv, temp, num_heads=num_heads,
                       compute_dtype=compute_dtype, max_hw_tile=max_hw_tile)
    out = attn_apply_project(attn, qkv, params["w_proj"], params["b_proj"],
                             num_heads=num_heads, compute_dtype=compute_dtype,
                             max_hw_tile=max_hw_tile)
    return out.reshape(B, C, H, W)


# ----------------------------------------------------------------------------
# Pure-JAX reference (for correctness checking only).
# ----------------------------------------------------------------------------
def attention_reference(x, params, num_heads):
    B, C, H, W = x.shape
    HW = H * W
    Ch = C // num_heads

    qkv = jnp.einsum("oc,bchw->bohw", params["w_qkv"], x) \
        + params["b_qkv"][None, :, None, None]
    dw_w = params["w_dw"].reshape(3 * C, 1, 3, 3)
    qkv = jax.lax.conv_general_dilated(
        qkv, dw_w, window_strides=(1, 1), padding="SAME",
        feature_group_count=3 * C,
        dimension_numbers=("NCHW", "OIHW", "NCHW"),
    ) + params["b_dw"][None, :, None, None]

    qkv = qkv.reshape(B, 3 * C, HW)
    q, k, v = qkv[:, :C], qkv[:, C:2 * C], qkv[:, 2 * C:]
    q = q.reshape(B, num_heads, Ch, HW)
    k = k.reshape(B, num_heads, Ch, HW)
    v = v.reshape(B, num_heads, Ch, HW)

    def l2norm(a):
        n = jnp.sqrt(jnp.sum(a * a, axis=-1, keepdims=True))
        return a / jnp.maximum(n, 1e-12)

    q, k = l2norm(q), l2norm(k)
    attn = jnp.einsum("bhcd,bhed->bhce", q, k) * params["temperature"][None]
    attn = jax.nn.softmax(attn, axis=-1)
    out = jnp.einsum("bhce,bhed->bhcd", attn, v)
    out = out.reshape(B, C, HW)
    out = jnp.einsum("oc,bcd->bod", params["w_proj"], out) \
        + params["b_proj"][None, :, None]
    return out.reshape(B, C, H, W)


# ----------------------------------------------------------------------------
# Main
# ----------------------------------------------------------------------------
if __name__ == "__main__":
    B, dim, num_heads, H, W = 2, 16, 2, 16, 16

    key = jax.random.PRNGKey(0)
    keys = jax.random.split(key, 8)

    params = {
        "w_qkv": 0.05 * jax.random.normal(keys[0], (3 * dim, dim), jnp.float32),
        "b_qkv": 0.05 * jax.random.normal(keys[1], (3 * dim,), jnp.float32),
        "w_dw": 0.05 * jax.random.normal(keys[2], (3 * dim, 3, 3), jnp.float32),
        "b_dw": 0.05 * jax.random.normal(keys[3], (3 * dim,), jnp.float32),
        "w_proj": 0.05 * jax.random.normal(keys[4], (dim, dim), jnp.float32),
        "b_proj": 0.05 * jax.random.normal(keys[5], (dim,), jnp.float32),
        # nn.Parameter(torch.ones(num_heads,1,1)) -- perturbed so the temperature
        # multiply is exercised non-trivially.
        "temperature": 1.0 + 0.1 * jax.random.normal(keys[6], (num_heads, 1, 1),
                                                     jnp.float32),
    }

    x = jax.random.normal(keys[7], (B, dim, H, W), jnp.float32)
    ref = attention_reference(x, params, num_heads)

    # f32 path, small HW tile so the multi-tile accumulation path is exercised.
    fwd = jax.jit(functools.partial(attention_forward, num_heads=num_heads,
                                    max_hw_tile=128))
    out = jax.block_until_ready(fwd(x, params))
    assert out.shape == (B, dim, H, W)
    # Tolerance leaves headroom for the TPU's default matmul precision: the kernel
    # folds the L2 norm into the score matrix (different operand values reach the
    # MXU than in the normalize-first reference).
    assert jnp.allclose(out, ref, atol=5e-4, rtol=5e-4), \
        f"max abs err {jnp.max(jnp.abs(out - ref))}"

    # bf16 MXU-operand path (v6e/v7x full-rate MXU); f32 accumulation + f32 softmax.
    fwd_bf16 = jax.jit(functools.partial(attention_forward, num_heads=num_heads,
                                         compute_dtype=jnp.bfloat16))
    out_bf16 = jax.block_until_ready(fwd_bf16(x, params))
    err_bf16 = float(jnp.max(jnp.abs(out_bf16 - ref)))
    assert err_bf16 < 5e-2, f"bf16 path max abs err {err_bf16}"

    print("KERNEL_OK")
</pallas_src>

<mosaic_0001>
module attributes {stable_mosaic.version = 11 : i64} {
  func.func @_pointwise_kernel(%arg0: i32, %arg1: i32, %arg2: memref<1x16x128xf32, #tpu.memory_space<vmem>>, %arg3: memref<48x16xf32, #tpu.memory_space<vmem>>, %arg4: memref<48x1xf32, #tpu.memory_space<vmem>>, %arg5: memref<1x48x128xf32, #tpu.memory_space<vmem>>) attributes {dimension_semantics = [#tpu.dimension_semantics<parallel>, #tpu.dimension_semantics<parallel>], iteration_bounds = array<i64: 2, 2>, scalar_prefetch = 0 : i64, scratch_operands = 0 : i64, tpu.core_type = #tpu.core_type<tc>, window_params = [{transform_indices = @transform_0, window_bounds = array<i64: 1, 16, 128>}, {pipeline_mode = #tpu.pipeline_mode<synchronous>, transform_indices = @transform_1, window_bounds = array<i64: 48, 16>}, {pipeline_mode = #tpu.pipeline_mode<synchronous>, transform_indices = @transform_2, window_bounds = array<i64: 48, 1>}, {transform_indices = @transform_3, window_bounds = array<i64: 1, 48, 128>}]} {
    %c0 = arith.constant 0 : index
    %c0_0 = arith.constant 0 : index
    %c0_1 = arith.constant 0 : index
    %0 = vector.load %arg2[%c0, %c0_0, %c0_1] : memref<1x16x128xf32, #tpu.memory_space<vmem>>, vector<1x16x128xf32>
    %1 = vector.shape_cast %0 : vector<1x16x128xf32> to vector<16x128xf32>
    %c0_2 = arith.constant 0 : index
    %c0_3 = arith.constant 0 : index
    %2 = vector.load %arg3[%c0_2, %c0_3] : memref<48x16xf32, #tpu.memory_space<vmem>>, vector<48x16xf32>
    %cst = arith.constant dense<0.000000e+00> : vector<48x128xf32>
    %3 = tpu.matmul %2, %1, %cst {dimension_numbers = #tpu.dot_dimension_numbers<[1], [0], [0], [1], [0, 0, 1, 1], [], []>} : vector<48x16xf32>, vector<16x128xf32>, vector<48x128xf32> -> vector<48x128xf32>
    %c0_4 = arith.constant 0 : index
    %c0_5 = arith.constant 0 : index
    %4 = vector.load %arg4[%c0_4, %c0_5] : memref<48x1xf32, #tpu.memory_space<vmem>>, vector<48x1xf32>
    %5 = vector.broadcast %4 : vector<48x1xf32> to vector<48x128xf32>
    %6 = arith.addf %3, %5 : vector<48x128xf32>
    %c0_6 = arith.constant 0 : index
    %c0_7 = arith.constant 0 : index
    %c0_8 = arith.constant 0 : index
    %7 = vector.load %arg5[%c0_6, %c0_7, %c0_8] : memref<1x48x128xf32, #tpu.memory_space<vmem>>, vector<1x48x128xf32>
    %8 = vector.shape_cast %7 : vector<1x48x128xf32> to vector<48x128xf32>
    %9 = vector.shape_cast %6 : vector<48x128xf32> to vector<1x48x128xf32>
    tpu.vector_store %arg5[%c0_6, %c0_7, %c0_8], %9 {strides = array<i32>} : memref<1x48x128xf32, #tpu.memory_space<vmem>>, vector<1x48x128xf32>,
    return
  }
  func.func @transform_0(%arg0: i32, %arg1: i32) -> (i32, i32, i32) {
    %c0_i32 = arith.constant 0 : i32
    %c0_i32_0 = arith.constant 0 : i32
    return %arg0, %c0_i32, %arg1 : i32, i32, i32
  }
  func.func @transform_1(%arg0: i32, %arg1: i32) -> (i32, i32) {
    %c0_i32 = arith.constant 0 : i32
    %c0_i32_0 = arith.constant 0 : i32
    %c0_i32_1 = arith.constant 0 : i32
    return %c0_i32, %c0_i32_0 : i32, i32
  }
  func.func @transform_2(%arg0: i32, %arg1: i32) -> (i32, i32) {
    %c0_i32 = arith.constant 0 : i32
    %c0_i32_0 = arith.constant 0 : i32
    %c0_i32_1 = arith.constant 0 : i32
    return %c0_i32, %c0_i32_0 : i32, i32
  }
  func.func @transform_3(%arg0: i32, %arg1: i32) -> (i32, i32, i32) {
    %c0_i32 = arith.constant 0 : i32
    %c0_i32_0 = arith.constant 0 : i32
    return %arg0, %c0_i32, %arg1 : i32, i32, i32
  }
}

module attributes {stable_mosaic.version = 11 : i64} {
  func.func @_dwconv_kernel(%arg0: i32, %arg1: memref<1x48x256xf32, #tpu.memory_space<vmem>>, %arg2: memref<48x9xf32, #tpu.memory_space<vmem>>, %arg3: memref<48x1xf32, #tpu.memory_space<vmem>>, %arg4: memref<9x256xf32, #tpu.memory_space<vmem>>, %arg5: memref<1x48x256xf32, #tpu.memory_space<vmem>>) attributes {dimension_semantics = [#tpu.dimension_semantics<parallel>], iteration_bounds = array<i64: 2>, scalar_prefetch = 0 : i64, scratch_operands = 0 : i64, tpu.core_type = #tpu.core_type<tc>, window_params = [{transform_indices = @transform_0, window_bounds = array<i64: 1, 48, 256>}, {pipeline_mode = #tpu.pipeline_mode<synchronous>, transform_indices = @transform_1, window_bounds = array<i64: 48, 9>}, {pipeline_mode = #tpu.pipeline_mode<synchronous>, transform_indices = @transform_2, window_bounds = array<i64: 48, 1>}, {pipeline_mode = #tpu.pipeline_mode<synchronous>, transform_indices = @transform_3, window_bounds = array<i64: 9, 256>}, {transform_indices = @transform_4, window_bounds = array<i64: 1, 48, 256>}]} {
    %c0 = arith.constant 0 : index
    %c0_0 = arith.constant 0 : index
    %c0_1 = arith.constant 0 : index
    %0 = vector.load %arg1[%c0, %c0_0, %c0_1] : memref<1x48x256xf32, #tpu.memory_space<vmem>>, vector<1x48x256xf32>
    %1 = vector.shape_cast %0 : vector<1x48x256xf32> to vector<48x256xf32>
    %c0_2 = arith.constant 0 : index
    %c0_3 = arith.constant 0 : index
    %2 = vector.load %arg2[%c0_2, %c0_3] : memref<48x9xf32, #tpu.memory_space<vmem>>, vector<48x9xf32>
    %c0_4 = arith.constant 0 : index
    %c0_5 = arith.constant 0 : index
    %3 = vector.load %arg4[%c0_4, %c0_5] : memref<9x256xf32, #tpu.memory_space<vmem>>, vector<9x256xf32>
    %4 = vector.extract_strided_slice %2 {offsets = [0, 4], sizes = [48, 1], strides = [1, 1]} : vector<48x9xf32> to vector<48x1xf32>
    %5 = vector.broadcast %4 : vector<48x1xf32> to vector<48x256xf32>
    %6 = arith.mulf %1, %5 : vector<48x256xf32>
    %c17_i32 = arith.constant 17 : i32
    %7 = tpu.dynamic_rotate %1 by %c17_i32 dim 1 : vector<48x256xf32>, i32 -> vector<48x256xf32>
    %8 = vector.extract_strided_slice %2 {offsets = [0, 0], sizes = [48, 1], strides = [1, 1]} : vector<48x9xf32> to vector<48x1xf32>
    %9 = vector.extract_strided_slice %3 {offsets = [0, 0], sizes = [1, 256], strides = [1, 1]} : vector<9x256xf32> to vector<1x256xf32>
    %10 = vector.broadcast %9 : vector<1x256xf32> to vector<48x256xf32>
    %11 = arith.mulf %7, %10 : vector<48x256xf32>
    %12 = vector.broadcast %8 : vector<48x1xf32> to vector<48x256xf32>
    %13 = arith.mulf %12, %11 : vector<48x256xf32>
    %14 = arith.addf %6, %13 : vector<48x256xf32>
    %c16_i32 = arith.constant 16 : i32
    %15 = tpu.dynamic_rotate %1 by %c16_i32 dim 1 : vector<48x256xf32>, i32 -> vector<48x256xf32>
    %16 = vector.extract_strided_slice %2 {offsets = [0, 1], sizes = [48, 1], strides = [1, 1]} : vector<48x9xf32> to vector<48x1xf32>
    %17 = vector.extract_strided_slice %3 {offsets = [1, 0], sizes = [1, 256], strides = [1, 1]} : vector<9x256xf32> to vector<1x256xf32>
    %18 = vector.broadcast %17 : vector<1x256xf32> to vector<48x256xf32>
    %19 = arith.mulf %15, %18 : vector<48x256xf32>
    %20 = vector.broadcast %16 : vector<48x1xf32> to vector<48x256xf32>
    %21 = arith.mulf %20, %19 : vector<48x256xf32>
    %22 = arith.addf %14, %21 : vector<48x256xf32>
    %c15_i32 = arith.constant 15 : i32
    %23 = tpu.dynamic_rotate %1 by %c15_i32 dim 1 : vector<48x256xf32>, i32 -> vector<48x256xf32>
    %24 = vector.extract_strided_slice %2 {offsets = [0, 2], sizes = [48, 1], strides = [1, 1]} : vector<48x9xf32> to vector<48x1xf32>
    %25 = vector.extract_strided_slice %3 {offsets = [2, 0], sizes = [1, 256], strides = [1, 1]} : vector<9x256xf32> to vector<1x256xf32>
    %26 = vector.broadcast %25 : vector<1x256xf32> to vector<48x256xf32>
    %27 = arith.mulf %23, %26 : vector<48x256xf32>
    %28 = vector.broadcast %24 : vector<48x1xf32> to vector<48x256xf32>
    %29 = arith.mulf %28, %27 : vector<48x256xf32>
    %30 = arith.addf %22, %29 : vector<48x256xf32>
    %c1_i32 = arith.constant 1 : i32
    %31 = tpu.dynamic_rotate %1 by %c1_i32 dim 1 : vector<48x256xf32>, i32 -> vector<48x256xf32>
    %32 = vector.extract_strided_slice %2 {offsets = [0, 3], sizes = [48, 1], strides = [1, 1]} : vector<48x9xf32> to vector<48x1xf32>
    %33 = vector.extract_strided_slice %3 {offsets = [3, 0], sizes = [1, 256], strides = [1, 1]} : vector<9x256xf32> to vector<1x256xf32>
    %34 = vector.broadcast %33 : vector<1x256xf32> to vector<48x256xf32>
    %35 = arith.mulf %31, %34 : vector<48x256xf32>
    %36 = vector.broadcast %32 : vector<48x1xf32> to vector<48x256xf32>
    %37 = arith.mulf %36, %35 : vector<48x256xf32>
    %38 = arith.addf %30, %37 : vector<48x256xf32>
    %c255_i32 = arith.constant 255 : i32
    %39 = tpu.dynamic_rotate %1 by %c255_i32 dim 1 : vector<48x256xf32>, i32 -> vector<48x256xf32>
    %40 = vector.extract_strided_slice %2 {offsets = [0, 5], sizes = [48, 1], strides = [1, 1]} : vector<48x9xf32> to vector<48x1xf32>
    %41 = vector.extract_strided_slice %3 {offsets = [5, 0], sizes = [1, 256], strides = [1, 1]} : vector<9x256xf32> to vector<1x256xf32>
    %42 = vector.broadcast %41 : vector<1x256xf32> to vector<48x256xf32>
    %43 = arith.mulf %39, %42 : vector<48x256xf32>
    %44 = vector.broadcast %40 : vector<48x1xf32> to vector<48x256xf32>
    %45 = arith.mulf %44, %43 : vector<48x256xf32>
    %46 = arith.addf %38, %45 : vector<48x256xf32>
    %c241_i32 = arith.constant 241 : i32
    %47 = tpu.dynamic_rotate %1 by %c241_i32 dim 1 : vector<48x256xf32>, i32 -> vector<48x256xf32>
    %48 = vector.extract_strided_slice %2 {offsets = [0, 6], sizes = [48, 1], strides = [1, 1]} : vector<48x9xf32> to vector<48x1xf32>
    %49 = vector.extract_strided_slice %3 {offsets = [6, 0], sizes = [1, 256], strides = [1, 1]} : vector<9x256xf32> to vector<1x256xf32>
    %50 = vector.broadcast %49 : vector<1x256xf32> to vector<48x256xf32>
    %51 = arith.mulf %47, %50 : vector<48x256xf32>
    %52 = vector.broadcast %48 : vector<48x1xf32> to vector<48x256xf32>
    %53 = arith.mulf %52, %51 : vector<48x256xf32>
    %54 = arith.addf %46, %53 : vector<48x256xf32>
    %c240_i32 = arith.constant 240 : i32
    %55 = tpu.dynamic_rotate %1 by %c240_i32 dim 1 : vector<48x256xf32>, i32 -> vector<48x256xf32>
    %56 = vector.extract_strided_slice %2 {offsets = [0, 7], sizes = [48, 1], strides = [1, 1]} : vector<48x9xf32> to vector<48x1xf32>
    %57 = vector.extract_strided_slice %3 {offsets = [7, 0], sizes = [1, 256], strides = [1, 1]} : vector<9x256xf32> to vector<1x256xf32>
    %58 = vector.broadcast %57 : vector<1x256xf32> to vector<48x256xf32>
    %59 = arith.mulf %55, %58 : vector<48x256xf32>
    %60 = vector.broadcast %56 : vector<48x1xf32> to vector<48x256xf32>
    %61 = arith.mulf %60, %59 : vector<48x256xf32>
    %62 = arith.addf %54, %61 : vector<48x256xf32>
    %c239_i32 = arith.constant 239 : i32
    %63 = tpu.dynamic_rotate %1 by %c239_i32 dim 1 : vector<48x256xf32>, i32 -> vector<48x256xf32>
    %64 = vector.extract_strided_slice %2 {offsets = [0, 8], sizes = [48, 1], strides = [1, 1]} : vector<48x9xf32> to vector<48x1xf32>
    %65 = vector.extract_strided_slice %3 {offsets = [8, 0], sizes = [1, 256], strides = [1, 1]} : vector<9x256xf32> to vector<1x256xf32>
    %66 = vector.broadcast %65 : vector<1x256xf32> to vector<48x256xf32>
    %67 = arith.mulf %63, %66 : vector<48x256xf32>
    %68 = vector.broadcast %64 : vector<48x1xf32> to vector<48x256xf32>
    %69 = arith.mulf %68, %67 : vector<48x256xf32>
    %70 = arith.addf %62, %69 : vector<48x256xf32>
    %c0_6 = arith.constant 0 : index
    %c0_7 = arith.constant 0 : index
    %71 = vector.load %arg3[%c0_6, %c0_7] : memref<48x1xf32, #tpu.memory_space<vmem>>, vector<48x1xf32>
    %72 = vector.broadcast %71 : vector<48x1xf32> to vector<48x256xf32>
    %73 = arith.addf %70, %72 : vector<48x256xf32>
    %c0_8 = arith.constant 0 : index
    %c0_9 = arith.constant 0 : index
    %c0_10 = arith.constant 0 : index
    %74 = vector.load %arg5[%c0_8, %c0_9, %c0_10] : memref<1x48x256xf32, #tpu.memory_space<vmem>>, vector<1x48x256xf32>
    %75 = vector.shape_cast %74 : vector<1x48x256xf32> to vector<48x256xf32>
    %76 = vector.shape_cast %73 : vector<48x256xf32> to vector<1x48x256xf32>
    tpu.vector_store %arg5[%c0_8, %c0_9, %c0_10], %76 {strides = array<i32>} : memref<1x48x256xf32, #tpu.memory_space<vmem>>, vector<1x48x256xf32>,
    return
  }
  func.func @transform_0(%arg0: i32) -> (i32, i32, i32) {
    %c0_i32 = arith.constant 0 : i32
    %c0_i32_0 = arith.constant 0 : i32
    %c0_i32_1 = arith.constant 0 : i32
    return %arg0, %c0_i32, %c0_i32_0 : i32, i32, i32
  }
  func.func @transform_1(%arg0: i32) -> (i32, i32) {
    %c0_i32 = arith.constant 0 : i32
    %c0_i32_0 = arith.constant 0 : i32
    %c0_i32_1 = arith.constant 0 : i32
    return %c0_i32, %c0_i32_0 : i32, i32
  }
  func.func @transform_2(%arg0: i32) -> (i32, i32) {
    %c0_i32 = arith.constant 0 : i32
    %c0_i32_0 = arith.constant 0 : i32
    %c0_i32_1 = arith.constant 0 : i32
    return %c0_i32, %c0_i32_0 : i32, i32
  }
  func.func @transform_3(%arg0: i32) -> (i32, i32) {
    %c0_i32 = arith.constant 0 : i32
    %c0_i32_0 = arith.constant 0 : i32
    %c0_i32_1 = arith.constant 0 : i32
    return %c0_i32, %c0_i32_0 : i32, i32
  }
  func.func @transform_4(%arg0: i32) -> (i32, i32, i32) {
    %c0_i32 = arith.constant 0 : i32
    %c0_i32_0 = arith.constant 0 : i32
    %c0_i32_1 = arith.constant 0 : i32
    return %arg0, %c0_i32, %c0_i32_0 : i32, i32, i32
  }
}

module attributes {stable_mosaic.version = 11 : i64} {
  func.func @_scores_kernel(%arg0: i32, %arg1: i32, %arg2: memref<1x16x128xf32, #tpu.memory_space<vmem>>, %arg3: memref<1x16x128xf32, #tpu.memory_space<vmem>>, %arg4: memref<2x1xf32, #tpu.memory_space<vmem>>, %arg5: memref<1x2x8x8xf32, #tpu.memory_space<vmem>>, %arg6: memref<2x8x8xf32, #tpu.memory_space<vmem>>, %arg7: memref<2x8x1xf32, #tpu.memory_space<vmem>>, %arg8: memref<2x8xf32, #tpu.memory_space<vmem>>) attributes {dimension_semantics = [#tpu.dimension_semantics<parallel>, #tpu.dimension_semantics<arbitrary>], iteration_bounds = array<i64: 2, 2>, scalar_prefetch = 0 : i64, scratch_operands = 3 : i64, tpu.core_type = #tpu.core_type<tc>, window_params = [{transform_indices = @transform_0, window_bounds = array<i64: 1, 16, 128>}, {transform_indices = @transform_1, window_bounds = array<i64: 1, 16, 128>}, {pipeline_mode = #tpu.pipeline_mode<synchronous>, transform_indices = @transform_2, window_bounds = array<i64: 2, 1>}, {transform_indices = @transform_3, window_bounds = array<i64: 1, 2, 8, 8>}]} {
    %c0_i32 = arith.constant 0 : i32
    %0 = arith.cmpi eq, %arg1, %c0_i32 : i32
    %1 = arith.extui %0 : i1 to i32
    %c0_i32_0 = arith.constant 0 : i32
    %2 = arith.cmpi ne, %1, %c0_i32_0 : i32
    scf.if %2 {
      %cst_25 = arith.constant 0.000000e+00 : f32
      %27 = vector.broadcast %cst_25 : f32 to vector<2x8x8xf32>
      %c0_26 = arith.constant 0 : index
      %c0_27 = arith.constant 0 : index
      %c0_28 = arith.constant 0 : index
      %28 = vector.load %arg6[%c0_26, %c0_27, %c0_28] : memref<2x8x8xf32, #tpu.memory_space<vmem>>, vector<2x8x8xf32>
      tpu.vector_store %arg6[%c0_26, %c0_27, %c0_28], %27 {strides = array<i32>} : memref<2x8x8xf32, #tpu.memory_space<vmem>>, vector<2x8x8xf32>,
      %cst_29 = arith.constant 0.000000e+00 : f32
      %29 = vector.broadcast %cst_29 : f32 to vector<2x8x1xf32>
      %c0_30 = arith.constant 0 : index
      %c0_31 = arith.constant 0 : index
      %c0_32 = arith.constant 0 : index
      %30 = vector.load %arg7[%c0_30, %c0_31, %c0_32] : memref<2x8x1xf32, #tpu.memory_space<vmem>>, vector<2x8x1xf32>
      tpu.vector_store %arg7[%c0_30, %c0_31, %c0_32], %29 {strides = array<i32>} : memref<2x8x1xf32, #tpu.memory_space<vmem>>, vector<2x8x1xf32>,
      %cst_33 = arith.constant 0.000000e+00 : f32
      %31 = vector.broadcast %cst_33 : f32 to vector<2x8xf32>
      %c0_34 = arith.constant 0 : index
      %c0_35 = arith.constant 0 : index
      %32 = vector.load %arg8[%c0_34, %c0_35] : memref<2x8xf32, #tpu.memory_space<vmem>>, vector<2x8xf32>
      tpu.vector_store %arg8[%c0_34, %c0_35], %31 {strides = array<i32>} : memref<2x8xf32, #tpu.memory_space<vmem>>, vector<2x8xf32>,
    } else {
    }
    %c0 = arith.constant 0 : index
    %c0_1 = arith.constant 0 : index
    %c0_2 = arith.constant 0 : index
    %3 = vector.load %arg2[%c0, %c0_1, %c0_2] : memref<1x16x128xf32, #tpu.memory_space<vmem>>, vector<1x16x128xf32>
    %4 = vector.shape_cast %3 : vector<1x16x128xf32> to vector<16x128xf32>
    %5 = vector.shape_cast %4 : vector<16x128xf32> to vector<2x8x128xf32>
    %c0_3 = arith.constant 0 : index
    %c0_4 = arith.constant 0 : index
    %c0_5 = arith.constant 0 : index
    %6 = vector.load %arg3[%c0_3, %c0_4, %c0_5] : memref<1x16x128xf32, #tpu.memory_space<vmem>>, vector<1x16x128xf32>
    %7 = vector.shape_cast %6 : vector<1x16x128xf32> to vector<16x128xf32>
    %8 = vector.shape_cast %7 : vector<16x128xf32> to vector<2x8x128xf32>
    %c0_6 = arith.constant 0 : index
    %c0_7 = arith.constant 0 : index
    %c0_8 = arith.constant 0 : index
    %9 = vector.load %arg6[%c0_6, %c0_7, %c0_8] : memref<2x8x8xf32, #tpu.memory_space<vmem>>, vector<2x8x8xf32>
    "tpu.trace_start"() <{level = 10 : i32, message = "hct,het->hce"}> : () -> ()
    %cst = arith.constant dense<0.000000e+00> : vector<2x8x8xf32>
    %10 = tpu.matmul %5, %8, %cst {dimension_numbers = #tpu.dot_dimension_numbers<[2], [2], [1], [1], [0, 0, 0, 1, 1, 1], [0], [0]>} : vector<2x8x128xf32>, vector<2x8x128xf32>, vector<2x8x8xf32> -> vector<2x8x8xf32>
    "tpu.trace_stop"() : () -> ()
    %11 = arith.addf %9, %10 : vector<2x8x8xf32>
    %c0_9 = arith.constant 0 : index
    %c0_10 = arith.constant 0 : index
    %c0_11 = arith.constant 0 : index
    %12 = vector.load %arg6[%c0_9, %c0_10, %c0_11] : memref<2x8x8xf32, #tpu.memory_space<vmem>>, vector<2x8x8xf32>
    tpu.vector_store %arg6[%c0_9, %c0_10, %c0_11], %11 {strides = array<i32>} : memref<2x8x8xf32, #tpu.memory_space<vmem>>, vector<2x8x8xf32>,
    %c0_12 = arith.constant 0 : index
    %c0_13 = arith.constant 0 : index
    %c0_14 = arith.constant 0 : index
    %13 = vector.load %arg7[%c0_12, %c0_13, %c0_14] : memref<2x8x1xf32, #tpu.memory_space<vmem>>, vector<2x8x1xf32>
    %14 = arith.mulf %5, %5 : vector<2x8x128xf32>
    %cst_15 = arith.constant dense<0.000000e+00> : vector<2x8xf32>
    %15 = vector.multi_reduction <add>, %14, %cst_15 [2] : vector<2x8x128xf32> to vector<2x8xf32>
    %16 = vector.shape_cast %15 : vector<2x8xf32> to vector<2x8x1xf32>
    %17 = arith.addf %13, %16 : vector<2x8x1xf32>
    %c0_16 = arith.constant 0 : index
    %c0_17 = arith.constant 0 : index
    %c0_18 = arith.constant 0 : index
    %18 = vector.load %arg7[%c0_16, %c0_17, %c0_18] : memref<2x8x1xf32, #tpu.memory_space<vmem>>, vector<2x8x1xf32>
    tpu.vector_store %arg7[%c0_16, %c0_17, %c0_18], %17 {strides = array<i32>} : memref<2x8x1xf32, #tpu.memory_space<vmem>>, vector<2x8x1xf32>,
    %c0_19 = arith.constant 0 : index
    %c0_20 = arith.constant 0 : index
    %19 = vector.load %arg8[%c0_19, %c0_20] : memref<2x8xf32, #tpu.memory_space<vmem>>, vector<2x8xf32>
    %20 = arith.mulf %8, %8 : vector<2x8x128xf32>
    %cst_21 = arith.constant dense<0.000000e+00> : vector<2x8xf32>
    %21 = vector.multi_reduction <add>, %20, %cst_21 [2] : vector<2x8x128xf32> to vector<2x8xf32>
    %22 = arith.addf %19, %21 : vector<2x8xf32>
    %c0_22 = arith.constant 0 : index
    %c0_23 = arith.constant 0 : index
    %23 = vector.load %arg8[%c0_22, %c0_23] : memref<2x8xf32, #tpu.memory_space<vmem>>, vector<2x8xf32>
    tpu.vector_store %arg8[%c0_22, %c0_23], %22 {strides = array<i32>} : memref<2x8xf32, #tpu.memory_space<vmem>>, vector<2x8xf32>,
    %c1_i32 = arith.constant 1 : i32
    %24 = arith.cmpi eq, %arg1, %c1_i32 : i32
    %25 = arith.extui %24 : i1 to i32
    %c0_i32_24 = arith.constant 0 : i32
    %26 = arith.cmpi ne, %25, %c0_i32_24 : i32
    scf.if %26 {
      %c0_25 = arith.constant 0 : index
      %c0_26 = arith.constant 0 : index
      %27 = vector.load %arg4[%c0_25, %c0_26] : memref<2x1xf32, #tpu.memory_space<vmem>>, vector<2x1xf32>
      %28 = vector.shape_cast %27 : vector<2x1xf32> to vector<2x1x1xf32>
      %c0_27 = arith.constant 0 : index
      %c0_28 = arith.constant 0 : index
      %c0_29 = arith.constant 0 : index
      %29 = vector.load %arg7[%c0_27, %c0_28, %c0_29] : memref<2x8x1xf32, #tpu.memory_space<vmem>>, vector<2x8x1xf32>
      %30 = math.sqrt %29 : vector<2x8x1xf32>
      %cst_30 = arith.constant 9.99999996E-13 : f32
      %31 = vector.broadcast %cst_30 : f32 to vector<2x8x1xf32>
      %32 = arith.maximumf %30, %31 : vector<2x8x1xf32>
      %33 = vector.broadcast %28 : vector<2x1x1xf32> to vector<2x8x1xf32>
      %34 = arith.divf %33, %32 : vector<2x8x1xf32>
      %c0_31 = arith.constant 0 : index
      %c0_32 = arith.constant 0 : index
      %35 = vector.load %arg8[%c0_31, %c0_32] : memref<2x8xf32, #tpu.memory_space<vmem>>, vector<2x8xf32>
      %36 = math.sqrt %35 : vector<2x8xf32>
      %cst_33 = arith.constant 9.99999996E-13 : f32
      %37 = vector.broadcast %cst_33 : f32 to vector<2x8xf32>
      %38 = arith.maximumf %36, %37 : vector<2x8xf32>
      %cst_34 = arith.constant 1.000000e+00 : f32
      %39 = vector.broadcast %cst_34 : f32 to vector<2x8xf32>
      %40 = arith.divf %39, %38 : vector<2x8xf32>
      %c0_35 = arith.constant 0 : index
      %c0_36 = arith.constant 0 : index
      %c0_37 = arith.constant 0 : index
      %41 = vector.load %arg6[%c0_35, %c0_36, %c0_37] : memref<2x8x8xf32, #tpu.memory_space<vmem>>, vector<2x8x8xf32>
      %42 = vector.broadcast %34 : vector<2x8x1xf32> to vector<2x8x8xf32>
      %43 = arith.mulf %41, %42 : vector<2x8x8xf32>
      %44 = vector.shape_cast %40 : vector<2x8xf32> to vector<2x1x8xf32>
      %45 = vector.broadcast %44 : vector<2x1x8xf32> to vector<2x8x8xf32>
      %46 = arith.mulf %43, %45 : vector<2x8x8xf32>
      %cst_38 = arith.constant dense<0xFF800000> : vector<2x8xf32>
      %47 = vector.multi_reduction <maximumf>, %46, %cst_38 [2] : vector<2x8x8xf32> to vector<2x8xf32>
      %48 = vector.shape_cast %47 : vector<2x8xf32> to vector<2x8x1xf32>
      %49 = vector.broadcast %48 : vector<2x8x1xf32> to vector<2x8x8xf32>
      %50 = arith.subf %46, %49 : vector<2x8x8xf32>
      %51 = math.exp %50 : vector<2x8x8xf32>
      %cst_39 = arith.constant dense<0.000000e+00> : vector<2x8xf32>
      %52 = vector.multi_reduction <add>, %51, %cst_39 [2] : vector<2x8x8xf32> to vector<2x8xf32>
      %53 = vector.shape_cast %52 : vector<2x8xf32> to vector<2x8x1xf32>
      %54 = vector.broadcast %53 : vector<2x8x1xf32> to vector<2x8x8xf32>
      %55 = arith.divf %51, %54 : vector<2x8x8xf32>
      %c0_40 = arith.constant 0 : index
      %c0_41 = arith.constant 0 : index
      %c0_42 = arith.constant 0 : index
      %c0_43 = arith.constant 0 : index
      %56 = vector.load %arg5[%c0_40, %c0_41, %c0_42, %c0_43] : memref<1x2x8x8xf32, #tpu.memory_space<vmem>>, vector<1x2x8x8xf32>
      %57 = vector.shape_cast %56 : vector<1x2x8x8xf32> to vector<2x8x8xf32>
      %58 = vector.shape_cast %55 : vector<2x8x8xf32> to vector<1x2x8x8xf32>
      tpu.vector_store %arg5[%c0_40, %c0_41, %c0_42, %c0_43], %58 {strides = array<i32>} : memref<1x2x8x8xf32, #tpu.memory_space<vmem>>, vector<1x2x8x8xf32>,
    } else {
    }
    return
  }
  func.func @transform_0(%arg0: i32, %arg1: i32) -> (i32, i32, i32) {
    %c0_i32 = arith.constant 0 : i32
    %c0_i32_0 = arith.constant 0 : i32
    return %arg0, %c0_i32, %arg1 : i32, i32, i32
  }
  func.func @transform_1(%arg0: i32, %arg1: i32) -> (i32, i32, i32) {
    %c1_i32 = arith.constant 1 : i32
    %c0_i32 = arith.constant 0 : i32
    return %arg0, %c1_i32, %arg1 : i32, i32, i32
  }
  func.func @transform_2(%arg0: i32, %arg1: i32) -> (i32, i32) {
    %c0_i32 = arith.constant 0 : i32
    %c0_i32_0 = arith.constant 0 : i32
    %c0_i32_1 = arith.constant 0 : i32
    return %c0_i32, %c0_i32_0 : i32, i32
  }
  func.func @transform_3(%arg0: i32, %arg1: i32) -> (i32, i32, i32, i32) {
    %c0_i32 = arith.constant 0 : i32
    %c0_i32_0 = arith.constant 0 : i32
    %c0_i32_1 = arith.constant 0 : i32
    %c0_i32_2 = arith.constant 0 : i32
    return %arg0, %c0_i32, %c0_i32_0, %c0_i32_1 : i32, i32, i32, i32
  }
}

module attributes {stable_mosaic.version = 11 : i64} {
  func.func @_apply_kernel(%arg0: i32, %arg1: i32, %arg2: memref<1x2x8x8xf32, #tpu.memory_space<vmem>>, %arg3: memref<1x16x128xf32, #tpu.memory_space<vmem>>, %arg4: memref<16x16xf32, #tpu.memory_space<vmem>>, %arg5: memref<16x1xf32, #tpu.memory_space<vmem>>, %arg6: memref<1x16x128xf32, #tpu.memory_space<vmem>>) attributes {dimension_semantics = [#tpu.dimension_semantics<parallel>, #tpu.dimension_semantics<parallel>], iteration_bounds = array<i64: 2, 2>, scalar_prefetch = 0 : i64, scratch_operands = 0 : i64, tpu.core_type = #tpu.core_type<tc>, window_params = [{transform_indices = @transform_0, window_bounds = array<i64: 1, 2, 8, 8>}, {transform_indices = @transform_1, window_bounds = array<i64: 1, 16, 128>}, {pipeline_mode = #tpu.pipeline_mode<synchronous>, transform_indices = @transform_2, window_bounds = array<i64: 16, 16>}, {pipeline_mode = #tpu.pipeline_mode<synchronous>, transform_indices = @transform_3, window_bounds = array<i64: 16, 1>}, {transform_indices = @transform_4, window_bounds = array<i64: 1, 16, 128>}]} {
    %c0 = arith.constant 0 : index
    %c0_0 = arith.constant 0 : index
    %c0_1 = arith.constant 0 : index
    %c0_2 = arith.constant 0 : index
    %0 = vector.load %arg2[%c0, %c0_0, %c0_1, %c0_2] : memref<1x2x8x8xf32, #tpu.memory_space<vmem>>, vector<1x2x8x8xf32>
    %1 = vector.shape_cast %0 : vector<1x2x8x8xf32> to vector<2x8x8xf32>
    %c0_3 = arith.constant 0 : index
    %c0_4 = arith.constant 0 : index
    %c0_5 = arith.constant 0 : index
    %2 = vector.load %arg3[%c0_3, %c0_4, %c0_5] : memref<1x16x128xf32, #tpu.memory_space<vmem>>, vector<1x16x128xf32>
    %3 = vector.shape_cast %2 : vector<1x16x128xf32> to vector<16x128xf32>
    %4 = vector.shape_cast %3 : vector<16x128xf32> to vector<2x8x128xf32>
    "tpu.trace_start"() <{level = 10 : i32, message = "hce,het->hct"}> : () -> ()
    %cst = arith.constant dense<0.000000e+00> : vector<2x8x128xf32>
    %5 = tpu.matmul %1, %4, %cst {dimension_numbers = #tpu.dot_dimension_numbers<[2], [1], [1], [2], [0, 0, 0, 1, 1, 2], [0], [0]>} : vector<2x8x8xf32>, vector<2x8x128xf32>, vector<2x8x128xf32> -> vector<2x8x128xf32>
    "tpu.trace_stop"() : () -> ()
    %6 = vector.shape_cast %5 : vector<2x8x128xf32> to vector<16x128xf32>
    %c0_6 = arith.constant 0 : index
    %c0_7 = arith.constant 0 : index
    %7 = vector.load %arg4[%c0_6, %c0_7] : memref<16x16xf32, #tpu.memory_space<vmem>>, vector<16x16xf32>
    %cst_8 = arith.constant dense<0.000000e+00> : vector<16x128xf32>
    %8 = tpu.matmul %7, %6, %cst_8 {dimension_numbers = #tpu.dot_dimension_numbers<[1], [0], [0], [1], [0, 0, 1, 1], [], []>} : vector<16x16xf32>, vector<16x128xf32>, vector<16x128xf32> -> vector<16x128xf32>
    %c0_9 = arith.constant 0 : index
    %c0_10 = arith.constant 0 : index
    %9 = vector.load %arg5[%c0_9, %c0_10] : memref<16x1xf32, #tpu.memory_space<vmem>>, vector<16x1xf32>
    %10 = vector.broadcast %9 : vector<16x1xf32> to vector<16x128xf32>
    %11 = arith.addf %8, %10 : vector<16x128xf32>
    %c0_11 = arith.constant 0 : index
    %c0_12 = arith.constant 0 : index
    %c0_13 = arith.constant 0 : index
    %12 = vector.load %arg6[%c0_11, %c0_12, %c0_13] : memref<1x16x128xf32, #tpu.memory_space<vmem>>, vector<1x16x128xf32>
    %13 = vector.shape_cast %12 : vector<1x16x128xf32> to vector<16x128xf32>
    %14 = vector.shape_cast %11 : vector<16x128xf32> to vector<1x16x128xf32>
    tpu.vector_store %arg6[%c0_11, %c0_12, %c0_13], %14 {strides = array<i32>} : memref<1x16x128xf32, #tpu.memory_space<vmem>>, vector<1x16x128xf32>,
    return
  }
  func.func @transform_0(%arg0: i32, %arg1: i32) -> (i32, i32, i32, i32) {
    %c0_i32 = arith.constant 0 : i32
    %c0_i32_0 = arith.constant 0 : i32
    %c0_i32_1 = arith.constant 0 : i32
    %c0_i32_2 = arith.constant 0 : i32
    return %arg0, %c0_i32, %c0_i32_0, %c0_i32_1 : i32, i32, i32, i32
  }
  func.func @transform_1(%arg0: i32, %arg1: i32) -> (i32, i32, i32) {
    %c2_i32 = arith.constant 2 : i32
    %c0_i32 = arith.constant 0 : i32
    return %arg0, %c2_i32, %arg1 : i32, i32, i32
  }
  func.func @transform_2(%arg0: i32, %arg1: i32) -> (i32, i32) {
    %c0_i32 = arith.constant 0 : i32
    %c0_i32_0 = arith.constant 0 : i32
    %c0_i32_1 = arith.constant 0 : i32
    return %c0_i32, %c0_i32_0 : i32, i32
  }
  func.func @transform_3(%arg0: i32, %arg1: i32) -> (i32, i32) {
    %c0_i32 = arith.constant 0 : i32
    %c0_i32_0 = arith.constant 0 : i32
    %c0_i32_1 = arith.constant 0 : i32
    return %c0_i32, %c0_i32_0 : i32, i32
  }
  func.func @transform_4(%arg0: i32, %arg1: i32) -> (i32, i32, i32) {
    %c0_i32 = arith.constant 0 : i32
    %c0_i32_0 = arith.constant 0 : i32
    return %arg0, %c0_i32, %arg1 : i32, i32, i32
  }
}

</mosaic_0001>

<llo_original>
// kernel: attention_forward.4
$region0: #{attention_forward.4}
  #allocation0 [shape = 'u32[]', space=smem, size = 0x4, offset = 0x4, fixed_abs, tag = 'smem constant byte address 0x4 - core index']
  #allocation1 [shape = 'u32[144,128]{1,0:T(1,128)}', space=vmem, size = 0x12000, scoped, tag = 'internal scratch']
  %s0 = inlined_call_operand.vmem [shape: f32[2,16,256], index: 0, kind: input, shape index: {}]
  %s1 = inlined_call_operand.vmem [shape: f32[48,16], index: 1, kind: input, shape index: {}]
  %s2 = inlined_call_operand.vmem [shape: f32[48,1], index: 2, kind: input, shape index: {}]
  %s3 = inlined_call_operand.vmem [shape: f32[2,48,256], index: 3, kind: output, shape index: {}]
  %s4 = sld [smem:[#allocation0]]
  $region117: #{attention_forward.4} parent=0
    _
  %s6 = ssub.s32 1, %s4
  %s7 = scalar_select 0, %s6, %s4
  $region1: #{attention_forward.4} parent=0
    #allocation2 [shape = 'u8[16384]{0}', space=vmem, size = 0x4000, scoped, tag = 'input window, operand 0']
    #allocation3 [shape = 'u8[49152]{0}', space=vmem, size = 0xc000, scoped, tag = 'output window, operand 0']
    loop: start=0, step=1, limit=6
    $region2: #{attention_forward.4} parent=1 // loop_pre_header
      _
    $region3: #{attention_forward.4} parent=1 // loop_header
      %s9 = sphi 0, %s13
      %p10 = scmp.ge.s32.totalorder %s9, 6
      %s16 = sphi 0, %s28
      %s17 = sphi 0, %s24
      %s18 = sphi 0, %s16
      %s19 = sphi 0, %s17
      %s20 = sphi 0, %s18
      %s21 = sphi 0, %s19
      %s33 = sphi 0, %s35
      %s36 = sphi 0, %s33
      %s37 = sphi 0, %s36
      %s53 = sphi 0, %s37
      %s57 = sphi 0, %s57
      %s59 = sphi 0, %s57
      %s60 = sphi 0, %s59
      %s74 = sphi 0, %s60
      %s78 = sphi 0, %s78
      %s80 = sphi 0, %s78
      %s81 = sphi 0, %s80
      %s95 = sphi 0, %s81
      %s103 = sphi 0, %s105
      %s106 = sphi 0, %s103
      %s107 = sphi 0, %s106
      %s123 = sphi 0, %s107
    $region4: #{attention_forward.4} parent=1 // loop_header_branch
      %12 = sbr.rel (%p10) target = $region8
    $region5: #{attention_forward.4} parent=1 // loop_body
      %s14 = ssub.s32 %s9, 1
      %s15 = ssub.s32 %s9, 2
      %s22 = sadd.s32 1, %s17
      %p23 = scmp.ge.s32.totalorder %s22, 2
      %s24 = scalar_select %p23, 0, %s22
      %s25 = sadd.s32 1, %s16
      %s26 = scalar_select %p23, %s25, %s16
      %p27 = scmp.ge.s32.totalorder %s26, 2
      %s28 = scalar_select %p27, 0, %s26
      %s29 = ssub.s32 %s16, %s28
      %s30 = ssub.s32 %s17, %s24
      %s31 = sor.u32 %s29, %s30
      %p32 = scmp.eq.s32.totalorder %s31, 0
      %s34 = sadd.s32 %s33, 1
      %s35 = scalar_select %p32, %s33, %s34
      %p38 = pneg %p32
      %p39 = scmp.eq.s32.totalorder %s9, 3
      %p40 = por %p38, %p39
      %p41 = scmp.ne.s32.totalorder %s33, %s36
      %p42 = scmp.eq.s32.totalorder %s9, 0
      %p43 = por %p41, %p42
      %p44 = scmp.ne.s32.totalorder %s33, %s36
      %p45 = scmp.eq.s32.totalorder %s14, 3
      %p46 = por %p44, %p45
      %p47 = scmp.ne.s32.totalorder %s36, %s37
      %p48 = scmp.eq.s32.totalorder %s14, 0
      %p49 = por %p47, %p48
      %p50 = scmp.ne.s32.totalorder %s36, %s37
      %p51 = scmp.eq.s32.totalorder %s15, 3
      %p52 = por %p50, %p51
      %p54 = scmp.ne.s32.totalorder %s37, %s53
      %p55 = scmp.eq.s32.totalorder %s15, 0
      %p56 = por %p54, %p55
      %s58 = sadd.s32 %s57, 1
      %p61 = scmp.eq.s32.totalorder %s9, 3
      %p62 = scmp.ne.s32.totalorder %s57, %s59
      %p63 = scmp.eq.s32.totalorder %s9, 0
      %p64 = por %p62, %p63
      %p65 = scmp.ne.s32.totalorder %s57, %s59
      %p66 = scmp.eq.s32.totalorder %s14, 3
      %p67 = por %p65, %p66
      %p68 = scmp.ne.s32.totalorder %s59, %s60
      %p69 = scmp.eq.s32.totalorder %s14, 0
      %p70 = por %p68, %p69
      %p71 = scmp.ne.s32.totalorder %s59, %s60
      %p72 = scmp.eq.s32.totalorder %s15, 3
      %p73 = por %p71, %p72
      %p75 = scmp.ne.s32.totalorder %s60, %s74
      %p76 = scmp.eq.s32.totalorder %s15, 0
      %p77 = por %p75, %p76
      %s79 = sadd.s32 %s78, 1
      %p82 = scmp.eq.s32.totalorder %s9, 3
      %p83 = scmp.ne.s32.totalorder %s78, %s80
      %p84 = scmp.eq.s32.totalorder %s9, 0
      %p85 = por %p83, %p84
      %p86 = scmp.ne.s32.totalorder %s78, %s80
      %p87 = scmp.eq.s32.totalorder %s14, 3
      %p88 = por %p86, %p87
      %p89 = scmp.ne.s32.totalorder %s80, %s81
      %p90 = scmp.eq.s32.totalorder %s14, 0
      %p91 = por %p89, %p90
      %p92 = scmp.ne.s32.totalorder %s80, %s81
      %p93 = scmp.eq.s32.totalorder %s15, 3
      %p94 = por %p92, %p93
      %p96 = scmp.ne.s32.totalorder %s81, %s95
      %p97 = scmp.eq.s32.totalorder %s15, 0
      %p98 = por %p96, %p97
      %s99 = ssub.s32 %s16, %s28
      %s100 = ssub.s32 %s17, %s24
      %s101 = sor.u32 %s99, %s100
      %p102 = scmp.eq.s32.totalorder %s101, 0
      %s104 = sadd.s32 %s103, 1
      %s105 = scalar_select %p102, %s103, %s104
      %p108 = pneg %p102
      %p109 = scmp.eq.s32.totalorder %s9, 3
      %p110 = por %p108, %p109
      %p111 = scmp.ne.s32.totalorder %s103, %s106
      %p112 = scmp.eq.s32.totalorder %s9, 0
      %p113 = por %p111, %p112
      %p114 = scmp.ne.s32.totalorder %s103, %s106
      %p115 = scmp.eq.s32.totalorder %s14, 3
      %p116 = por %p114, %p115
      %p117 = scmp.ne.s32.totalorder %s106, %s107
      %p118 = scmp.eq.s32.totalorder %s14, 0
      %p119 = por %p117, %p118
      %p120 = scmp.ne.s32.totalorder %s106, %s107
      %p121 = scmp.eq.s32.totalorder %s15, 3
      %p122 = por %p120, %p121
      %p124 = scmp.ne.s32.totalorder %s107, %s123
      %p125 = scmp.eq.s32.totalorder %s15, 0
      %p126 = por %p124, %p125
      %p127 = scmp.le.s32.totalorder 1, %s9
      %p128 = scmp.lt.s32.totalorder %s9, 5
      %p129 = pnand %p127, %p128
      %p130 = pneg %p129
      // Predicated region
      $region9: #{attention_forward.4} parent=5 // pred_check
        _
      $region10: #{attention_forward.4} parent=5 // pred_check_branch
        %132 = sbr.rel (%p129) target = $region12
      $region11: #{attention_forward.4} parent=5 // pred_region
        %s133 = ssub.s32 %s9, 1
        // Predicated region
        $region13: #{attention_forward.4} parent=11 // pred_check
          %p134 = pneg %p70
        $region14: #{attention_forward.4} parent=11 // pred_check_branch
          %136 = sbr.rel (%p134) target = $region16
        $region15: #{attention_forward.4} parent=11 // pred_region
          _
        $region16: #{attention_forward.4} parent=11 // pred_fallthru
          _
        // Predicated region
        $region17: #{attention_forward.4} parent=11 // pred_check
          %p137 = pneg %p91
        $region18: #{attention_forward.4} parent=11 // pred_check_branch
          %139 = sbr.rel (%p137) target = $region20
        $region19: #{attention_forward.4} parent=11 // pred_region
          _
        $region20: #{attention_forward.4} parent=11 // pred_fallthru
          _
      $region12: #{attention_forward.4} parent=5 // pred_fallthru
        _
      %p140 = scmp.lt.s32.totalorder %s9, 4
      // Predicated region
      $region21: #{attention_forward.4} parent=5 // pred_check
        %p141 = pneg %p140
      $region22: #{attention_forward.4} parent=5 // pred_check_branch
        %143 = sbr.rel (%p141) target = $region24
      $region23: #{attention_forward.4} parent=5 // pred_region
        // Predicated region
        $region25: #{attention_forward.4} parent=23 // pred_check
          %p144 = pneg %p43
        $region26: #{attention_forward.4} parent=23 // pred_check_branch
          %146 = sbr.rel (%p144) target = $region28
        $region27: #{attention_forward.4} parent=23 // pred_region
          %s147 = sand.u32 %s33, 1
          %s148 = sand.u32 %s33, 1
          %s149 = smul.addr %s148, 16
          %s150 = scalar_lea.vmem [#allocation2], %s149
          %s151 = smul.addr %s16, 4
          %s152 = sadd.s32 %s17, %s151
          %s153 = smul.addr %s152, 8
          %s154 = scalar_lea.vmem %s0, %s153
          // Predicated region
          $region29: #{attention_forward.4} parent=27 // pred_check
            _
          $region30: #{attention_forward.4} parent=27 // pred_check_branch
            %156 = sbr.rel (0) target = $region32
          $region31: #{attention_forward.4} parent=27 // pred_region
            // Predicated region
            $region33: #{attention_forward.4} parent=31 // pred_check
              _
            $region34: #{attention_forward.4} parent=31 // pred_check_branch
              %158 = sbr.rel (0) target = $region36
            $region35: #{attention_forward.4} parent=31 // pred_region
              // Predicated region
              $region48: #{attention_forward.4} parent=35 // pred_check
                _
              $region49: #{attention_forward.4} parent=35 // pred_check_branch
                %176 = sbr.rel (0) target = $region51
              $region50: #{attention_forward.4} parent=35 // pred_region
                loop: start=0, step=1, limit=1
                $region52: #{attention_forward.4} parent=50 // loop_pre_header
                  _
                $region53: #{attention_forward.4} parent=50 // loop_header
                  %s178 = sphi 0, %s182
                  %p179 = scmp.ge.s32.totalorder %s178, 1
                  %s183 = sphi %s154, %s154
                  %s184 = sphi %s150, %s150
                $region54: #{attention_forward.4} parent=50 // loop_header_branch
                  %181 = sbr.rel (%p179) target = $region58
                $region55: #{attention_forward.4} parent=50 // loop_body
                  %v185 = vld [vmem:[%s183] sm:$0xff]
                  %186 = vst [vmem:[%s184] sm:$0xff] %v185
                  %v187 = vld [vmem:[%s183 + $0x10] sm:$0xff]
                  %188 = vst [vmem:[%s184 + $0x8] sm:$0xff] %v187
                $region56: #{attention_forward.4} parent=50 // loop_footer
                  %s182 = sadd.s32 1, %s178
                $region57: #{attention_forward.4} parent=50 // loop_footer_branch
                  %177 = sbr.rel target = $region53
                $region58: #{attention_forward.4} parent=50 // loop_exit
                  _
              $region51: #{attention_forward.4} parent=35 // pred_fallthru
                _
              // Predicated region
              $region59: #{attention_forward.4} parent=35 // pred_check
                _
              $region60: #{attention_forward.4} parent=35 // pred_check_branch
                %190 = sbr.rel target = $region62
              $region61: #{attention_forward.4} parent=35 // pred_region
                _
              $region62: #{attention_forward.4} parent=35 // pred_fallthru
                _
            $region36: #{attention_forward.4} parent=31 // pred_fallthru
              _
            // Predicated region
            $region37: #{attention_forward.4} parent=31 // pred_check
              _
            $region38: #{attention_forward.4} parent=31 // pred_check_branch
              %160 = sbr.rel target = $region40
            $region39: #{attention_forward.4} parent=31 // pred_region
              %s162 = ssub.s32 256, 1
              loop: start=0, step=1, limit=1
              $region41: #{attention_forward.4} parent=39 // loop_pre_header
                _
              $region42: #{attention_forward.4} parent=39 // loop_header
                %s164 = sphi 0, %s168
                %p165 = scmp.ge.s32.totalorder %s164, 1
                %s169 = sphi %s154, %s154
                %s170 = sphi %s150, %s150
              $region43: #{attention_forward.4} parent=39 // loop_header_branch
                %167 = sbr.rel (%p165) target = $region47
              $region44: #{attention_forward.4} parent=39 // loop_body
                %v171 = vld [vmem:[%s169] sm:%s162]
                %172 = vst [vmem:[%s170] sm:%s162] %v171
                %v173 = vld [vmem:[%s169 + $0x10] sm:%s162]
                %174 = vst [vmem:[%s170 + $0x8] sm:%s162] %v173
              $region45: #{attention_forward.4} parent=39 // loop_footer
                %s168 = sadd.s32 1, %s164
              $region46: #{attention_forward.4} parent=39 // loop_footer_branch
                %163 = sbr.rel target = $region42
              $region47: #{attention_forward.4} parent=39 // loop_exit
                _
            $region40: #{attention_forward.4} parent=31 // pred_fallthru
              _
          $region32: #{attention_forward.4} parent=27 // pred_fallthru
            _
          %191 = vnop
        $region28: #{attention_forward.4} parent=23 // pred_fallthru
          _
      $region24: #{attention_forward.4} parent=5 // pred_fallthru
        _
      %p192 = scmp.le.s32.totalorder 1, %s9
      %p193 = scmp.lt.s32.totalorder %s9, 5
      %p194 = pnand %p192, %p193
      %p195 = pneg %p194
      // Predicated region
      $region63: #{attention_forward.4} parent=5 // pred_check
        _
      $region64: #{attention_forward.4} parent=5 // pred_check_branch
        %197 = sbr.rel (%p194) target = $region66
      $region65: #{attention_forward.4} parent=5 // pred_region
        %s198 = ssub.s32 %s9, 1
        %s199 = sand.u32 %s36, 1
        %s200 = sand.u32 %s36, 1
        %s201 = smul.addr %s200, 16
        %s202 = scalar_lea.vmem [#allocation2], %s201
        // Predicated region
        $region67: #{attention_forward.4} parent=65 // pred_check
          %p203 = pneg %p49
        $region68: #{attention_forward.4} parent=65 // pred_check_branch
          %205 = sbr.rel (%p203) target = $region70
        $region69: #{attention_forward.4} parent=65 // pred_region
          _
        $region70: #{attention_forward.4} parent=65 // pred_fallthru
          _
        %s206 = sand.u32 %s36, 1
        %s207 = sand.u32 %s36, 1
        %s208 = smul.addr %s207, 16
        %s209 = scalar_lea.vmem [#allocation2], %s208
        %p210 = pneg %p49
        %p211 = pneg %p46
        %p212 = pneg %p70
        %p213 = pneg %p67
        %p214 = pneg %p91
        %p215 = pneg %p88
        %p216 = pneg %p119
        %p217 = pneg %p116
        %s218 = sand.u32 %s106, 1
        %s219 = sand.u32 %s106, 1
        %s220 = smul.addr %s219, 48
        %s221 = scalar_lea.vmem [#allocation3], %s220
        %v222 = vld [vmem:[%s202] sm:$0xff]
        %v223 = vld [vmem:[%s202 + $0x8] sm:$0xff]
        %v224 = vld [vmem:[%s1] sm:$0xff]
        %v225 = vld [vmem:[%s1 + $0x8] sm:$0xff]
        %v226 = vld [vmem:[%s1 + $0x10] sm:$0xff]
        %v227 = vld [vmem:[%s1 + $0x18] sm:$0xff]
        %v228 = vld [vmem:[%s1 + $0x20] sm:$0xff]
        %v229 = vld [vmem:[%s1 + $0x28] sm:$0xff]
        %v230 = vld [vmem:[%s2] sm:$0xff]
        %v231 = vld [vmem:[%s2 + $0x8] sm:$0xff]
        %v232 = vld [vmem:[%s2 + $0x10] sm:$0xff]
        %v233 = vld [vmem:[%s2 + $0x18] sm:$0xff]
        %v234 = vld [vmem:[%s2 + $0x20] sm:$0xff]
        %v235 = vld [vmem:[%s2 + $0x28] sm:$0xff]
        %237 = vset.pattern.permute.xlu0 0
        %238 = vperm.xlu0 %237, %v230
        %v239 = vpop.permute.xlu0 %238
        %242 = vset.pattern.permute.xlu0 0
        %243 = vperm.xlu0 %242, %v231
        %v244 = vpop.permute.xlu0 %243
        %247 = vset.pattern.permute.xlu0 0
        %248 = vperm.xlu0 %247, %v232
        %v249 = vpop.permute.xlu0 %248
        %252 = vset.pattern.permute.xlu0 0
        %253 = vperm.xlu0 %252, %v233
        %v254 = vpop.permute.xlu0 %253
        %257 = vset.pattern.permute.xlu0 0
        %258 = vperm.xlu0 %257, %v234
        %v259 = vpop.permute.xlu0 %258
        %262 = vset.pattern.permute.xlu0 0
        %263 = vperm.xlu0 %262, %v235
        %v264 = vpop.permute.xlu0 %263
        %vm266 = vcmask 130048
        %v268 = vsel %vm266, %v224, 0
        %v271 = vsel %vm266, %v225, 0
        %v274 = vsel %vm266, %v226, 0
        %v277 = vsel %vm266, %v227, 0
        %v280 = vsel %vm266, %v228, 0
        %v283 = vsel %vm266, %v229, 0
        %285 = vmatprep.subr.mxu0 0.0
        %286 = vmatpush1.msra.mxu0 0.0
        %287 = vmatprep.subr.mxu0 0.0
        %288 = vmatpush1.msra.mxu0 0.0
        %289 = vmatprep.subr.mxu0 0.0
        %290 = vmatpush1.msra.mxu0 0.0
        %291 = vmatprep.subr.mxu0 0.0
        %292 = vmatpush1.msra.mxu0 0.0
        %293 = vmatprep.subr.mxu0 0.0
        %294 = vmatpush1.msra.mxu0 0.0
        %295 = vmatprep.subr.mxu0 0.0
        %296 = vmatpush1.msra.mxu0 0.0
        %297 = vmatprep.subr.mxu0 0.0
        %298 = vmatpush1.msra.mxu0 0.0
        %299 = vmatprep.subr.mxu0 0.0
        %300 = vmatpush1.msra.mxu0 0.0
        %301 = vmatprep.subr.mxu0 0.0
        %302 = vmatpush1.msra.mxu0 0.0
        %303 = vmatprep.subr.mxu0 0.0
        %304 = vmatpush1.msra.mxu0 0.0
        %305 = vmatprep.subr.mxu0 0.0
        %306 = vmatpush1.msra.mxu0 0.0
        %307 = vmatprep.subr.mxu0 0.0
        %308 = vmatpush1.msra.mxu0 0.0
        %309 = vmatprep.subr.mxu0 0.0
        %310 = vmatpush1.msra.mxu0 0.0
        %311 = vmatprep.subr.mxu0 0.0
        %312 = vmatpush1.msra.mxu0 0.0
        %313 = vmatprep.subr.mxu0 0.0
        %314 = vmatpush1.msra.mxu0 %v223
        %315 = vmatprep.subr.mxu0 0.0
        %316 = vmatpush1.msra.mxu0 %v222
        %317 = vmatprep.subr.mxu0 0.0
        %318 = vmatpush2.msra.mxu0 0.0
        %319 = vmatprep.subr.mxu0 0.0
        %320 = vmatpush2.msra.mxu0 0.0
        %321 = vmatprep.subr.mxu0 0.0
        %322 = vmatpush2.msra.mxu0 0.0
        %323 = vmatprep.subr.mxu0 0.0
        %324 = vmatpush2.msra.mxu0 0.0
        %325 = vmatprep.subr.mxu0 0.0
        %326 = vmatpush2.msra.mxu0 0.0
        %327 = vmatprep.subr.mxu0 0.0
        %328 = vmatpush2.msra.mxu0 0.0
        %329 = vmatprep.subr.mxu0 0.0
        %330 = vmatpush2.msra.mxu0 0.0
        %331 = vmatprep.subr.mxu0 0.0
        %332 = vmatpush2.msra.mxu0 0.0
        %333 = vmatprep.subr.mxu0 0.0
        %334 = vmatpush2.msra.mxu0 0.0
        %335 = vmatprep.subr.mxu0 0.0
        %336 = vmatpush2.msra.mxu0 0.0
        %337 = vmatprep.subr.mxu0 0.0
        %338 = vmatpush2.msra.mxu0 0.0
        %339 = vmatprep.subr.mxu0 0.0
        %340 = vmatpush2.msra.mxu0 0.0
        %341 = vmatprep.subr.mxu0 0.0
        %342 = vmatpush2.msra.mxu0 0.0
        %343 = vmatprep.subr.mxu0 0.0
        %344 = vmatpush2.msra.mxu0 0.0
        %345 = vmatprep.subr.mxu0 0.0
        %346 = vmatpush2.msra.mxu0 0.0
        %347 = vmatprep.subr.mxu0 0.0
        %348 = vmatpush2.msra.mxu0 0.0
        %349 = vmatprep.mubr.f32.mxu0 0.0
        %350 = vmatmul.mubr.f32.gmra.mxu0 %v268
        %v351 = vpop.f32.mrf.mxu0
        %v352 = vadd.f32 %v239, %v351
        %v353 = vpop.f32.mrf.mxu0
        %354 = vmatprep.mubr.f32.mxu0 0.0
        %355 = vmatmul.mubr.f32.gmra.mxu0 %v271
        %v356 = vpop.f32.mrf.mxu0
        %v357 = vadd.f32 %v244, %v356
        %v358 = vpop.f32.mrf.mxu0
        %359 = vmatprep.mubr.f32.mxu0 0.0
        %360 = vmatmul.mubr.f32.gmra.mxu0 %v274
        %v361 = vpop.f32.mrf.mxu0
        %v362 = vadd.f32 %v249, %v361
        %v363 = vpop.f32.mrf.mxu0
        %364 = vmatprep.mubr.f32.mxu0 0.0
        %365 = vmatmul.mubr.f32.gmra.mxu0 %v277
        %v366 = vpop.f32.mrf.mxu0
        %v367 = vadd.f32 %v254, %v366
        %v368 = vpop.f32.mrf.mxu0
        %369 = vmatprep.mubr.f32.mxu0 0.0
        %370 = vmatmul.mubr.f32.gmra.mxu0 %v280
        %v371 = vpop.f32.mrf.mxu0
        %v372 = vadd.f32 %v259, %v371
        %v373 = vpop.f32.mrf.mxu0
        %374 = vmatprep.mubr.f32.mxu0 0.0
        %375 = vmatmul.mubr.f32.gmra.mxu0 %v283
        %v376 = vpop.f32.mrf.mxu0
        %v377 = vadd.f32 %v264, %v376
        %v378 = vpop.f32.mrf.mxu0
        %379 = vdwg.mxu0
        %380 = vst [vmem:[%s221] sm:$0xff] %v352
        %381 = vst [vmem:[%s221 + $0x8] sm:$0xff] %v357
        %382 = vst [vmem:[%s221 + $0x10] sm:$0xff] %v362
        %383 = vst [vmem:[%s221 + $0x18] sm:$0xff] %v367
        %384 = vst [vmem:[%s221 + $0x20] sm:$0xff] %v372
        %385 = vst [vmem:[%s221 + $0x28] sm:$0xff] %v377
        %s386 = sand.u32 %s106, 1
        %s387 = sand.u32 %s106, 1
        %s388 = smul.addr %s387, 48
        %s389 = scalar_lea.vmem [#allocation3], %s388
        // Predicated region
        $region71: #{attention_forward.4} parent=65 // pred_check
          %p390 = pneg %p116
        $region72: #{attention_forward.4} parent=65 // pred_check_branch
          %392 = sbr.rel (%p390) target = $region74
        $region73: #{attention_forward.4} parent=65 // pred_region
          %s393 = smul.addr %s18, 12
          %s394 = sadd.s32 %s19, %s393
          %s395 = smul.addr %s394, 8
          %s396 = scalar_lea.vmem %s3, %s395
          // Predicated region
          $region75: #{attention_forward.4} parent=73 // pred_check
            _
          $region76: #{attention_forward.4} parent=73 // pred_check_branch
            %398 = sbr.rel (0) target = $region78
          $region77: #{attention_forward.4} parent=73 // pred_region
            // Predicated region
            $region79: #{attention_forward.4} parent=77 // pred_check
              _
            $region80: #{attention_forward.4} parent=77 // pred_check_branch
              %400 = sbr.rel (0) target = $region82
            $region81: #{attention_forward.4} parent=77 // pred_region
              // Predicated region
              $region94: #{attention_forward.4} parent=81 // pred_check
                _
              $region95: #{attention_forward.4} parent=81 // pred_check_branch
                %426 = sbr.rel (0) target = $region97
              $region96: #{attention_forward.4} parent=81 // pred_region
                loop: start=0, step=1, limit=1
                $region98: #{attention_forward.4} parent=96 // loop_pre_header
                  _
                $region99: #{attention_forward.4} parent=96 // loop_header
                  %s428 = sphi 0, %s432
                  %p429 = scmp.ge.s32.totalorder %s428, 1
                  %s433 = sphi %s389, %s389
                  %s434 = sphi %s396, %s396
                $region100: #{attention_forward.4} parent=96 // loop_header_branch
                  %431 = sbr.rel (%p429) target = $region104
                $region101: #{attention_forward.4} parent=96 // loop_body
                  %v435 = vld [vmem:[%s433] sm:$0xff]
                  %436 = vst [vmem:[%s434] sm:$0xff] %v435
                  %v437 = vld [vmem:[%s433 + $0x8] sm:$0xff]
                  %438 = vst [vmem:[%s434 + $0x10] sm:$0xff] %v437
                  %v439 = vld [vmem:[%s433 + $0x10] sm:$0xff]
                  %440 = vst [vmem:[%s434 + $0x20] sm:$0xff] %v439
                  %v441 = vld [vmem:[%s433 + $0x18] sm:$0xff]
                  %442 = vst [vmem:[%s434 + $0x30] sm:$0xff] %v441
                  %v443 = vld [vmem:[%s433 + $0x20] sm:$0xff]
                  %444 = vst [vmem:[%s434 + $0x40] sm:$0xff] %v443
                  %v445 = vld [vmem:[%s433 + $0x28] sm:$0xff]
                  %446 = vst [vmem:[%s434 + $0x50] sm:$0xff] %v445
                $region102: #{attention_forward.4} parent=96 // loop_footer
                  %s432 = sadd.s32 1, %s428
                $region103: #{attention_forward.4} parent=96 // loop_footer_branch
                  %427 = sbr.rel target = $region99
                $region104: #{attention_forward.4} parent=96 // loop_exit
                  _
              $region97: #{attention_forward.4} parent=81 // pred_fallthru
                _
              // Predicated region
              $region105: #{attention_forward.4} parent=81 // pred_check
                _
              $region106: #{attention_forward.4} parent=81 // pred_check_branch
                %448 = sbr.rel target = $region108
              $region107: #{attention_forward.4} parent=81 // pred_region
                _
              $region108: #{attention_forward.4} parent=81 // pred_fallthru
                _
            $region82: #{attention_forward.4} parent=77 // pred_fallthru
              _
            // Predicated region
            $region83: #{attention_forward.4} parent=77 // pred_check
              _
            $region84: #{attention_forward.4} parent=77 // pred_check_branch
              %402 = sbr.rel target = $region86
            $region85: #{attention_forward.4} parent=77 // pred_region
              %s404 = ssub.s32 256, 1
              loop: start=0, step=1, limit=1
              $region87: #{attention_forward.4} parent=85 // loop_pre_header
                _
              $region88: #{attention_forward.4} parent=85 // loop_header
                %s406 = sphi 0, %s410
                %p407 = scmp.ge.s32.totalorder %s406, 1
                %s411 = sphi %s389, %s389
                %s412 = sphi %s396, %s396
              $region89: #{attention_forward.4} parent=85 // loop_header_branch
                %409 = sbr.rel (%p407) target = $region93
              $region90: #{attention_forward.4} parent=85 // loop_body
                %v413 = vld [vmem:[%s411] sm:%s404]
                %414 = vst [vmem:[%s412] sm:%s404] %v413
                %v415 = vld [vmem:[%s411 + $0x8] sm:%s404]
                %416 = vst [vmem:[%s412 + $0x10] sm:%s404] %v415
                %v417 = vld [vmem:[%s411 + $0x10] sm:%s404]
                %418 = vst [vmem:[%s412 + $0x20] sm:%s404] %v417
                %v419 = vld [vmem:[%s411 + $0x18] sm:%s404]
                %420 = vst [vmem:[%s412 + $0x30] sm:%s404] %v419
                %v421 = vld [vmem:[%s411 + $0x20] sm:%s404]
                %422 = vst [vmem:[%s412 + $0x40] sm:%s404] %v421
                %v423 = vld [vmem:[%s411 + $0x28] sm:%s404]
                %424 = vst [vmem:[%s412 + $0x50] sm:%s404] %v423
              $region91: #{attention_forward.4} parent=85 // loop_footer
                %s410 = sadd.s32 1, %s406
              $region92: #{attention_forward.4} parent=85 // loop_footer_branch
                %405 = sbr.rel target = $region88
              $region93: #{attention_forward.4} parent=85 // loop_exit
                _
            $region86: #{attention_forward.4} parent=77 // pred_fallthru
              _
          $region78: #{attention_forward.4} parent=73 // pred_fallthru
            _
          %449 = vnop
        $region74: #{attention_forward.4} parent=65 // pred_fallthru
          _
      $region66: #{attention_forward.4} parent=5 // pred_fallthru
        _
      %p450 = scmp.le.s32.totalorder 2, %s9
      // Predicated region
      $region109: #{attention_forward.4} parent=5 // pred_check
        %p451 = pneg %p450
      $region110: #{attention_forward.4} parent=5 // pred_check_branch
        %453 = sbr.rel (%p451) target = $region112
      $region111: #{attention_forward.4} parent=5 // pred_region
        %s454 = ssub.s32 %s9, 2
        // Predicated region
        $region113: #{attention_forward.4} parent=111 // pred_check
          %p455 = pneg %p122
        $region114: #{attention_forward.4} parent=111 // pred_check_branch
          %457 = sbr.rel (%p455) target = $region116
        $region115: #{attention_forward.4} parent=111 // pred_region
          %s458 = sand.u32 %s107, 1
          %s459 = sand.u32 %s107, 1
          %s460 = smul.addr %s459, 48
          %s461 = scalar_lea.vmem [#allocation3], %s460
        $region116: #{attention_forward.4} parent=111 // pred_fallthru
          _
      $region112: #{attention_forward.4} parent=5 // pred_fallthru
        _
    $region6: #{attention_forward.4} parent=1 // loop_footer
      %s13 = sadd.s32 1, %s9
    $region7: #{attention_forward.4} parent=1 // loop_footer_branch
      %8 = sbr.rel target = $region3
    $region8: #{attention_forward.4} parent=1 // loop_exit
      _

// kernel: attention_forward.6
$region0: #{attention_forward.6}
  #allocation0 [shape = 'u32[]', space=smem, size = 0x4, offset = 0x4, fixed_abs, tag = 'smem constant byte address 0x4 - core index']
  #allocation1 [shape = 'u32[144,128]{1,0:T(1,128)}', space=vmem, size = 0x12000, scoped, tag = 'internal scratch']
  #allocation2 [shape = 'f32[2,8,8]{2,1,0:T(8,128)}', space=vmem, size = 0x2000, scoped, tag = 'scratch operand']
  #allocation3 [shape = 'f32[2,8,1]{2,1,0:T(8,128)}', space=vmem, size = 0x2000, scoped, tag = 'scratch operand']
  #allocation4 [shape = 'f32[2,8]{1,0:T(2,128)}', space=vmem, size = 0x400, scoped, tag = 'scratch operand']
  %s0 = inlined_call_operand.vmem [shape: f32[2,48,256], index: 0, kind: input, shape index: {}, may-alias: {0,1}]
  %s1 = inlined_call_operand.vmem [shape: f32[2,48,256], index: 1, kind: input, shape index: {}, may-alias: {0,1}]
  %s2 = inlined_call_operand.vmem [shape: f32[2,1], index: 2, kind: input, shape index: {}]
  %s3 = inlined_call_operand.vmem [shape: f32[2,2,8,8], index: 3, kind: output, shape index: {}]
  %s4 = sld [smem:[#allocation0]]
  $region129: #{attention_forward.6} parent=0
    _
  %s6 = ssub.s32 1, %s4
  %s7 = scalar_select 0, %s6, %s4
  $region1: #{attention_forward.6} parent=0
    #allocation5 [shape = 'u8[16384]{0}', space=vmem, size = 0x4000, scoped, tag = 'input window, operand 0']
    #allocation6 [shape = 'u8[16384]{0}', space=vmem, size = 0x4000, scoped, tag = 'input window, operand 1']
    loop: start=0, step=1, limit=6
    $region2: #{attention_forward.6} parent=1 // loop_pre_header
      _
    $region3: #{attention_forward.6} parent=1 // loop_header
      %s9 = sphi 0, %s13
      %p10 = scmp.ge.s32.totalorder %s9, 6
      %s16 = sphi 0, %s28
      %s17 = sphi 0, %s24
      %s18 = sphi 0, %s16
      %s19 = sphi 0, %s17
      %s20 = sphi 0, %s18
      %s21 = sphi 0, %s19
      %s33 = sphi 0, %s35
      %s36 = sphi 0, %s33
      %s37 = sphi 0, %s36
      %s53 = sphi 0, %s37
      %s61 = sphi 0, %s63
      %s64 = sphi 0, %s61
      %s65 = sphi 0, %s64
      %s81 = sphi 0, %s65
      %s85 = sphi 0, %s85
      %s87 = sphi 0, %s85
      %s88 = sphi 0, %s87
      %s102 = sphi 0, %s88
      %s108 = sphi 0, %s110
      %s111 = sphi 0, %s108
      %s112 = sphi 0, %s111
      %s128 = sphi 0, %s112
    $region4: #{attention_forward.6} parent=1 // loop_header_branch
      %12 = sbr.rel (%p10) target = $region8
    $region5: #{attention_forward.6} parent=1 // loop_body
      %s14 = ssub.s32 %s9, 1
      %s15 = ssub.s32 %s9, 2
      %s22 = sadd.s32 1, %s17
      %p23 = scmp.ge.s32.totalorder %s22, 2
      %s24 = scalar_select %p23, 0, %s22
      %s25 = sadd.s32 1, %s16
      %s26 = scalar_select %p23, %s25, %s16
      %p27 = scmp.ge.s32.totalorder %s26, 2
      %s28 = scalar_select %p27, 0, %s26
      %s29 = ssub.s32 %s16, %s28
      %s30 = ssub.s32 %s17, %s24
      %s31 = sor.u32 %s29, %s30
      %p32 = scmp.eq.s32.totalorder %s31, 0
      %s34 = sadd.s32 %s33, 1
      %s35 = scalar_select %p32, %s33, %s34
      %p38 = pneg %p32
      %p39 = scmp.eq.s32.totalorder %s9, 3
      %p40 = por %p38, %p39
      %p41 = scmp.ne.s32.totalorder %s33, %s36
      %p42 = scmp.eq.s32.totalorder %s9, 0
      %p43 = por %p41, %p42
      %p44 = scmp.ne.s32.totalorder %s33, %s36
      %p45 = scmp.eq.s32.totalorder %s14, 3
      %p46 = por %p44, %p45
      %p47 = scmp.ne.s32.totalorder %s36, %s37
      %p48 = scmp.eq.s32.totalorder %s14, 0
      %p49 = por %p47, %p48
      %p50 = scmp.ne.s32.totalorder %s36, %s37
      %p51 = scmp.eq.s32.totalorder %s15, 3
      %p52 = por %p50, %p51
      %p54 = scmp.ne.s32.totalorder %s37, %s53
      %p55 = scmp.eq.s32.totalorder %s15, 0
      %p56 = por %p54, %p55
      %s57 = ssub.s32 %s16, %s28
      %s58 = ssub.s32 %s17, %s24
      %s59 = sor.u32 %s57, %s58
      %p60 = scmp.eq.s32.totalorder %s59, 0
      %s62 = sadd.s32 %s61, 1
      %s63 = scalar_select %p60, %s61, %s62
      %p66 = pneg %p60
      %p67 = scmp.eq.s32.totalorder %s9, 3
      %p68 = por %p66, %p67
      %p69 = scmp.ne.s32.totalorder %s61, %s64
      %p70 = scmp.eq.s32.totalorder %s9, 0
      %p71 = por %p69, %p70
      %p72 = scmp.ne.s32.totalorder %s61, %s64
      %p73 = scmp.eq.s32.totalorder %s14, 3
      %p74 = por %p72, %p73
      %p75 = scmp.ne.s32.totalorder %s64, %s65
      %p76 = scmp.eq.s32.totalorder %s14, 0
      %p77 = por %p75, %p76
      %p78 = scmp.ne.s32.totalorder %s64, %s65
      %p79 = scmp.eq.s32.totalorder %s15, 3
      %p80 = por %p78, %p79
      %p82 = scmp.ne.s32.totalorder %s65, %s81
      %p83 = scmp.eq.s32.totalorder %s15, 0
      %p84 = por %p82, %p83
      %s86 = sadd.s32 %s85, 1
      %p89 = scmp.eq.s32.totalorder %s9, 3
      %p90 = scmp.ne.s32.totalorder %s85, %s87
      %p91 = scmp.eq.s32.totalorder %s9, 0
      %p92 = por %p90, %p91
      %p93 = scmp.ne.s32.totalorder %s85, %s87
      %p94 = scmp.eq.s32.totalorder %s14, 3
      %p95 = por %p93, %p94
      %p96 = scmp.ne.s32.totalorder %s87, %s88
      %p97 = scmp.eq.s32.totalorder %s14, 0
      %p98 = por %p96, %p97
      %p99 = scmp.ne.s32.totalorder %s87, %s88
      %p100 = scmp.eq.s32.totalorder %s15, 3
      %p101 = por %p99, %p100
      %p103 = scmp.ne.s32.totalorder %s88, %s102
      %p104 = scmp.eq.s32.totalorder %s15, 0
      %p105 = por %p103, %p104
      %s106 = ssub.s32 %s16, %s28
      %p107 = scmp.eq.s32.totalorder %s106, 0
      %s109 = sadd.s32 %s108, 1
      %s110 = scalar_select %p107, %s108, %s109
      %p113 = pneg %p107
      %p114 = scmp.eq.s32.totalorder %s9, 3
      %p115 = por %p113, %p114
      %p116 = scmp.ne.s32.totalorder %s108, %s111
      %p117 = scmp.eq.s32.totalorder %s9, 0
      %p118 = por %p116, %p117
      %p119 = scmp.ne.s32.totalorder %s108, %s111
      %p120 = scmp.eq.s32.totalorder %s14, 3
      %p121 = por %p119, %p120
      %p122 = scmp.ne.s32.totalorder %s111, %s112
      %p123 = scmp.eq.s32.totalorder %s14, 0
      %p124 = por %p122, %p123
      %p125 = scmp.ne.s32.totalorder %s111, %s112
      %p126 = scmp.eq.s32.totalorder %s15, 3
      %p127 = por %p125, %p126
      %p129 = scmp.ne.s32.totalorder %s112, %s128
      %p130 = scmp.eq.s32.totalorder %s15, 0
      %p131 = por %p129, %p130
      %p132 = scmp.le.s32.totalorder 1, %s9
      %p133 = scmp.lt.s32.totalorder %s9, 5
      %p134 = pnand %p132, %p133
      %p135 = pneg %p134
      // Predicated region
      $region9: #{attention_forward.6} parent=5 // pred_check
        _
      $region10: #{attention_forward.6} parent=5 // pred_check_branch
        %137 = sbr.rel (%p134) target = $region12
      $region11: #{attention_forward.6} parent=5 // pred_region
        %s138 = ssub.s32 %s9, 1
        // Predicated region
        $region13: #{attention_forward.6} parent=11 // pred_check
          %p139 = pneg %p98
        $region14: #{attention_forward.6} parent=11 // pred_check_branch
          %141 = sbr.rel (%p139) target = $region16
        $region15: #{attention_forward.6} parent=11 // pred_region
          _
        $region16: #{attention_forward.6} parent=11 // pred_fallthru
          _
      $region12: #{attention_forward.6} parent=5 // pred_fallthru
        _
      %p142 = scmp.lt.s32.totalorder %s9, 4
      // Predicated region
      $region17: #{attention_forward.6} parent=5 // pred_check
        %p143 = pneg %p142
      $region18: #{attention_forward.6} parent=5 // pred_check_branch
        %145 = sbr.rel (%p143) target = $region20
      $region19: #{attention_forward.6} parent=5 // pred_region
        // Predicated region
        $region21: #{attention_forward.6} parent=19 // pred_check
          %p146 = pneg %p43
        $region22: #{attention_forward.6} parent=19 // pred_check_branch
          %148 = sbr.rel (%p146) target = $region24
        $region23: #{attention_forward.6} parent=19 // pred_region
          %s149 = sand.u32 %s33, 1
          %s150 = sand.u32 %s33, 1
          %s151 = smul.addr %s150, 16
          %s152 = scalar_lea.vmem [#allocation5], %s151
          %s153 = smul.addr %s16, 12
          %s154 = sadd.s32 %s17, %s153
          %s155 = smul.addr %s154, 8
          %s156 = scalar_lea.vmem %s0, %s155
          // Predicated region
          $region25: #{attention_forward.6} parent=23 // pred_check
            _
          $region26: #{attention_forward.6} parent=23 // pred_check_branch
            %158 = sbr.rel (0) target = $region28
          $region27: #{attention_forward.6} parent=23 // pred_region
            // Predicated region
            $region29: #{attention_forward.6} parent=27 // pred_check
              _
            $region30: #{attention_forward.6} parent=27 // pred_check_branch
              %160 = sbr.rel (0) target = $region32
            $region31: #{attention_forward.6} parent=27 // pred_region
              // Predicated region
              $region44: #{attention_forward.6} parent=31 // pred_check
                _
              $region45: #{attention_forward.6} parent=31 // pred_check_branch
                %178 = sbr.rel (0) target = $region47
              $region46: #{attention_forward.6} parent=31 // pred_region
                loop: start=0, step=1, limit=1
                $region48: #{attention_forward.6} parent=46 // loop_pre_header
                  _
                $region49: #{attention_forward.6} parent=46 // loop_header
                  %s180 = sphi 0, %s184
                  %p181 = scmp.ge.s32.totalorder %s180, 1
                  %s185 = sphi %s156, %s156
                  %s186 = sphi %s152, %s152
                $region50: #{attention_forward.6} parent=46 // loop_header_branch
                  %183 = sbr.rel (%p181) target = $region54
                $region51: #{attention_forward.6} parent=46 // loop_body
                  %v187 = vld [vmem:[%s185] sm:$0xff]
                  %188 = vst [vmem:[%s186] sm:$0xff] %v187
                  %v189 = vld [vmem:[%s185 + $0x10] sm:$0xff]
                  %190 = vst [vmem:[%s186 + $0x8] sm:$0xff] %v189
                $region52: #{attention_forward.6} parent=46 // loop_footer
                  %s184 = sadd.s32 1, %s180
                $region53: #{attention_forward.6} parent=46 // loop_footer_branch
                  %179 = sbr.rel target = $region49
                $region54: #{attention_forward.6} parent=46 // loop_exit
                  _
              $region47: #{attention_forward.6} parent=31 // pred_fallthru
                _
              // Predicated region
              $region55: #{attention_forward.6} parent=31 // pred_check
                _
              $region56: #{attention_forward.6} parent=31 // pred_check_branch
                %192 = sbr.rel target = $region58
              $region57: #{attention_forward.6} parent=31 // pred_region
                _
              $region58: #{attention_forward.6} parent=31 // pred_fallthru
                _
            $region32: #{attention_forward.6} parent=27 // pred_fallthru
              _
            // Predicated region
            $region33: #{attention_forward.6} parent=27 // pred_check
              _
            $region34: #{attention_forward.6} parent=27 // pred_check_branch
              %162 = sbr.rel target = $region36
            $region35: #{attention_forward.6} parent=27 // pred_region
              %s164 = ssub.s32 256, 1
              loop: start=0, step=1, limit=1
              $region37: #{attention_forward.6} parent=35 // loop_pre_header
                _
              $region38: #{attention_forward.6} parent=35 // loop_header
                %s166 = sphi 0, %s170
                %p167 = scmp.ge.s32.totalorder %s166, 1
                %s171 = sphi %s156, %s156
                %s172 = sphi %s152, %s152
              $region39: #{attention_forward.6} parent=35 // loop_header_branch
                %169 = sbr.rel (%p167) target = $region43
              $region40: #{attention_forward.6} parent=35 // loop_body
                %v173 = vld [vmem:[%s171] sm:%s164]
                %174 = vst [vmem:[%s172] sm:%s164] %v173
                %v175 = vld [vmem:[%s171 + $0x10] sm:%s164]
                %176 = vst [vmem:[%s172 + $0x8] sm:%s164] %v175
              $region41: #{attention_forward.6} parent=35 // loop_footer
                %s170 = sadd.s32 1, %s166
              $region42: #{attention_forward.6} parent=35 // loop_footer_branch
                %165 = sbr.rel target = $region38
              $region43: #{attention_forward.6} parent=35 // loop_exit
                _
            $region36: #{attention_forward.6} parent=27 // pred_fallthru
              _
          $region28: #{attention_forward.6} parent=23 // pred_fallthru
            _
          %193 = vnop
        $region24: #{attention_forward.6} parent=19 // pred_fallthru
          _
        // Predicated region
        $region59: #{attention_forward.6} parent=19 // pred_check
          %p194 = pneg %p71
        $region60: #{attention_forward.6} parent=19 // pred_check_branch
          %196 = sbr.rel (%p194) target = $region62
        $region61: #{attention_forward.6} parent=19 // pred_region
          %s197 = sand.u32 %s61, 1
          %s198 = sand.u32 %s61, 1
          %s199 = smul.addr %s198, 16
          %s200 = scalar_lea.vmem [#allocation6], %s199
          %s201 = sadd.s32 %s17, 4
          %s202 = smul.addr %s16, 12
          %s203 = sadd.s32 %s201, %s202
          %s204 = smul.addr %s203, 8
          %s205 = scalar_lea.vmem %s1, %s204
          // Predicated region
          $region63: #{attention_forward.6} parent=61 // pred_check
            _
          $region64: #{attention_forward.6} parent=61 // pred_check_branch
            %207 = sbr.rel (0) target = $region66
          $region65: #{attention_forward.6} parent=61 // pred_region
            // Predicated region
            $region67: #{attention_forward.6} parent=65 // pred_check
              _
            $region68: #{attention_forward.6} parent=65 // pred_check_branch
              %209 = sbr.rel (0) target = $region70
            $region69: #{attention_forward.6} parent=65 // pred_region
              // Predicated region
              $region82: #{attention_forward.6} parent=69 // pred_check
                _
              $region83: #{attention_forward.6} parent=69 // pred_check_branch
                %227 = sbr.rel (0) target = $region85
              $region84: #{attention_forward.6} parent=69 // pred_region
                loop: start=0, step=1, limit=1
                $region86: #{attention_forward.6} parent=84 // loop_pre_header
                  _
                $region87: #{attention_forward.6} parent=84 // loop_header
                  %s229 = sphi 0, %s233
                  %p230 = scmp.ge.s32.totalorder %s229, 1
                  %s234 = sphi %s205, %s205
                  %s235 = sphi %s200, %s200
                $region88: #{attention_forward.6} parent=84 // loop_header_branch
                  %232 = sbr.rel (%p230) target = $region92
                $region89: #{attention_forward.6} parent=84 // loop_body
                  %v236 = vld [vmem:[%s234] sm:$0xff]
                  %237 = vst [vmem:[%s235] sm:$0xff] %v236
                  %v238 = vld [vmem:[%s234 + $0x10] sm:$0xff]
                  %239 = vst [vmem:[%s235 + $0x8] sm:$0xff] %v238
                $region90: #{attention_forward.6} parent=84 // loop_footer
                  %s233 = sadd.s32 1, %s229
                $region91: #{attention_forward.6} parent=84 // loop_footer_branch
                  %228 = sbr.rel target = $region87
                $region92: #{attention_forward.6} parent=84 // loop_exit
                  _
              $region85: #{attention_forward.6} parent=69 // pred_fallthru
                _
              // Predicated region
              $region93: #{attention_forward.6} parent=69 // pred_check
                _
              $region94: #{attention_forward.6} parent=69 // pred_check_branch
                %241 = sbr.rel target = $region96
              $region95: #{attention_forward.6} parent=69 // pred_region
                _
              $region96: #{attention_forward.6} parent=69 // pred_fallthru
                _
            $region70: #{attention_forward.6} parent=65 // pred_fallthru
              _
            // Predicated region
            $region71: #{attention_forward.6} parent=65 // pred_check
              _
            $region72: #{attention_forward.6} parent=65 // pred_check_branch
              %211 = sbr.rel target = $region74
            $region73: #{attention_forward.6} parent=65 // pred_region
              %s213 = ssub.s32 256, 1
              loop: start=0, step=1, limit=1
              $region75: #{attention_forward.6} parent=73 // loop_pre_header
                _
              $region76: #{attention_forward.6} parent=73 // loop_header
                %s215 = sphi 0, %s219
                %p216 = scmp.ge.s32.totalorder %s215, 1
                %s220 = sphi %s205, %s205
                %s221 = sphi %s200, %s200
              $region77: #{attention_forward.6} parent=73 // loop_header_branch
                %218 = sbr.rel (%p216) target = $region81
              $region78: #{attention_forward.6} parent=73 // loop_body
                %v222 = vld [vmem:[%s220] sm:%s213]
                %223 = vst [vmem:[%s221] sm:%s213] %v222
                %v224 = vld [vmem:[%s220 + $0x10] sm:%s213]
                %225 = vst [vmem:[%s221 + $0x8] sm:%s213] %v224
              $region79: #{attention_forward.6} parent=73 // loop_footer
                %s219 = sadd.s32 1, %s215
              $region80: #{attention_forward.6} parent=73 // loop_footer_branch
                %214 = sbr.rel target = $region76
              $region81: #{attention_forward.6} parent=73 // loop_exit
                _
            $region74: #{attention_forward.6} parent=65 // pred_fallthru
              _
          $region66: #{attention_forward.6} parent=61 // pred_fallthru
            _
          %242 = vnop
        $region62: #{attention_forward.6} parent=19 // pred_fallthru
          _
      $region20: #{attention_forward.6} parent=5 // pred_fallthru
        _
      %p243 = scmp.le.s32.totalorder 1, %s9
      %p244 = scmp.lt.s32.totalorder %s9, 5
      %p245 = pnand %p243, %p244
      %p246 = pneg %p245
      // Predicated region
      $region97: #{attention_forward.6} parent=5 // pred_check
        _
      $region98: #{attention_forward.6} parent=5 // pred_check_branch
        %248 = sbr.rel (%p245) target = $region100
      $region99: #{attention_forward.6} parent=5 // pred_region
        %s249 = ssub.s32 %s9, 1
        %s250 = sand.u32 %s36, 1
        %s251 = sand.u32 %s36, 1
        %s252 = smul.addr %s251, 16
        %s253 = scalar_lea.vmem [#allocation5], %s252
        // Predicated region
        $region101: #{attention_forward.6} parent=99 // pred_check
          %p254 = pneg %p49
        $region102: #{attention_forward.6} parent=99 // pred_check_branch
          %256 = sbr.rel (%p254) target = $region104
        $region103: #{attention_forward.6} parent=99 // pred_region
          _
        $region104: #{attention_forward.6} parent=99 // pred_fallthru
          _
        %s257 = sand.u32 %s64, 1
        %s258 = sand.u32 %s64, 1
        %s259 = smul.addr %s258, 16
        %s260 = scalar_lea.vmem [#allocation6], %s259
        // Predicated region
        $region105: #{attention_forward.6} parent=99 // pred_check
          %p261 = pneg %p77
        $region106: #{attention_forward.6} parent=99 // pred_check_branch
          %263 = sbr.rel (%p261) target = $region108
        $region107: #{attention_forward.6} parent=99 // pred_region
          _
        $region108: #{attention_forward.6} parent=99 // pred_fallthru
          _
        %s264 = sand.u32 %s36, 1
        %s265 = sand.u32 %s36, 1
        %s266 = smul.addr %s265, 16
        %s267 = scalar_lea.vmem [#allocation5], %s266
        %p268 = pneg %p49
        %p269 = pneg %p46
        %s270 = sand.u32 %s64, 1
        %s271 = sand.u32 %s64, 1
        %s272 = smul.addr %s271, 16
        %s273 = scalar_lea.vmem [#allocation6], %s272
        %p274 = pneg %p77
        %p275 = pneg %p74
        %p276 = pneg %p98
        %p277 = pneg %p95
        %p278 = pneg %p124
        %p279 = pneg %p121
        %p280 = scmp.lt.s32.totalorder %s18, 1
        %s281 = scalar_select %p280, %s18, 1
        %s282 = smul.addr %s281, 2
        %s283 = smul.addr %s282, 8
        %s284 = scalar_lea.vmem %s3, %s283
        %p285 = scmp.lt.s32.totalorder %s18, 1
        %s286 = scalar_select %p285, %s18, 1
        %s287 = smul.addr %s286, 2
        %s288 = smul.addr %s287, 8
        %s289 = scalar_lea.vmem %s3, %s288
        %p290 = scmp.eq.s32.totalorder %s19, 0
        // Predicated region
        $region109: #{attention_forward.6} parent=99 // pred_check
          %p291 = pneg %p290
        $region110: #{attention_forward.6} parent=99 // pred_check_branch
          %293 = sbr.rel (%p291) target = $region112
        $region111: #{attention_forward.6} parent=99 // pred_region
          %vm294 = vcmask 64512
          %295 = vst.msk [vmem:[#allocation2] sm:$0xff] %vm294, 0.0
          %296 = vst.msk [vmem:[#allocation2 + $0x8] sm:$0xff] %vm294, 0.0
          %vm297 = vcmask 7168
          %298 = vst.msk [vmem:[#allocation3] sm:$0xff] %vm297, 0.0
          %299 = vst.msk [vmem:[#allocation3 + $0x8] sm:$0xff] %vm297, 0.0
          %vm300 = vcmask 58368
          %301 = vst.msk [vmem:[#allocation4] sm:$0x3] %vm300, 0.0
        $region112: #{attention_forward.6} parent=99 // pred_fallthru
          _
        %v302 = vld [vmem:[%s253] sm:$0xff]
        %v303 = vld [vmem:[%s253 + $0x8] sm:$0xff]
        %v304 = vld [vmem:[%s260] sm:$0xff]
        %v305 = vld [vmem:[%s260 + $0x8] sm:$0xff]
        %v306 = vld [vmem:[#allocation2] sm:$0xff]
        %v307 = vld [vmem:[#allocation2 + $0x8] sm:$0xff]
        %308 = vmatprep.subr.mxu0 0.0
        %309 = vmatpush1.xpose.msra.mxu0 0.0
        %310 = vmatprep.subr.mxu0 0.0
        %311 = vmatpush1.xpose.msra.mxu0 0.0
        %312 = vmatprep.subr.mxu0 0.0
        %313 = vmatpush1.xpose.msra.mxu0 0.0
        %314 = vmatprep.subr.mxu0 0.0
        %315 = vmatpush1.xpose.msra.mxu0 0.0
        %316 = vmatprep.subr.mxu0 0.0
        %317 = vmatpush1.xpose.msra.mxu0 0.0
        %318 = vmatprep.subr.mxu0 0.0
        %319 = vmatpush1.xpose.msra.mxu0 0.0
        %320 = vmatprep.subr.mxu0 0.0
        %321 = vmatpush1.xpose.msra.mxu0 0.0
        %322 = vmatprep.subr.mxu0 0.0
        %323 = vmatpush1.xpose.msra.mxu0 0.0
        %324 = vmatprep.subr.mxu0 0.0
        %325 = vmatpush1.xpose.msra.mxu0 0.0
        %326 = vmatprep.subr.mxu0 0.0
        %327 = vmatpush1.xpose.msra.mxu0 0.0
        %328 = vmatprep.subr.mxu0 0.0
        %329 = vmatpush1.xpose.msra.mxu0 0.0
        %330 = vmatprep.subr.mxu0 0.0
        %331 = vmatpush1.xpose.msra.mxu0 0.0
        %332 = vmatprep.subr.mxu0 0.0
        %333 = vmatpush1.xpose.msra.mxu0 0.0
        %334 = vmatprep.subr.mxu0 0.0
        %335 = vmatpush1.xpose.msra.mxu0 0.0
        %336 = vmatprep.subr.mxu0 0.0
        %337 = vmatpush1.xpose.msra.mxu0 0.0
        %338 = vmatprep.subr.mxu0 0.0
        %339 = vmatpush1.xpose.msra.mxu0 %v304
        %340 = vmatprep.subr.mxu0 0.0
        %341 = vmatpush2.xpose.msra.mxu0 0.0
        %342 = vmatprep.subr.mxu0 0.0
        %343 = vmatpush2.xpose.msra.mxu0 0.0
        %344 = vmatprep.subr.mxu0 0.0
        %345 = vmatpush2.xpose.msra.mxu0 0.0
        %346 = vmatprep.subr.mxu0 0.0
        %347 = vmatpush2.xpose.msra.mxu0 0.0
        %348 = vmatprep.subr.mxu0 0.0
        %349 = vmatpush2.xpose.msra.mxu0 0.0
        %350 = vmatprep.subr.mxu0 0.0
        %351 = vmatpush2.xpose.msra.mxu0 0.0
        %352 = vmatprep.subr.mxu0 0.0
        %353 = vmatpush2.xpose.msra.mxu0 0.0
        %354 = vmatprep.subr.mxu0 0.0
        %355 = vmatpush2.xpose.msra.mxu0 0.0
        %356 = vmatprep.subr.mxu0 0.0
        %357 = vmatpush2.xpose.msra.mxu0 0.0
        %358 = vmatprep.subr.mxu0 0.0
        %359 = vmatpush2.xpose.msra.mxu0 0.0
        %360 = vmatprep.subr.mxu0 0.0
        %361 = vmatpush2.xpose.msra.mxu0 0.0
        %362 = vmatprep.subr.mxu0 0.0
        %363 = vmatpush2.xpose.msra.mxu0 0.0
        %364 = vmatprep.subr.mxu0 0.0
        %365 = vmatpush2.xpose.msra.mxu0 0.0
        %366 = vmatprep.subr.mxu0 0.0
        %367 = vmatpush2.xpose.msra.mxu0 0.0
        %368 = vmatprep.subr.mxu0 0.0
        %369 = vmatpush2.xpose.msra.mxu0 0.0
        %370 = vmatprep.subr.mxu0 0.0
        %371 = vmatpush2.xpose.msra.mxu0 0.0
        %372 = vmatprep.mubr.f32.mxu0 0.0
        %373 = vmatmul.mubr.f32.gmra.mxu0 %v302
        %v374 = vpop.f32.mrf.mxu0
        %v375 = vadd.f32 0.0, %v374
        %v376 = vpop.f32.mrf.mxu0
        %377 = vdwg.mxu0
        %378 = vmatprep.subr.mxu0 0.0
        %379 = vmatpush1.xpose.msra.mxu0 0.0
        %380 = vmatprep.subr.mxu0 0.0
        %381 = vmatpush1.xpose.msra.mxu0 0.0
        %382 = vmatprep.subr.mxu0 0.0
        %383 = vmatpush1.xpose.msra.mxu0 0.0
        %384 = vmatprep.subr.mxu0 0.0
        %385 = vmatpush1.xpose.msra.mxu0 0.0
        %386 = vmatprep.subr.mxu0 0.0
        %387 = vmatpush1.xpose.msra.mxu0 0.0
        %388 = vmatprep.subr.mxu0 0.0
        %389 = vmatpush1.xpose.msra.mxu0 0.0
        %390 = vmatprep.subr.mxu0 0.0
        %391 = vmatpush1.xpose.msra.mxu0 0.0
        %392 = vmatprep.subr.mxu0 0.0
        %393 = vmatpush1.xpose.msra.mxu0 0.0
        %394 = vmatprep.subr.mxu0 0.0
        %395 = vmatpush1.xpose.msra.mxu0 0.0
        %396 = vmatprep.subr.mxu0 0.0
        %397 = vmatpush1.xpose.msra.mxu0 0.0
        %398 = vmatprep.subr.mxu0 0.0
        %399 = vmatpush1.xpose.msra.mxu0 0.0
        %400 = vmatprep.subr.mxu0 0.0
        %401 = vmatpush1.xpose.msra.mxu0 0.0
        %402 = vmatprep.subr.mxu0 0.0
        %403 = vmatpush1.xpose.msra.mxu0 0.0
        %404 = vmatprep.subr.mxu0 0.0
        %405 = vmatpush1.xpose.msra.mxu0 0.0
        %406 = vmatprep.subr.mxu0 0.0
        %407 = vmatpush1.xpose.msra.mxu0 0.0
        %408 = vmatprep.subr.mxu0 0.0
        %409 = vmatpush1.xpose.msra.mxu0 %v305
        %410 = vmatprep.subr.mxu0 0.0
        %411 = vmatpush2.xpose.msra.mxu0 0.0
        %412 = vmatprep.subr.mxu0 0.0
        %413 = vmatpush2.xpose.msra.mxu0 0.0
        %414 = vmatprep.subr.mxu0 0.0
        %415 = vmatpush2.xpose.msra.mxu0 0.0
        %416 = vmatprep.subr.mxu0 0.0
        %417 = vmatpush2.xpose.msra.mxu0 0.0
        %418 = vmatprep.subr.mxu0 0.0
        %419 = vmatpush2.xpose.msra.mxu0 0.0
        %420 = vmatprep.subr.mxu0 0.0
        %421 = vmatpush2.xpose.msra.mxu0 0.0
        %422 = vmatprep.subr.mxu0 0.0
        %423 = vmatpush2.xpose.msra.mxu0 0.0
        %424 = vmatprep.subr.mxu0 0.0
        %425 = vmatpush2.xpose.msra.mxu0 0.0
        %426 = vmatprep.subr.mxu0 0.0
        %427 = vmatpush2.xpose.msra.mxu0 0.0
        %428 = vmatprep.subr.mxu0 0.0
        %429 = vmatpush2.xpose.msra.mxu0 0.0
        %430 = vmatprep.subr.mxu0 0.0
        %431 = vmatpush2.xpose.msra.mxu0 0.0
        %432 = vmatprep.subr.mxu0 0.0
        %433 = vmatpush2.xpose.msra.mxu0 0.0
        %434 = vmatprep.subr.mxu0 0.0
        %435 = vmatpush2.xpose.msra.mxu0 0.0
        %436 = vmatprep.subr.mxu0 0.0
        %437 = vmatpush2.xpose.msra.mxu0 0.0
        %438 = vmatprep.subr.mxu0 0.0
        %439 = vmatpush2.xpose.msra.mxu0 0.0
        %440 = vmatprep.subr.mxu0 0.0
        %441 = vmatpush2.xpose.msra.mxu0 0.0
        %442 = vmatprep.mubr.f32.mxu0 0.0
        %443 = vmatmul.mubr.f32.gmra.mxu0 %v303
        %v444 = vpop.f32.mrf.mxu0
        %v445 = vadd.f32 0.0, %v444
        %v446 = vpop.f32.mrf.mxu0
        %447 = vdwg.mxu0
        %v448 = vadd.f32 %v306, %v375
        %v449 = vadd.f32 %v307, %v445
        %vm450 = vcmask 64512
        %451 = vst.msk [vmem:[#allocation2] sm:$0xff] %vm450, %v448
        %452 = vst.msk [vmem:[#allocation2 + $0x8] sm:$0xff] %vm450, %v449
        %v453 = vld [vmem:[#allocation3] sm:$0xff]
        %v454 = vld [vmem:[#allocation3 + $0x8] sm:$0xff]
        %v455 = vmul.f32 %v302, %v302
        %v456 = vmul.f32 %v303, %v303
        %457 = vadd.xlane.f32.xlu0 %v455
        %v458 = vpop.xlane.xlu0 %457
        %459 = vadd.xlane.f32.xlu0 %v456
        %v460 = vpop.xlane.xlu0 %459
        %v461 = vadd.f32 %v453, %v458
        %v462 = vadd.f32 %v454, %v460
        %vm463 = vcmask 7168
        %464 = vst.msk [vmem:[#allocation3] sm:$0xff] %vm463, %v461
        %465 = vst.msk [vmem:[#allocation3 + $0x8] sm:$0xff] %vm463, %v462
        %v466 = vld [vmem:[#allocation4] sm:$0x3]
        %v467 = vmul.f32 %v304, %v304
        %v468 = vmul.f32 %v305, %v305
        %469 = vadd.xlane.f32.xlu0 %v467
        %v470 = vpop.xlane.xlu0 %469
        %471 = vadd.xlane.f32.xlu0 %v468
        %v472 = vpop.xlane.xlu0 %471
        %v475 = vlaneseq
        %v476 = vand.u32 %v475, 127
        %v477 = vlaneseq
        %v478 = vshrl.u32 %v477, 7
        %v479 = vsub.s32 %v476, %v478
        %v480 = vrot.slane %v470, %v479
        %v481 = vlaneseq
        %v482 = vshrl.u32 %v481, 7
        %v483 = vsub.s32 %v476, %v482
        %v484 = vrot.slane %v472, %v483
        %vm485 = vcmask 1041409
        %v486 = vsel %vm485, %v484, %v480
        %v488 = vadd.f32 %v466, %v486
        %vm489 = vcmask 58368
        %490 = vst.msk [vmem:[#allocation4] sm:$0x3] %vm489, %v488
        %p491 = scmp.eq.s32.totalorder %s19, 1
        // Predicated region
        $region113: #{attention_forward.6} parent=99 // pred_check
          %p492 = pneg %p491
        $region114: #{attention_forward.6} parent=99 // pred_check_branch
          %494 = sbr.rel (%p492) target = $region116
        $region115: #{attention_forward.6} parent=99 // pred_region
          %v495 = vld [vmem:[%s2] sm:$0x3]
          %v498 = vunpack.c.l.s4 1966171168
          %v499 = vunpack.c.0.s8 %v498
          %v500 = vlaneseq
          %v501 = vshrl.u32 %v500, 7
          %v502 = vsub.s32 %v499, %v501
          %v503 = vrot.slane %v495, %v502
          %v504 = vcombine.high %v503, %v503
          %v506 = vunpack.c.l.s4 1966171168
          %v507 = vunpack.c.0.s8 %v506
          %v508 = vlaneseq
          %v509 = vshrl.u32 %v508, 7
          %v510 = vsub.s32 %v507, %v509
          %v511 = vrot.slane %v503, %v510
          %v513 = vunpack.c.l.s4 1966171168
          %v514 = vunpack.c.0.s8 %v513
          %v515 = vlaneseq
          %v516 = vshrl.u32 %v515, 7
          %v517 = vsub.s32 %v514, %v516
          %v518 = vrot.slane %v504, %v517
          %v519 = vld [vmem:[#allocation3] sm:$0xff]
          %v520 = vld [vmem:[#allocation3 + $0x8] sm:$0xff]
          %v521 = vrsqrt.pop %v519
          %v522 = vmul.f32 %v519, %v521
          %vm523 = vcmp.eq.f32.partialorder %v519, inf
          %v524 = vsel %vm523, %v519, %v522
          %vm525 = vcmp.eq.f32.partialorder %v519, 0.0
          %v526 = vand.u32 %v519, 2147483648
          %v527 = vsel %vm525, %v526, %v524
          %v528 = vrsqrt.pop %v520
          %v529 = vmul.f32 %v520, %v528
          %vm530 = vcmp.eq.f32.partialorder %v520, inf
          %v531 = vsel %vm530, %v520, %v529
          %vm532 = vcmp.eq.f32.partialorder %v520, 0.0
          %v533 = vand.u32 %v520, 2147483648
          %v534 = vsel %vm532, %v533, %v531
          %v535 = vmax.f32 %v527, 1e-12
          %v536 = vmax.f32 %v534, 1e-12
          %v537 = vlaneseq
          %v538 = vshrl.u32 %v537, 7
          %v539 = vsub.s32 0, %v538
          %v540 = vrot.slane %v511, %v539
          %v541 = vlaneseq
          %v542 = vshrl.u32 %v541, 7
          %v543 = vsub.s32 0, %v542
          %v544 = vrot.slane %v518, %v543
          %v547 = vrcp.pop %v535
          %v548 = vmul.f32 %v540, %v547
          %v549 = vrcp.pop %v536
          %v550 = vmul.f32 %v544, %v549
          %v551 = vld [vmem:[#allocation4] sm:$0x3]
          %v552 = vrsqrt.pop %v551
          %v553 = vmul.f32 %v551, %v552
          %vm554 = vcmp.eq.f32.partialorder %v551, inf
          %v555 = vsel %vm554, %v551, %v553
          %vm556 = vcmp.eq.f32.partialorder %v551, 0.0
          %v557 = vand.u32 %v551, 2147483648
          %v558 = vsel %vm556, %v557, %v555
          %v559 = vmax.f32 %v558, 1e-12
          %v560 = vrcp.pop %v559
          %v561 = vmul.f32 1.0, %v560
          %v562 = vld [vmem:[#allocation2] sm:$0xff]
          %v563 = vld [vmem:[#allocation2 + $0x8] sm:$0xff]
          %565 = vset.pattern.permute.xlu0 0
          %566 = vperm.xlu0 %565, %v548
          %v567 = vpop.permute.xlu0 %566
          %570 = vset.pattern.permute.xlu0 0
          %571 = vperm.xlu0 %570, %v550
          %v572 = vpop.permute.xlu0 %571
          %v574 = vmul.f32 %v562, %v567
          %v575 = vmul.f32 %v563, %v572
          %v578 = vunpack.c.l.s4 1966171168
          %v579 = vunpack.c.0.s8 %v578
          %v580 = vlaneseq
          %v581 = vshrl.u32 %v580, 7
          %v582 = vsub.s32 %v579, %v581
          %v583 = vrot.slane %v561, %v582
          %v584 = vcombine.high %v583, %v583
          %v586 = vunpack.c.l.s4 1966171168
          %v587 = vunpack.c.0.s8 %v586
          %v588 = vlaneseq
          %v589 = vshrl.u32 %v588, 7
          %v590 = vsub.s32 %v587, %v589
          %v591 = vrot.slane %v583, %v590
          %v593 = vunpack.c.l.s4 1966171168
          %v594 = vunpack.c.0.s8 %v593
          %v595 = vlaneseq
          %v596 = vshrl.u32 %v595, 7
          %v597 = vsub.s32 %v594, %v596
          %v598 = vrot.slane %v584, %v597
          %v599 = vlaneseq
          %v600 = vshrl.u32 %v599, 7
          %v601 = vsub.s32 0, %v600
          %v602 = vrot.slane %v591, %v601
          %v603 = vlaneseq
          %v604 = vshrl.u32 %v603, 7
          %v605 = vsub.s32 0, %v604
          %v606 = vrot.slane %v598, %v605
          %v609 = vmul.f32 %v574, %v602
          %v610 = vmul.f32 %v575, %v606
          %v611 = vsel %vm450, %v609, -inf
          %612 = vmax.xlane.f32.xlu0 %v611
          %v613 = vpop.xlane.xlu0 %612
          %v614 = vsel %vm450, %v610, -inf
          %615 = vmax.xlane.f32.xlu0 %v614
          %v616 = vpop.xlane.xlu0 %615
          %v617 = vsub.f32 %v609, %v613
          %v618 = vsub.f32 %v610, %v616
          %v619 = vmul.f32 %v617, 1.442695
          %v620 = vpow.pop %v619
          %v621 = vmul.f32 %v618, 1.442695
          %v622 = vpow.pop %v621
          %v623 = vsel %vm450, %v620, 0.0
          %624 = vadd.xlane.f32.xlu0 %v623
          %v625 = vpop.xlane.xlu0 %624
          %v626 = vsel %vm450, %v622, 0.0
          %627 = vadd.xlane.f32.xlu0 %v626
          %v628 = vpop.xlane.xlu0 %627
          %v629 = vrcp.pop %v625
          %v630 = vmul.f32 %v620, %v629
          %v631 = vrcp.pop %v628
          %v632 = vmul.f32 %v622, %v631
          %633 = vst.msk [vmem:[%s289] sm:$0xff] %vm450, %v630
          %634 = vst.msk [vmem:[%s289 + $0x8] sm:$0xff] %vm450, %v632
        $region116: #{attention_forward.6} parent=99 // pred_fallthru
          _
        %p635 = scmp.lt.s32.totalorder %s18, 1
        %s636 = scalar_select %p635, %s18, 1
        %s637 = smul.addr %s636, 2
        %s638 = smul.addr %s637, 8
        %s639 = scalar_lea.vmem %s3, %s638
        // Predicated region
        $region117: #{attention_forward.6} parent=99 // pred_check
          %p640 = pneg %p121
        $region118: #{attention_forward.6} parent=99 // pred_check_branch
          %642 = sbr.rel (%p640) target = $region120
        $region119: #{attention_forward.6} parent=99 // pred_region
          _
        $region120: #{attention_forward.6} parent=99 // pred_fallthru
          _
      $region100: #{attention_forward.6} parent=5 // pred_fallthru
        _
      %p643 = scmp.le.s32.totalorder 2, %s9
      // Predicated region
      $region121: #{attention_forward.6} parent=5 // pred_check
        %p644 = pneg %p643
      $region122: #{attention_forward.6} parent=5 // pred_check_branch
        %646 = sbr.rel (%p644) target = $region124
      $region123: #{attention_forward.6} parent=5 // pred_region
        %s647 = ssub.s32 %s9, 2
        // Predicated region
        $region125: #{attention_forward.6} parent=123 // pred_check
          %p648 = pneg %p127
        $region126: #{attention_forward.6} parent=123 // pred_check_branch
          %650 = sbr.rel (%p648) target = $region128
        $region127: #{attention_forward.6} parent=123 // pred_region
          %p651 = scmp.lt.s32.totalorder %s20, 1
          %s652 = scalar_select %p651, %s20, 1
          %s653 = smul.addr %s652, 2
          %s654 = smul.addr %s653, 8
          %s655 = scalar_lea.vmem %s3, %s654
        $region128: #{attention_forward.6} parent=123 // pred_fallthru
          _
      $region124: #{attention_forward.6} parent=5 // pred_fallthru
        _
    $region6: #{attention_forward.6} parent=1 // loop_footer
      %s13 = sadd.s32 1, %s9
    $region7: #{attention_forward.6} parent=1 // loop_footer_branch
      %8 = sbr.rel target = $region3
    $region8: #{attention_forward.6} parent=1 // loop_exit
      _

// kernel: attention_forward.7
$region0: #{attention_forward.7}
  #allocation0 [shape = 'u32[]', space=smem, size = 0x4, offset = 0x4, fixed_abs, tag = 'smem constant byte address 0x4 - core index']
  #allocation1 [shape = 'u32[144,128]{1,0:T(1,128)}', space=vmem, size = 0x12000, scoped, tag = 'internal scratch']
  %s0 = inlined_call_operand.vmem [shape: f32[2,2,8,8], index: 0, kind: input, shape index: {}]
  %s1 = inlined_call_operand.vmem [shape: f32[2,48,256], index: 1, kind: input, shape index: {}]
  %s2 = inlined_call_operand.vmem [shape: f32[16,16], index: 2, kind: input, shape index: {}]
  %s3 = inlined_call_operand.vmem [shape: f32[16,1], index: 3, kind: input, shape index: {}]
  %s4 = inlined_call_operand.vmem [shape: f32[2,16,256], index: 4, kind: output, shape index: {}]
  %s5 = sld [smem:[#allocation0]]
  $region121: #{attention_forward.7} parent=0
    _
  %s7 = ssub.s32 1, %s5
  %s8 = scalar_select 0, %s7, %s5
  $region1: #{attention_forward.7} parent=0
    #allocation2 [shape = 'u8[16384]{0}', space=vmem, size = 0x4000, scoped, tag = 'input window, operand 1']
    #allocation3 [shape = 'u8[16384]{0}', space=vmem, size = 0x4000, scoped, tag = 'output window, operand 0']
    loop: start=0, step=1, limit=6
    $region2: #{attention_forward.7} parent=1 // loop_pre_header
      _
    $region3: #{attention_forward.7} parent=1 // loop_header
      %s10 = sphi 0, %s14
      %p11 = scmp.ge.s32.totalorder %s10, 6
      %s17 = sphi 0, %s29
      %s18 = sphi 0, %s25
      %s19 = sphi 0, %s17
      %s20 = sphi 0, %s18
      %s21 = sphi 0, %s19
      %s22 = sphi 0, %s20
      %s32 = sphi 0, %s34
      %s35 = sphi 0, %s32
      %s36 = sphi 0, %s35
      %s52 = sphi 0, %s36
      %s60 = sphi 0, %s62
      %s63 = sphi 0, %s60
      %s64 = sphi 0, %s63
      %s80 = sphi 0, %s64
      %s84 = sphi 0, %s84
      %s86 = sphi 0, %s84
      %s87 = sphi 0, %s86
      %s101 = sphi 0, %s87
      %s105 = sphi 0, %s105
      %s107 = sphi 0, %s105
      %s108 = sphi 0, %s107
      %s122 = sphi 0, %s108
      %s130 = sphi 0, %s132
      %s133 = sphi 0, %s130
      %s134 = sphi 0, %s133
      %s150 = sphi 0, %s134
    $region4: #{attention_forward.7} parent=1 // loop_header_branch
      %13 = sbr.rel (%p11) target = $region8
    $region5: #{attention_forward.7} parent=1 // loop_body
      %s15 = ssub.s32 %s10, 1
      %s16 = ssub.s32 %s10, 2
      %s23 = sadd.s32 1, %s18
      %p24 = scmp.ge.s32.totalorder %s23, 2
      %s25 = scalar_select %p24, 0, %s23
      %s26 = sadd.s32 1, %s17
      %s27 = scalar_select %p24, %s26, %s17
      %p28 = scmp.ge.s32.totalorder %s27, 2
      %s29 = scalar_select %p28, 0, %s27
      %s30 = ssub.s32 %s17, %s29
      %p31 = scmp.eq.s32.totalorder %s30, 0
      %s33 = sadd.s32 %s32, 1
      %s34 = scalar_select %p31, %s32, %s33
      %p37 = pneg %p31
      %p38 = scmp.eq.s32.totalorder %s10, 3
      %p39 = por %p37, %p38
      %p40 = scmp.ne.s32.totalorder %s32, %s35
      %p41 = scmp.eq.s32.totalorder %s10, 0
      %p42 = por %p40, %p41
      %p43 = scmp.ne.s32.totalorder %s32, %s35
      %p44 = scmp.eq.s32.totalorder %s15, 3
      %p45 = por %p43, %p44
      %p46 = scmp.ne.s32.totalorder %s35, %s36
      %p47 = scmp.eq.s32.totalorder %s15, 0
      %p48 = por %p46, %p47
      %p49 = scmp.ne.s32.totalorder %s35, %s36
      %p50 = scmp.eq.s32.totalorder %s16, 3
      %p51 = por %p49, %p50
      %p53 = scmp.ne.s32.totalorder %s36, %s52
      %p54 = scmp.eq.s32.totalorder %s16, 0
      %p55 = por %p53, %p54
      %s56 = ssub.s32 %s17, %s29
      %s57 = ssub.s32 %s18, %s25
      %s58 = sor.u32 %s56, %s57
      %p59 = scmp.eq.s32.totalorder %s58, 0
      %s61 = sadd.s32 %s60, 1
      %s62 = scalar_select %p59, %s60, %s61
      %p65 = pneg %p59
      %p66 = scmp.eq.s32.totalorder %s10, 3
      %p67 = por %p65, %p66
      %p68 = scmp.ne.s32.totalorder %s60, %s63
      %p69 = scmp.eq.s32.totalorder %s10, 0
      %p70 = por %p68, %p69
      %p71 = scmp.ne.s32.totalorder %s60, %s63
      %p72 = scmp.eq.s32.totalorder %s15, 3
      %p73 = por %p71, %p72
      %p74 = scmp.ne.s32.totalorder %s63, %s64
      %p75 = scmp.eq.s32.totalorder %s15, 0
      %p76 = por %p74, %p75
      %p77 = scmp.ne.s32.totalorder %s63, %s64
      %p78 = scmp.eq.s32.totalorder %s16, 3
      %p79 = por %p77, %p78
      %p81 = scmp.ne.s32.totalorder %s64, %s80
      %p82 = scmp.eq.s32.totalorder %s16, 0
      %p83 = por %p81, %p82
      %s85 = sadd.s32 %s84, 1
      %p88 = scmp.eq.s32.totalorder %s10, 3
      %p89 = scmp.ne.s32.totalorder %s84, %s86
      %p90 = scmp.eq.s32.totalorder %s10, 0
      %p91 = por %p89, %p90
      %p92 = scmp.ne.s32.totalorder %s84, %s86
      %p93 = scmp.eq.s32.totalorder %s15, 3
      %p94 = por %p92, %p93
      %p95 = scmp.ne.s32.totalorder %s86, %s87
      %p96 = scmp.eq.s32.totalorder %s15, 0
      %p97 = por %p95, %p96
      %p98 = scmp.ne.s32.totalorder %s86, %s87
      %p99 = scmp.eq.s32.totalorder %s16, 3
      %p100 = por %p98, %p99
      %p102 = scmp.ne.s32.totalorder %s87, %s101
      %p103 = scmp.eq.s32.totalorder %s16, 0
      %p104 = por %p102, %p103
      %s106 = sadd.s32 %s105, 1
      %p109 = scmp.eq.s32.totalorder %s10, 3
      %p110 = scmp.ne.s32.totalorder %s105, %s107
      %p111 = scmp.eq.s32.totalorder %s10, 0
      %p112 = por %p110, %p111
      %p113 = scmp.ne.s32.totalorder %s105, %s107
      %p114 = scmp.eq.s32.totalorder %s15, 3
      %p115 = por %p113, %p114
      %p116 = scmp.ne.s32.totalorder %s107, %s108
      %p117 = scmp.eq.s32.totalorder %s15, 0
      %p118 = por %p116, %p117
      %p119 = scmp.ne.s32.totalorder %s107, %s108
      %p120 = scmp.eq.s32.totalorder %s16, 3
      %p121 = por %p119, %p120
      %p123 = scmp.ne.s32.totalorder %s108, %s122
      %p124 = scmp.eq.s32.totalorder %s16, 0
      %p125 = por %p123, %p124
      %s126 = ssub.s32 %s17, %s29
      %s127 = ssub.s32 %s18, %s25
      %s128 = sor.u32 %s126, %s127
      %p129 = scmp.eq.s32.totalorder %s128, 0
      %s131 = sadd.s32 %s130, 1
      %s132 = scalar_select %p129, %s130, %s131
      %p135 = pneg %p129
      %p136 = scmp.eq.s32.totalorder %s10, 3
      %p137 = por %p135, %p136
      %p138 = scmp.ne.s32.totalorder %s130, %s133
      %p139 = scmp.eq.s32.totalorder %s10, 0
      %p140 = por %p138, %p139
      %p141 = scmp.ne.s32.totalorder %s130, %s133
      %p142 = scmp.eq.s32.totalorder %s15, 3
      %p143 = por %p141, %p142
      %p144 = scmp.ne.s32.totalorder %s133, %s134
      %p145 = scmp.eq.s32.totalorder %s15, 0
      %p146 = por %p144, %p145
      %p147 = scmp.ne.s32.totalorder %s133, %s134
      %p148 = scmp.eq.s32.totalorder %s16, 3
      %p149 = por %p147, %p148
      %p151 = scmp.ne.s32.totalorder %s134, %s150
      %p152 = scmp.eq.s32.totalorder %s16, 0
      %p153 = por %p151, %p152
      %p154 = scmp.le.s32.totalorder 1, %s10
      %p155 = scmp.lt.s32.totalorder %s10, 5
      %p156 = pnand %p154, %p155
      %p157 = pneg %p156
      // Predicated region
      $region9: #{attention_forward.7} parent=5 // pred_check
        _
      $region10: #{attention_forward.7} parent=5 // pred_check_branch
        %159 = sbr.rel (%p156) target = $region12
      $region11: #{attention_forward.7} parent=5 // pred_region
        %s160 = ssub.s32 %s10, 1
        // Predicated region
        $region13: #{attention_forward.7} parent=11 // pred_check
          %p161 = pneg %p97
        $region14: #{attention_forward.7} parent=11 // pred_check_branch
          %163 = sbr.rel (%p161) target = $region16
        $region15: #{attention_forward.7} parent=11 // pred_region
          _
        $region16: #{attention_forward.7} parent=11 // pred_fallthru
          _
        // Predicated region
        $region17: #{attention_forward.7} parent=11 // pred_check
          %p164 = pneg %p118
        $region18: #{attention_forward.7} parent=11 // pred_check_branch
          %166 = sbr.rel (%p164) target = $region20
        $region19: #{attention_forward.7} parent=11 // pred_region
          _
        $region20: #{attention_forward.7} parent=11 // pred_fallthru
          _
      $region12: #{attention_forward.7} parent=5 // pred_fallthru
        _
      %p167 = scmp.lt.s32.totalorder %s10, 4
      // Predicated region
      $region21: #{attention_forward.7} parent=5 // pred_check
        %p168 = pneg %p167
      $region22: #{attention_forward.7} parent=5 // pred_check_branch
        %170 = sbr.rel (%p168) target = $region24
      $region23: #{attention_forward.7} parent=5 // pred_region
        // Predicated region
        $region25: #{attention_forward.7} parent=23 // pred_check
          %p171 = pneg %p42
        $region26: #{attention_forward.7} parent=23 // pred_check_branch
          %173 = sbr.rel (%p171) target = $region28
        $region27: #{attention_forward.7} parent=23 // pred_region
          %p174 = scmp.lt.s32.totalorder %s17, 1
          %s175 = scalar_select %p174, %s17, 1
          %s176 = smul.addr %s175, 2
          %s177 = smul.addr %s176, 8
          %s178 = scalar_lea.vmem %s0, %s177
        $region28: #{attention_forward.7} parent=23 // pred_fallthru
          _
        // Predicated region
        $region29: #{attention_forward.7} parent=23 // pred_check
          %p179 = pneg %p70
        $region30: #{attention_forward.7} parent=23 // pred_check_branch
          %181 = sbr.rel (%p179) target = $region32
        $region31: #{attention_forward.7} parent=23 // pred_region
          %s182 = sand.u32 %s60, 1
          %s183 = sand.u32 %s60, 1
          %s184 = smul.addr %s183, 16
          %s185 = scalar_lea.vmem [#allocation2], %s184
          %s186 = sadd.s32 %s18, 8
          %s187 = smul.addr %s17, 12
          %s188 = sadd.s32 %s186, %s187
          %s189 = smul.addr %s188, 8
          %s190 = scalar_lea.vmem %s1, %s189
          // Predicated region
          $region33: #{attention_forward.7} parent=31 // pred_check
            _
          $region34: #{attention_forward.7} parent=31 // pred_check_branch
            %192 = sbr.rel (0) target = $region36
          $region35: #{attention_forward.7} parent=31 // pred_region
            // Predicated region
            $region37: #{attention_forward.7} parent=35 // pred_check
              _
            $region38: #{attention_forward.7} parent=35 // pred_check_branch
              %194 = sbr.rel (0) target = $region40
            $region39: #{attention_forward.7} parent=35 // pred_region
              // Predicated region
              $region52: #{attention_forward.7} parent=39 // pred_check
                _
              $region53: #{attention_forward.7} parent=39 // pred_check_branch
                %212 = sbr.rel (0) target = $region55
              $region54: #{attention_forward.7} parent=39 // pred_region
                loop: start=0, step=1, limit=1
                $region56: #{attention_forward.7} parent=54 // loop_pre_header
                  _
                $region57: #{attention_forward.7} parent=54 // loop_header
                  %s214 = sphi 0, %s218
                  %p215 = scmp.ge.s32.totalorder %s214, 1
                  %s219 = sphi %s190, %s190
                  %s220 = sphi %s185, %s185
                $region58: #{attention_forward.7} parent=54 // loop_header_branch
                  %217 = sbr.rel (%p215) target = $region62
                $region59: #{attention_forward.7} parent=54 // loop_body
                  %v221 = vld [vmem:[%s219] sm:$0xff]
                  %222 = vst [vmem:[%s220] sm:$0xff] %v221
                  %v223 = vld [vmem:[%s219 + $0x10] sm:$0xff]
                  %224 = vst [vmem:[%s220 + $0x8] sm:$0xff] %v223
                $region60: #{attention_forward.7} parent=54 // loop_footer
                  %s218 = sadd.s32 1, %s214
                $region61: #{attention_forward.7} parent=54 // loop_footer_branch
                  %213 = sbr.rel target = $region57
                $region62: #{attention_forward.7} parent=54 // loop_exit
                  _
              $region55: #{attention_forward.7} parent=39 // pred_fallthru
                _
              // Predicated region
              $region63: #{attention_forward.7} parent=39 // pred_check
                _
              $region64: #{attention_forward.7} parent=39 // pred_check_branch
                %226 = sbr.rel target = $region66
              $region65: #{attention_forward.7} parent=39 // pred_region
                _
              $region66: #{attention_forward.7} parent=39 // pred_fallthru
                _
            $region40: #{attention_forward.7} parent=35 // pred_fallthru
              _
            // Predicated region
            $region41: #{attention_forward.7} parent=35 // pred_check
              _
            $region42: #{attention_forward.7} parent=35 // pred_check_branch
              %196 = sbr.rel target = $region44
            $region43: #{attention_forward.7} parent=35 // pred_region
              %s198 = ssub.s32 256, 1
              loop: start=0, step=1, limit=1
              $region45: #{attention_forward.7} parent=43 // loop_pre_header
                _
              $region46: #{attention_forward.7} parent=43 // loop_header
                %s200 = sphi 0, %s204
                %p201 = scmp.ge.s32.totalorder %s200, 1
                %s205 = sphi %s190, %s190
                %s206 = sphi %s185, %s185
              $region47: #{attention_forward.7} parent=43 // loop_header_branch
                %203 = sbr.rel (%p201) target = $region51
              $region48: #{attention_forward.7} parent=43 // loop_body
                %v207 = vld [vmem:[%s205] sm:%s198]
                %208 = vst [vmem:[%s206] sm:%s198] %v207
                %v209 = vld [vmem:[%s205 + $0x10] sm:%s198]
                %210 = vst [vmem:[%s206 + $0x8] sm:%s198] %v209
              $region49: #{attention_forward.7} parent=43 // loop_footer
                %s204 = sadd.s32 1, %s200
              $region50: #{attention_forward.7} parent=43 // loop_footer_branch
                %199 = sbr.rel target = $region46
              $region51: #{attention_forward.7} parent=43 // loop_exit
                _
            $region44: #{attention_forward.7} parent=35 // pred_fallthru
              _
          $region36: #{attention_forward.7} parent=31 // pred_fallthru
            _
          %227 = vnop
        $region32: #{attention_forward.7} parent=23 // pred_fallthru
          _
      $region24: #{attention_forward.7} parent=5 // pred_fallthru
        _
      %p228 = scmp.le.s32.totalorder 1, %s10
      %p229 = scmp.lt.s32.totalorder %s10, 5
      %p230 = pnand %p228, %p229
      %p231 = pneg %p230
      // Predicated region
      $region67: #{attention_forward.7} parent=5 // pred_check
        _
      $region68: #{attention_forward.7} parent=5 // pred_check_branch
        %233 = sbr.rel (%p230) target = $region70
      $region69: #{attention_forward.7} parent=5 // pred_region
        %s234 = ssub.s32 %s10, 1
        %s235 = sand.u32 %s63, 1
        %s236 = sand.u32 %s63, 1
        %s237 = smul.addr %s236, 16
        %s238 = scalar_lea.vmem [#allocation2], %s237
        // Predicated region
        $region71: #{attention_forward.7} parent=69 // pred_check
          %p239 = pneg %p76
        $region72: #{attention_forward.7} parent=69 // pred_check_branch
          %241 = sbr.rel (%p239) target = $region74
        $region73: #{attention_forward.7} parent=69 // pred_region
          _
        $region74: #{attention_forward.7} parent=69 // pred_fallthru
          _
        %p242 = scmp.lt.s32.totalorder %s19, 1
        %s243 = scalar_select %p242, %s19, 1
        %s244 = smul.addr %s243, 2
        %s245 = smul.addr %s244, 8
        %s246 = scalar_lea.vmem %s0, %s245
        %p247 = pneg %p48
        %p248 = pneg %p45
        %s249 = sand.u32 %s63, 1
        %s250 = sand.u32 %s63, 1
        %s251 = smul.addr %s250, 16
        %s252 = scalar_lea.vmem [#allocation2], %s251
        %p253 = pneg %p76
        %p254 = pneg %p73
        %p255 = pneg %p97
        %p256 = pneg %p94
        %p257 = pneg %p118
        %p258 = pneg %p115
        %p259 = pneg %p146
        %p260 = pneg %p143
        %s261 = sand.u32 %s133, 1
        %s262 = sand.u32 %s133, 1
        %s263 = smul.addr %s262, 16
        %s264 = scalar_lea.vmem [#allocation3], %s263
        %p265 = scmp.lt.s32.totalorder %s19, 1
        %s266 = scalar_select %p265, %s19, 1
        %s267 = smul.addr %s266, 2
        %s268 = smul.addr %s267, 8
        %s269 = scalar_lea.vmem %s0, %s268
        %v270 = vld [vmem:[%s269] sm:$0xff]
        %v271 = vld [vmem:[%s269 + $0x8] sm:$0xff]
        %v272 = vld [vmem:[%s238] sm:$0xff]
        %v273 = vld [vmem:[%s238 + $0x8] sm:$0xff]
        %vm274 = vcmask 64512
        %v276 = vsel %vm274, %v270, 0
        %278 = vmatprep.subr.mxu0 0.0
        %279 = vmatpush1.msra.mxu0 0.0
        %280 = vmatprep.subr.mxu0 0.0
        %281 = vmatpush1.msra.mxu0 0.0
        %282 = vmatprep.subr.mxu0 0.0
        %283 = vmatpush1.msra.mxu0 0.0
        %284 = vmatprep.subr.mxu0 0.0
        %285 = vmatpush1.msra.mxu0 0.0
        %286 = vmatprep.subr.mxu0 0.0
        %287 = vmatpush1.msra.mxu0 0.0
        %288 = vmatprep.subr.mxu0 0.0
        %289 = vmatpush1.msra.mxu0 0.0
        %290 = vmatprep.subr.mxu0 0.0
        %291 = vmatpush1.msra.mxu0 0.0
        %292 = vmatprep.subr.mxu0 0.0
        %293 = vmatpush1.msra.mxu0 0.0
        %294 = vmatprep.subr.mxu0 0.0
        %295 = vmatpush1.msra.mxu0 0.0
        %296 = vmatprep.subr.mxu0 0.0
        %297 = vmatpush1.msra.mxu0 0.0
        %298 = vmatprep.subr.mxu0 0.0
        %299 = vmatpush1.msra.mxu0 0.0
        %300 = vmatprep.subr.mxu0 0.0
        %301 = vmatpush1.msra.mxu0 0.0
        %302 = vmatprep.subr.mxu0 0.0
        %303 = vmatpush1.msra.mxu0 0.0
        %304 = vmatprep.subr.mxu0 0.0
        %305 = vmatpush1.msra.mxu0 0.0
        %306 = vmatprep.subr.mxu0 0.0
        %307 = vmatpush1.msra.mxu0 0.0
        %308 = vmatprep.subr.mxu0 0.0
        %309 = vmatpush1.msra.mxu0 %v272
        %310 = vmatprep.subr.mxu0 0.0
        %311 = vmatpush2.msra.mxu0 0.0
        %312 = vmatprep.subr.mxu0 0.0
        %313 = vmatpush2.msra.mxu0 0.0
        %314 = vmatprep.subr.mxu0 0.0
        %315 = vmatpush2.msra.mxu0 0.0
        %316 = vmatprep.subr.mxu0 0.0
        %317 = vmatpush2.msra.mxu0 0.0
        %318 = vmatprep.subr.mxu0 0.0
        %319 = vmatpush2.msra.mxu0 0.0
        %320 = vmatprep.subr.mxu0 0.0
        %321 = vmatpush2.msra.mxu0 0.0
        %322 = vmatprep.subr.mxu0 0.0
        %323 = vmatpush2.msra.mxu0 0.0
        %324 = vmatprep.subr.mxu0 0.0
        %325 = vmatpush2.msra.mxu0 0.0
        %326 = vmatprep.subr.mxu0 0.0
        %327 = vmatpush2.msra.mxu0 0.0
        %328 = vmatprep.subr.mxu0 0.0
        %329 = vmatpush2.msra.mxu0 0.0
        %330 = vmatprep.subr.mxu0 0.0
        %331 = vmatpush2.msra.mxu0 0.0
        %332 = vmatprep.subr.mxu0 0.0
        %333 = vmatpush2.msra.mxu0 0.0
        %334 = vmatprep.subr.mxu0 0.0
        %335 = vmatpush2.msra.mxu0 0.0
        %336 = vmatprep.subr.mxu0 0.0
        %337 = vmatpush2.msra.mxu0 0.0
        %338 = vmatprep.subr.mxu0 0.0
        %339 = vmatpush2.msra.mxu0 0.0
        %340 = vmatprep.subr.mxu0 0.0
        %341 = vmatpush2.msra.mxu0 0.0
        %342 = vmatprep.mubr.f32.mxu0 0.0
        %343 = vmatmul.mubr.f32.gmra.mxu0 %v276
        %v344 = vpop.f32.mrf.mxu0
        %v345 = vadd.f32 0.0, %v344
        %v346 = vpop.f32.mrf.mxu0
        %347 = vdwg.mxu0
        %v349 = vsel %vm274, %v271, 0
        %351 = vmatprep.subr.mxu0 0.0
        %352 = vmatpush1.msra.mxu0 0.0
        %353 = vmatprep.subr.mxu0 0.0
        %354 = vmatpush1.msra.mxu0 0.0
        %355 = vmatprep.subr.mxu0 0.0
        %356 = vmatpush1.msra.mxu0 0.0
        %357 = vmatprep.subr.mxu0 0.0
        %358 = vmatpush1.msra.mxu0 0.0
        %359 = vmatprep.subr.mxu0 0.0
        %360 = vmatpush1.msra.mxu0 0.0
        %361 = vmatprep.subr.mxu0 0.0
        %362 = vmatpush1.msra.mxu0 0.0
        %363 = vmatprep.subr.mxu0 0.0
        %364 = vmatpush1.msra.mxu0 0.0
        %365 = vmatprep.subr.mxu0 0.0
        %366 = vmatpush1.msra.mxu0 0.0
        %367 = vmatprep.subr.mxu0 0.0
        %368 = vmatpush1.msra.mxu0 0.0
        %369 = vmatprep.subr.mxu0 0.0
        %370 = vmatpush1.msra.mxu0 0.0
        %371 = vmatprep.subr.mxu0 0.0
        %372 = vmatpush1.msra.mxu0 0.0
        %373 = vmatprep.subr.mxu0 0.0
        %374 = vmatpush1.msra.mxu0 0.0
        %375 = vmatprep.subr.mxu0 0.0
        %376 = vmatpush1.msra.mxu0 0.0
        %377 = vmatprep.subr.mxu0 0.0
        %378 = vmatpush1.msra.mxu0 0.0
        %379 = vmatprep.subr.mxu0 0.0
        %380 = vmatpush1.msra.mxu0 0.0
        %381 = vmatprep.subr.mxu0 0.0
        %382 = vmatpush1.msra.mxu0 %v273
        %383 = vmatprep.subr.mxu0 0.0
        %384 = vmatpush2.msra.mxu0 0.0
        %385 = vmatprep.subr.mxu0 0.0
        %386 = vmatpush2.msra.mxu0 0.0
        %387 = vmatprep.subr.mxu0 0.0
        %388 = vmatpush2.msra.mxu0 0.0
        %389 = vmatprep.subr.mxu0 0.0
        %390 = vmatpush2.msra.mxu0 0.0
        %391 = vmatprep.subr.mxu0 0.0
        %392 = vmatpush2.msra.mxu0 0.0
        %393 = vmatprep.subr.mxu0 0.0
        %394 = vmatpush2.msra.mxu0 0.0
        %395 = vmatprep.subr.mxu0 0.0
        %396 = vmatpush2.msra.mxu0 0.0
        %397 = vmatprep.subr.mxu0 0.0
        %398 = vmatpush2.msra.mxu0 0.0
        %399 = vmatprep.subr.mxu0 0.0
        %400 = vmatpush2.msra.mxu0 0.0
        %401 = vmatprep.subr.mxu0 0.0
        %402 = vmatpush2.msra.mxu0 0.0
        %403 = vmatprep.subr.mxu0 0.0
        %404 = vmatpush2.msra.mxu0 0.0
        %405 = vmatprep.subr.mxu0 0.0
        %406 = vmatpush2.msra.mxu0 0.0
        %407 = vmatprep.subr.mxu0 0.0
        %408 = vmatpush2.msra.mxu0 0.0
        %409 = vmatprep.subr.mxu0 0.0
        %410 = vmatpush2.msra.mxu0 0.0
        %411 = vmatprep.subr.mxu0 0.0
        %412 = vmatpush2.msra.mxu0 0.0
        %413 = vmatprep.subr.mxu0 0.0
        %414 = vmatpush2.msra.mxu0 0.0
        %415 = vmatprep.mubr.f32.mxu0 0.0
        %416 = vmatmul.mubr.f32.gmra.mxu0 %v349
        %v417 = vpop.f32.mrf.mxu0
        %v418 = vadd.f32 0.0, %v417
        %v419 = vpop.f32.mrf.mxu0
        %420 = vdwg.mxu0
        %v421 = vld [vmem:[%s2] sm:$0xff]
        %v422 = vld [vmem:[%s2 + $0x8] sm:$0xff]
        %v423 = vld [vmem:[%s3] sm:$0xff]
        %v424 = vld [vmem:[%s3 + $0x8] sm:$0xff]
        %426 = vset.pattern.permute.xlu0 0
        %427 = vperm.xlu0 %426, %v423
        %v428 = vpop.permute.xlu0 %427
        %431 = vset.pattern.permute.xlu0 0
        %432 = vperm.xlu0 %431, %v424
        %v433 = vpop.permute.xlu0 %432
        %vm435 = vcmask 130048
        %v437 = vsel %vm435, %v421, 0
        %v440 = vsel %vm435, %v422, 0
        %442 = vmatprep.subr.mxu0 0.0
        %443 = vmatpush1.msra.mxu0 0.0
        %444 = vmatprep.subr.mxu0 0.0
        %445 = vmatpush1.msra.mxu0 0.0
        %446 = vmatprep.subr.mxu0 0.0
        %447 = vmatpush1.msra.mxu0 0.0
        %448 = vmatprep.subr.mxu0 0.0
        %449 = vmatpush1.msra.mxu0 0.0
        %450 = vmatprep.subr.mxu0 0.0
        %451 = vmatpush1.msra.mxu0 0.0
        %452 = vmatprep.subr.mxu0 0.0
        %453 = vmatpush1.msra.mxu0 0.0
        %454 = vmatprep.subr.mxu0 0.0
        %455 = vmatpush1.msra.mxu0 0.0
        %456 = vmatprep.subr.mxu0 0.0
        %457 = vmatpush1.msra.mxu0 0.0
        %458 = vmatprep.subr.mxu0 0.0
        %459 = vmatpush1.msra.mxu0 0.0
        %460 = vmatprep.subr.mxu0 0.0
        %461 = vmatpush1.msra.mxu0 0.0
        %462 = vmatprep.subr.mxu0 0.0
        %463 = vmatpush1.msra.mxu0 0.0
        %464 = vmatprep.subr.mxu0 0.0
        %465 = vmatpush1.msra.mxu0 0.0
        %466 = vmatprep.subr.mxu0 0.0
        %467 = vmatpush1.msra.mxu0 0.0
        %468 = vmatprep.subr.mxu0 0.0
        %469 = vmatpush1.msra.mxu0 0.0
        %470 = vmatprep.subr.mxu0 0.0
        %471 = vmatpush1.msra.mxu0 %v418
        %472 = vmatprep.subr.mxu0 0.0
        %473 = vmatpush1.msra.mxu0 %v345
        %474 = vmatprep.subr.mxu0 0.0
        %475 = vmatpush2.msra.mxu0 0.0
        %476 = vmatprep.subr.mxu0 0.0
        %477 = vmatpush2.msra.mxu0 0.0
        %478 = vmatprep.subr.mxu0 0.0
        %479 = vmatpush2.msra.mxu0 0.0
        %480 = vmatprep.subr.mxu0 0.0
        %481 = vmatpush2.msra.mxu0 0.0
        %482 = vmatprep.subr.mxu0 0.0
        %483 = vmatpush2.msra.mxu0 0.0
        %484 = vmatprep.subr.mxu0 0.0
        %485 = vmatpush2.msra.mxu0 0.0
        %486 = vmatprep.subr.mxu0 0.0
        %487 = vmatpush2.msra.mxu0 0.0
        %488 = vmatprep.subr.mxu0 0.0
        %489 = vmatpush2.msra.mxu0 0.0
        %490 = vmatprep.subr.mxu0 0.0
        %491 = vmatpush2.msra.mxu0 0.0
        %492 = vmatprep.subr.mxu0 0.0
        %493 = vmatpush2.msra.mxu0 0.0
        %494 = vmatprep.subr.mxu0 0.0
        %495 = vmatpush2.msra.mxu0 0.0
        %496 = vmatprep.subr.mxu0 0.0
        %497 = vmatpush2.msra.mxu0 0.0
        %498 = vmatprep.subr.mxu0 0.0
        %499 = vmatpush2.msra.mxu0 0.0
        %500 = vmatprep.subr.mxu0 0.0
        %501 = vmatpush2.msra.mxu0 0.0
        %502 = vmatprep.subr.mxu0 0.0
        %503 = vmatpush2.msra.mxu0 0.0
        %504 = vmatprep.subr.mxu0 0.0
        %505 = vmatpush2.msra.mxu0 0.0
        %506 = vmatprep.mubr.f32.mxu0 0.0
        %507 = vmatmul.mubr.f32.gmra.mxu0 %v437
        %v508 = vpop.f32.mrf.mxu0
        %v509 = vadd.f32 %v428, %v508
        %v510 = vpop.f32.mrf.mxu0
        %511 = vmatprep.mubr.f32.mxu0 0.0
        %512 = vmatmul.mubr.f32.gmra.mxu0 %v440
        %v513 = vpop.f32.mrf.mxu0
        %v514 = vadd.f32 %v433, %v513
        %v515 = vpop.f32.mrf.mxu0
        %516 = vdwg.mxu0
        %517 = vst [vmem:[%s264] sm:$0xff] %v509
        %518 = vst [vmem:[%s264 + $0x8] sm:$0xff] %v514
        %s519 = sand.u32 %s133, 1
        %s520 = sand.u32 %s133, 1
        %s521 = smul.addr %s520, 16
        %s522 = scalar_lea.vmem [#allocation3], %s521
        // Predicated region
        $region75: #{attention_forward.7} parent=69 // pred_check
          %p523 = pneg %p143
        $region76: #{attention_forward.7} parent=69 // pred_check_branch
          %525 = sbr.rel (%p523) target = $region78
        $region77: #{attention_forward.7} parent=69 // pred_region
          %s526 = smul.addr %s19, 4
          %s527 = sadd.s32 %s20, %s526
          %s528 = smul.addr %s527, 8
          %s529 = scalar_lea.vmem %s4, %s528
          // Predicated region
          $region79: #{attention_forward.7} parent=77 // pred_check
            _
          $region80: #{attention_forward.7} parent=77 // pred_check_branch
            %531 = sbr.rel (0) target = $region82
          $region81: #{attention_forward.7} parent=77 // pred_region
            // Predicated region
            $region83: #{attention_forward.7} parent=81 // pred_check
              _
            $region84: #{attention_forward.7} parent=81 // pred_check_branch
              %533 = sbr.rel (0) target = $region86
            $region85: #{attention_forward.7} parent=81 // pred_region
              // Predicated region
              $region98: #{attention_forward.7} parent=85 // pred_check
                _
              $region99: #{attention_forward.7} parent=85 // pred_check_branch
                %551 = sbr.rel (0) target = $region101
              $region100: #{attention_forward.7} parent=85 // pred_region
                loop: start=0, step=1, limit=1
                $region102: #{attention_forward.7} parent=100 // loop_pre_header
                  _
                $region103: #{attention_forward.7} parent=100 // loop_header
                  %s553 = sphi 0, %s557
                  %p554 = scmp.ge.s32.totalorder %s553, 1
                  %s558 = sphi %s522, %s522
                  %s559 = sphi %s529, %s529
                $region104: #{attention_forward.7} parent=100 // loop_header_branch
                  %556 = sbr.rel (%p554) target = $region108
                $region105: #{attention_forward.7} parent=100 // loop_body
                  %v560 = vld [vmem:[%s558] sm:$0xff]
                  %561 = vst [vmem:[%s559] sm:$0xff] %v560
                  %v562 = vld [vmem:[%s558 + $0x8] sm:$0xff]
                  %563 = vst [vmem:[%s559 + $0x10] sm:$0xff] %v562
                $region106: #{attention_forward.7} parent=100 // loop_footer
                  %s557 = sadd.s32 1, %s553
                $region107: #{attention_forward.7} parent=100 // loop_footer_branch
                  %552 = sbr.rel target = $region103
                $region108: #{attention_forward.7} parent=100 // loop_exit
                  _
              $region101: #{attention_forward.7} parent=85 // pred_fallthru
                _
              // Predicated region
              $region109: #{attention_forward.7} parent=85 // pred_check
                _
              $region110: #{attention_forward.7} parent=85 // pred_check_branch
                %565 = sbr.rel target = $region112
              $region111: #{attention_forward.7} parent=85 // pred_region
                _
              $region112: #{attention_forward.7} parent=85 // pred_fallthru
                _
            $region86: #{attention_forward.7} parent=81 // pred_fallthru
              _
            // Predicated region
            $region87: #{attention_forward.7} parent=81 // pred_check
              _
            $region88: #{attention_forward.7} parent=81 // pred_check_branch
              %535 = sbr.rel target = $region90
            $region89: #{attention_forward.7} parent=81 // pred_region
              %s537 = ssub.s32 256, 1
              loop: start=0, step=1, limit=1
              $region91: #{attention_forward.7} parent=89 // loop_pre_header
                _
              $region92: #{attention_forward.7} parent=89 // loop_header
                %s539 = sphi 0, %s543
                %p540 = scmp.ge.s32.totalorder %s539, 1
                %s544 = sphi %s522, %s522
                %s545 = sphi %s529, %s529
              $region93: #{attention_forward.7} parent=89 // loop_header_branch
                %542 = sbr.rel (%p540) target = $region97
              $region94: #{attention_forward.7} parent=89 // loop_body
                %v546 = vld [vmem:[%s544] sm:%s537]
                %547 = vst [vmem:[%s545] sm:%s537] %v546
                %v548 = vld [vmem:[%s544 + $0x8] sm:%s537]
                %549 = vst [vmem:[%s545 + $0x10] sm:%s537] %v548
              $region95: #{attention_forward.7} parent=89 // loop_footer
                %s543 = sadd.s32 1, %s539
              $region96: #{attention_forward.7} parent=89 // loop_footer_branch
                %538 = sbr.rel target = $region92
              $region97: #{attention_forward.7} parent=89 // loop_exit
                _
            $region90: #{attention_forward.7} parent=81 // pred_fallthru
              _
          $region82: #{attention_forward.7} parent=77 // pred_fallthru
            _
          %566 = vnop
        $region78: #{attention_forward.7} parent=69 // pred_fallthru
          _
      $region70: #{attention_forward.7} parent=5 // pred_fallthru
        _
      %p567 = scmp.le.s32.totalorder 2, %s10
      // Predicated region
      $region113: #{attention_forward.7} parent=5 // pred_check
        %p568 = pneg %p567
      $region114: #{attention_forward.7} parent=5 // pred_check_branch
        %570 = sbr.rel (%p568) target = $region116
      $region115: #{attention_forward.7} parent=5 // pred_region
        %s571 = ssub.s32 %s10, 2
        // Predicated region
        $region117: #{attention_forward.7} parent=115 // pred_check
          %p572 = pneg %p149
        $region118: #{attention_forward.7} parent=115 // pred_check_branch
          %574 = sbr.rel (%p572) target = $region120
        $region119: #{attention_forward.7} parent=115 // pred_region
          %s575 = sand.u32 %s134, 1
          %s576 = sand.u32 %s134, 1
          %s577 = smul.addr %s576, 16
          %s578 = scalar_lea.vmem [#allocation3], %s577
        $region120: #{attention_forward.7} parent=115 // pred_fallthru
          _
      $region116: #{attention_forward.7} parent=5 // pred_fallthru
        _
    $region6: #{attention_forward.7} parent=1 // loop_footer
      %s14 = sadd.s32 1, %s10
    $region7: #{attention_forward.7} parent=1 // loop_footer_branch
      %9 = sbr.rel target = $region3
    $region8: #{attention_forward.7} parent=1 // loop_exit
      _

// kernel: attention_forward.5
$region0: #{attention_forward.5}
  #allocation0 [shape = 'u32[]', space=smem, size = 0x4, offset = 0x4, fixed_abs, tag = 'smem constant byte address 0x4 - core index']
  #allocation1 [shape = 'u32[144,128]{1,0:T(1,128)}', space=vmem, size = 0x12000, scoped, tag = 'internal scratch']
  %s0 = inlined_call_operand.vmem [shape: f32[2,48,256], index: 0, kind: input, shape index: {}]
  %s1 = inlined_call_operand.vmem [shape: f32[48,9], index: 1, kind: input, shape index: {}]
  %s2 = inlined_call_operand.vmem [shape: f32[48,1], index: 2, kind: input, shape index: {}]
  %s3 = inlined_call_operand.vmem [shape: f32[9,256], index: 3, kind: input, shape index: {}]
  %s4 = inlined_call_operand.vmem [shape: f32[2,48,256], index: 4, kind: output, shape index: {}]
  %s5 = sld [smem:[#allocation0]]
  $region49: #{attention_forward.5} parent=0
    _
  %s7 = ssub.s32 1, %s5
  %s8 = scalar_select 0, %s7, %s5
  loop: start=0, step=1, limit=4
  $region2: #{attention_forward.5} parent=0 // loop_pre_header
    _
  $region3: #{attention_forward.5} parent=0 // loop_header
    %s10 = sphi 0, %s14
    %p11 = scmp.ge.s32.totalorder %s10, 4
    %s20 = sphi 0, %s22
    %s23 = sphi 0, %s20
    %s24 = sphi 0, %s23
    %s40 = sphi 0, %s24
    %s44 = sphi 0, %s44
    %s46 = sphi 0, %s44
    %s47 = sphi 0, %s46
    %s61 = sphi 0, %s47
    %s65 = sphi 0, %s65
    %s67 = sphi 0, %s65
    %s68 = sphi 0, %s67
    %s82 = sphi 0, %s68
    %s86 = sphi 0, %s86
    %s88 = sphi 0, %s86
    %s89 = sphi 0, %s88
    %s103 = sphi 0, %s89
    %s109 = sphi 0, %s111
    %s112 = sphi 0, %s109
    %s113 = sphi 0, %s112
    %s129 = sphi 0, %s113
  $region4: #{attention_forward.5} parent=0 // loop_header_branch
    %13 = sbr.rel (%p11) target = $region8
  $region5: #{attention_forward.5} parent=0 // loop_body
    %s15 = ssub.s32 %s10, 1
    %s16 = ssub.s32 %s10, 2
    %s17 = sadd.s32 %s10, 1
    %s18 = ssub.s32 %s10, %s17
    %p19 = scmp.eq.s32.totalorder %s18, 0
    %s21 = sadd.s32 %s20, 1
    %s22 = scalar_select %p19, %s20, %s21
    %p25 = pneg %p19
    %p26 = scmp.eq.s32.totalorder %s10, 1
    %p27 = por %p25, %p26
    %p28 = scmp.ne.s32.totalorder %s20, %s23
    %p29 = scmp.eq.s32.totalorder %s10, 0
    %p30 = por %p28, %p29
    %p31 = scmp.ne.s32.totalorder %s20, %s23
    %p32 = scmp.eq.s32.totalorder %s15, 1
    %p33 = por %p31, %p32
    %p34 = scmp.ne.s32.totalorder %s23, %s24
    %p35 = scmp.eq.s32.totalorder %s15, 0
    %p36 = por %p34, %p35
    %p37 = scmp.ne.s32.totalorder %s23, %s24
    %p38 = scmp.eq.s32.totalorder %s16, 1
    %p39 = por %p37, %p38
    %p41 = scmp.ne.s32.totalorder %s24, %s40
    %p42 = scmp.eq.s32.totalorder %s16, 0
    %p43 = por %p41, %p42
    %s45 = sadd.s32 %s44, 1
    %p48 = scmp.eq.s32.totalorder %s10, 1
    %p49 = scmp.ne.s32.totalorder %s44, %s46
    %p50 = scmp.eq.s32.totalorder %s10, 0
    %p51 = por %p49, %p50
    %p52 = scmp.ne.s32.totalorder %s44, %s46
    %p53 = scmp.eq.s32.totalorder %s15, 1
    %p54 = por %p52, %p53
    %p55 = scmp.ne.s32.totalorder %s46, %s47
    %p56 = scmp.eq.s32.totalorder %s15, 0
    %p57 = por %p55, %p56
    %p58 = scmp.ne.s32.totalorder %s46, %s47
    %p59 = scmp.eq.s32.totalorder %s16, 1
    %p60 = por %p58, %p59
    %p62 = scmp.ne.s32.totalorder %s47, %s61
    %p63 = scmp.eq.s32.totalorder %s16, 0
    %p64 = por %p62, %p63
    %s66 = sadd.s32 %s65, 1
    %p69 = scmp.eq.s32.totalorder %s10, 1
    %p70 = scmp.ne.s32.totalorder %s65, %s67
    %p71 = scmp.eq.s32.totalorder %s10, 0
    %p72 = por %p70, %p71
    %p73 = scmp.ne.s32.totalorder %s65, %s67
    %p74 = scmp.eq.s32.totalorder %s15, 1
    %p75 = por %p73, %p74
    %p76 = scmp.ne.s32.totalorder %s67, %s68
    %p77 = scmp.eq.s32.totalorder %s15, 0
    %p78 = por %p76, %p77
    %p79 = scmp.ne.s32.totalorder %s67, %s68
    %p80 = scmp.eq.s32.totalorder %s16, 1
    %p81 = por %p79, %p80
    %p83 = scmp.ne.s32.totalorder %s68, %s82
    %p84 = scmp.eq.s32.totalorder %s16, 0
    %p85 = por %p83, %p84
    %s87 = sadd.s32 %s86, 1
    %p90 = scmp.eq.s32.totalorder %s10, 1
    %p91 = scmp.ne.s32.totalorder %s86, %s88
    %p92 = scmp.eq.s32.totalorder %s10, 0
    %p93 = por %p91, %p92
    %p94 = scmp.ne.s32.totalorder %s86, %s88
    %p95 = scmp.eq.s32.totalorder %s15, 1
    %p96 = por %p94, %p95
    %p97 = scmp.ne.s32.totalorder %s88, %s89
    %p98 = scmp.eq.s32.totalorder %s15, 0
    %p99 = por %p97, %p98
    %p100 = scmp.ne.s32.totalorder %s88, %s89
    %p101 = scmp.eq.s32.totalorder %s16, 1
    %p102 = por %p100, %p101
    %p104 = scmp.ne.s32.totalorder %s89, %s103
    %p105 = scmp.eq.s32.totalorder %s16, 0
    %p106 = por %p104, %p105
    %s107 = ssub.s32 %s10, %s17
    %p108 = scmp.eq.s32.totalorder %s107, 0
    %s110 = sadd.s32 %s109, 1
    %s111 = scalar_select %p108, %s109, %s110
    %p114 = pneg %p108
    %p115 = scmp.eq.s32.totalorder %s10, 1
    %p116 = por %p114, %p115
    %p117 = scmp.ne.s32.totalorder %s109, %s112
    %p118 = scmp.eq.s32.totalorder %s10, 0
    %p119 = por %p117, %p118
    %p120 = scmp.ne.s32.totalorder %s109, %s112
    %p121 = scmp.eq.s32.totalorder %s15, 1
    %p122 = por %p120, %p121
    %p123 = scmp.ne.s32.totalorder %s112, %s113
    %p124 = scmp.eq.s32.totalorder %s15, 0
    %p125 = por %p123, %p124
    %p126 = scmp.ne.s32.totalorder %s112, %s113
    %p127 = scmp.eq.s32.totalorder %s16, 1
    %p128 = por %p126, %p127
    %p130 = scmp.ne.s32.totalorder %s113, %s129
    %p131 = scmp.eq.s32.totalorder %s16, 0
    %p132 = por %p130, %p131
    %p133 = scmp.le.s32.totalorder 1, %s10
    %p134 = scmp.lt.s32.totalorder %s10, 3
    %p135 = pnand %p133, %p134
    %p136 = pneg %p135
    // Predicated region
    $region9: #{attention_forward.5} parent=5 // pred_check
      _
    $region10: #{attention_forward.5} parent=5 // pred_check_branch
      %138 = sbr.rel (%p135) target = $region12
    $region11: #{attention_forward.5} parent=5 // pred_region
      %s139 = ssub.s32 %s10, 1
      // Predicated region
      $region13: #{attention_forward.5} parent=11 // pred_check
        %p140 = pneg %p57
      $region14: #{attention_forward.5} parent=11 // pred_check_branch
        %142 = sbr.rel (%p140) target = $region16
      $region15: #{attention_forward.5} parent=11 // pred_region
        _
      $region16: #{attention_forward.5} parent=11 // pred_fallthru
        _
      // Predicated region
      $region17: #{attention_forward.5} parent=11 // pred_check
        %p143 = pneg %p78
      $region18: #{attention_forward.5} parent=11 // pred_check_branch
        %145 = sbr.rel (%p143) target = $region20
      $region19: #{attention_forward.5} parent=11 // pred_region
        _
      $region20: #{attention_forward.5} parent=11 // pred_fallthru
        _
      // Predicated region
      $region21: #{attention_forward.5} parent=11 // pred_check
        %p146 = pneg %p99
      $region22: #{attention_forward.5} parent=11 // pred_check_branch
        %148 = sbr.rel (%p146) target = $region24
      $region23: #{attention_forward.5} parent=11 // pred_region
        _
      $region24: #{attention_forward.5} parent=11 // pred_fallthru
        _
    $region12: #{attention_forward.5} parent=5 // pred_fallthru
      _
    %p149 = scmp.lt.s32.totalorder %s10, 2
    // Predicated region
    $region25: #{attention_forward.5} parent=5 // pred_check
      %p150 = pneg %p149
    $region26: #{attention_forward.5} parent=5 // pred_check_branch
      %152 = sbr.rel (%p150) target = $region28
    $region27: #{attention_forward.5} parent=5 // pred_region
      // Predicated region
      $region29: #{attention_forward.5} parent=27 // pred_check
        %p153 = pneg %p30
      $region30: #{attention_forward.5} parent=27 // pred_check_branch
        %155 = sbr.rel (%p153) target = $region32
      $region31: #{attention_forward.5} parent=27 // pred_region
        %p156 = scmp.lt.s32.totalorder %s10, 1
        %s157 = scalar_select %p156, %s10, 1
        %s158 = smul.addr %s157, 12
        %s159 = smul.addr %s158, 8
        %s160 = scalar_lea.vmem %s0, %s159
      $region32: #{attention_forward.5} parent=27 // pred_fallthru
        _
    $region28: #{attention_forward.5} parent=5 // pred_fallthru
      _
    %p161 = scmp.le.s32.totalorder 1, %s10
    %p162 = scmp.lt.s32.totalorder %s10, 3
    %p163 = pnand %p161, %p162
    %p164 = pneg %p163
    // Predicated region
    $region33: #{attention_forward.5} parent=5 // pred_check
      _
    $region34: #{attention_forward.5} parent=5 // pred_check_branch
      %166 = sbr.rel (%p163) target = $region36
    $region35: #{attention_forward.5} parent=5 // pred_region
      %s167 = ssub.s32 %s10, 1
      %p168 = scmp.lt.s32.totalorder %s15, 1
      %s169 = scalar_select %p168, %s15, 1
      %s170 = smul.addr %s169, 12
      %s171 = smul.addr %s170, 8
      %s172 = scalar_lea.vmem %s0, %s171
      %p173 = pneg %p36
      %p174 = pneg %p33
      %p175 = pneg %p57
      %p176 = pneg %p54
      %p177 = pneg %p78
      %p178 = pneg %p75
      %p179 = pneg %p99
      %p180 = pneg %p96
      %p181 = pneg %p125
      %p182 = pneg %p122
      %p183 = scmp.lt.s32.totalorder %s15, 1
      %s184 = scalar_select %p183, %s15, 1
      %s185 = smul.addr %s184, 12
      %s186 = smul.addr %s185, 8
      %s187 = scalar_lea.vmem %s4, %s186
      %p188 = scmp.lt.s32.totalorder %s15, 1
      %s189 = scalar_select %p188, %s15, 1
      %s190 = smul.addr %s189, 12
      %s191 = smul.addr %s190, 8
      %s192 = scalar_lea.vmem %s0, %s191
      %p193 = scmp.lt.s32.totalorder %s15, 1
      %s194 = scalar_select %p193, %s15, 1
      %s195 = smul.addr %s194, 12
      %s196 = smul.addr %s195, 8
      %s197 = scalar_lea.vmem %s4, %s196
      %v198 = vld [vmem:[%s192] sm:$0xff]
      %v199 = vld [vmem:[%s192 + $0x8] sm:$0xff]
      %v200 = vld [vmem:[%s192 + $0x10] sm:$0xff]
      %v201 = vld [vmem:[%s192 + $0x18] sm:$0xff]
      %v202 = vld [vmem:[%s192 + $0x20] sm:$0xff]
      %v203 = vld [vmem:[%s192 + $0x28] sm:$0xff]
      %v204 = vld [vmem:[%s192 + $0x30] sm:$0xff]
      %v205 = vld [vmem:[%s192 + $0x38] sm:$0xff]
      %v206 = vld [vmem:[%s192 + $0x40] sm:$0xff]
      %v207 = vld [vmem:[%s192 + $0x48] sm:$0xff]
      %v208 = vld [vmem:[%s192 + $0x50] sm:$0xff]
      %v209 = vld [vmem:[%s192 + $0x58] sm:$0xff]
      %v210 = vld [vmem:[%s1] sm:$0xff]
      %v211 = vld [vmem:[%s1 + $0x8] sm:$0xff]
      %v212 = vld [vmem:[%s1 + $0x10] sm:$0xff]
      %v213 = vld [vmem:[%s1 + $0x18] sm:$0xff]
      %v214 = vld [vmem:[%s1 + $0x20] sm:$0xff]
      %v215 = vld [vmem:[%s1 + $0x28] sm:$0xff]
      %v216 = vld [vmem:[%s3] sm:$0xff]
      %v217 = vld [vmem:[%s3 + $0x8] sm:$0xff]
      %v218 = vld [vmem:[%s3 + $0x10] sm:$0x1]
      %v219 = vld [vmem:[%s3 + $0x18] sm:$0x1]
      %221 = vset.pattern.permute.xlu0 4
      %222 = vperm.xlu0 %221, %v210
      %v223 = vpop.permute.xlu0 %222
      %226 = vset.pattern.permute.xlu0 4
      %227 = vperm.xlu0 %226, %v211
      %v228 = vpop.permute.xlu0 %227
      %231 = vset.pattern.permute.xlu0 4
      %232 = vperm.xlu0 %231, %v212
      %v233 = vpop.permute.xlu0 %232
      %236 = vset.pattern.permute.xlu0 4
      %237 = vperm.xlu0 %236, %v213
      %v238 = vpop.permute.xlu0 %237
      %241 = vset.pattern.permute.xlu0 4
      %242 = vperm.xlu0 %241, %v214
      %v243 = vpop.permute.xlu0 %242
      %246 = vset.pattern.permute.xlu0 4
      %247 = vperm.xlu0 %246, %v215
      %v248 = vpop.permute.xlu0 %247
      %v250 = vmul.f32 %v198, %v223
      %v251 = vmul.f32 %v199, %v223
      %v252 = vmul.f32 %v200, %v228
      %v253 = vmul.f32 %v201, %v228
      %v254 = vmul.f32 %v202, %v233
      %v255 = vmul.f32 %v203, %v233
      %v256 = vmul.f32 %v204, %v238
      %v257 = vmul.f32 %v205, %v238
      %v258 = vmul.f32 %v206, %v243
      %v259 = vmul.f32 %v207, %v243
      %v260 = vmul.f32 %v208, %v248
      %v261 = vmul.f32 %v209, %v248
      %262 = vrot.lane.b32.xlu0 %v198, 17
      %v263 = vpop.permute.xlu0 %262
      %264 = vrot.lane.b32.xlu0 %v200, 17
      %v265 = vpop.permute.xlu0 %264
      %266 = vrot.lane.b32.xlu0 %v202, 17
      %v267 = vpop.permute.xlu0 %266
      %268 = vrot.lane.b32.xlu0 %v204, 17
      %v269 = vpop.permute.xlu0 %268
      %270 = vrot.lane.b32.xlu0 %v206, 17
      %v271 = vpop.permute.xlu0 %270
      %272 = vrot.lane.b32.xlu0 %v208, 17
      %v273 = vpop.permute.xlu0 %272
      %274 = vrot.lane.b32.xlu0 %v199, 17
      %v275 = vpop.permute.xlu0 %274
      %276 = vrot.lane.b32.xlu0 %v201, 17
      %v277 = vpop.permute.xlu0 %276
      %278 = vrot.lane.b32.xlu0 %v203, 17
      %v279 = vpop.permute.xlu0 %278
      %280 = vrot.lane.b32.xlu0 %v205, 17
      %v281 = vpop.permute.xlu0 %280
      %282 = vrot.lane.b32.xlu0 %v207, 17
      %v283 = vpop.permute.xlu0 %282
      %284 = vrot.lane.b32.xlu0 %v209, 17
      %v285 = vpop.permute.xlu0 %284
      %v286 = vlaneseq
      %v287 = vand.u32 %v286, 127
      %vm288 = vcmp.lt.s32.totalorder %v287, 17
      %v289 = vsel %vm288, %v263, %v275
      %v290 = vsel %vm288, %v265, %v277
      %v291 = vsel %vm288, %v267, %v279
      %v292 = vsel %vm288, %v269, %v281
      %v293 = vsel %vm288, %v271, %v283
      %v294 = vsel %vm288, %v273, %v285
      %v295 = vsel %vm288, %v275, %v263
      %v296 = vsel %vm288, %v277, %v265
      %v297 = vsel %vm288, %v279, %v267
      %v298 = vsel %vm288, %v281, %v269
      %v299 = vsel %vm288, %v283, %v271
      %v300 = vsel %vm288, %v285, %v273
      %v301 = vlaneseq
      %v302 = vshrl.u32 %v301, 7
      %v303 = vsub.s32 0, %v302
      %v304 = vrot.slane %v216, %v303
      %v305 = vlaneseq
      %v306 = vshrl.u32 %v305, 7
      %v307 = vsub.s32 0, %v306
      %v308 = vrot.slane %v217, %v307
      %v309 = vmul.f32 %v295, %v304
      %v310 = vmul.f32 %v289, %v308
      %v311 = vmul.f32 %v296, %v304
      %v312 = vmul.f32 %v290, %v308
      %v313 = vmul.f32 %v297, %v304
      %v314 = vmul.f32 %v291, %v308
      %v315 = vmul.f32 %v298, %v304
      %v316 = vmul.f32 %v292, %v308
      %v317 = vmul.f32 %v299, %v304
      %v318 = vmul.f32 %v293, %v308
      %v319 = vmul.f32 %v300, %v304
      %v320 = vmul.f32 %v294, %v308
      %321 = vset.pattern.permute.xlu0 0
      %322 = vperm.xlu0 %321, %v210
      %v323 = vpop.permute.xlu0 %322
      %325 = vset.pattern.permute.xlu0 0
      %326 = vperm.xlu0 %325, %v211
      %v327 = vpop.permute.xlu0 %326
      %329 = vset.pattern.permute.xlu0 0
      %330 = vperm.xlu0 %329, %v212
      %v331 = vpop.permute.xlu0 %330
      %333 = vset.pattern.permute.xlu0 0
      %334 = vperm.xlu0 %333, %v213
      %v335 = vpop.permute.xlu0 %334
      %337 = vset.pattern.permute.xlu0 0
      %338 = vperm.xlu0 %337, %v214
      %v339 = vpop.permute.xlu0 %338
      %341 = vset.pattern.permute.xlu0 0
      %342 = vperm.xlu0 %341, %v215
      %v343 = vpop.permute.xlu0 %342
      %v345 = vmul.f32 %v323, %v309
      %v346 = vmul.f32 %v323, %v310
      %v347 = vmul.f32 %v327, %v311
      %v348 = vmul.f32 %v327, %v312
      %v349 = vmul.f32 %v331, %v313
      %v350 = vmul.f32 %v331, %v314
      %v351 = vmul.f32 %v335, %v315
      %v352 = vmul.f32 %v335, %v316
      %v353 = vmul.f32 %v339, %v317
      %v354 = vmul.f32 %v339, %v318
      %v355 = vmul.f32 %v343, %v319
      %v356 = vmul.f32 %v343, %v320
      %v357 = vadd.f32 %v250, %v345
      %v358 = vadd.f32 %v251, %v346
      %v359 = vadd.f32 %v252, %v347
      %v360 = vadd.f32 %v253, %v348
      %v361 = vadd.f32 %v254, %v349
      %v362 = vadd.f32 %v255, %v350
      %v363 = vadd.f32 %v256, %v351
      %v364 = vadd.f32 %v257, %v352
      %v365 = vadd.f32 %v258, %v353
      %v366 = vadd.f32 %v259, %v354
      %v367 = vadd.f32 %v260, %v355
      %v368 = vadd.f32 %v261, %v356
      %369 = vrot.lane.b32.xlu0 %v198, 16
      %v370 = vpop.permute.xlu0 %369
      %371 = vrot.lane.b32.xlu0 %v200, 16
      %v372 = vpop.permute.xlu0 %371
      %373 = vrot.lane.b32.xlu0 %v202, 16
      %v374 = vpop.permute.xlu0 %373
      %375 = vrot.lane.b32.xlu0 %v204, 16
      %v376 = vpop.permute.xlu0 %375
      %377 = vrot.lane.b32.xlu0 %v206, 16
      %v378 = vpop.permute.xlu0 %377
      %379 = vrot.lane.b32.xlu0 %v208, 16
      %v380 = vpop.permute.xlu0 %379
      %381 = vrot.lane.b32.xlu0 %v199, 16
      %v382 = vpop.permute.xlu0 %381
      %383 = vrot.lane.b32.xlu0 %v201, 16
      %v384 = vpop.permute.xlu0 %383
      %385 = vrot.lane.b32.xlu0 %v203, 16
      %v386 = vpop.permute.xlu0 %385
      %387 = vrot.lane.b32.xlu0 %v205, 16
      %v388 = vpop.permute.xlu0 %387
      %389 = vrot.lane.b32.xlu0 %v207, 16
      %v390 = vpop.permute.xlu0 %389
      %391 = vrot.lane.b32.xlu0 %v209, 16
      %v392 = vpop.permute.xlu0 %391
      %vm393 = vcmp.lt.s32.totalorder %v287, 16
      %v394 = vsel %vm393, %v370, %v382
      %v395 = vsel %vm393, %v372, %v384
      %v396 = vsel %vm393, %v374, %v386
      %v397 = vsel %vm393, %v376, %v388
      %v398 = vsel %vm393, %v378, %v390
      %v399 = vsel %vm393, %v380, %v392
      %v400 = vsel %vm393, %v382, %v370
      %v401 = vsel %vm393, %v384, %v372
      %v402 = vsel %vm393, %v386, %v374
      %v403 = vsel %vm393, %v388, %v376
      %v404 = vsel %vm393, %v390, %v378
      %v405 = vsel %vm393, %v392, %v380
      %v406 = vlaneseq
      %v407 = vshrl.u32 %v406, 7
      %v408 = vsub.s32 1, %v407
      %v409 = vrot.slane %v216, %v408
      %v410 = vlaneseq
      %v411 = vshrl.u32 %v410, 7
      %v412 = vsub.s32 1, %v411
      %v413 = vrot.slane %v217, %v412
      %v414 = vmul.f32 %v400, %v409
      %v415 = vmul.f32 %v394, %v413
      %v416 = vmul.f32 %v401, %v409
      %v417 = vmul.f32 %v395, %v413
      %v418 = vmul.f32 %v402, %v409
      %v419 = vmul.f32 %v396, %v413
      %v420 = vmul.f32 %v403, %v409
      %v421 = vmul.f32 %v397, %v413
      %v422 = vmul.f32 %v404, %v409
      %v423 = vmul.f32 %v398, %v413
      %v424 = vmul.f32 %v405, %v409
      %v425 = vmul.f32 %v399, %v413
      %426 = vset.pattern.permute.xlu0 1
      %427 = vperm.xlu0 %426, %v210
      %v428 = vpop.permute.xlu0 %427
      %430 = vset.pattern.permute.xlu0 1
      %431 = vperm.xlu0 %430, %v211
      %v432 = vpop.permute.xlu0 %431
      %434 = vset.pattern.permute.xlu0 1
      %435 = vperm.xlu0 %434, %v212
      %v436 = vpop.permute.xlu0 %435
      %438 = vset.pattern.permute.xlu0 1
      %439 = vperm.xlu0 %438, %v213
      %v440 = vpop.permute.xlu0 %439
      %442 = vset.pattern.permute.xlu0 1
      %443 = vperm.xlu0 %442, %v214
      %v444 = vpop.permute.xlu0 %443
      %446 = vset.pattern.permute.xlu0 1
      %447 = vperm.xlu0 %446, %v215
      %v448 = vpop.permute.xlu0 %447
      %v450 = vmul.f32 %v428, %v414
      %v451 = vmul.f32 %v428, %v415
      %v452 = vmul.f32 %v432, %v416
      %v453 = vmul.f32 %v432, %v417
      %v454 = vmul.f32 %v436, %v418
      %v455 = vmul.f32 %v436, %v419
      %v456 = vmul.f32 %v440, %v420
      %v457 = vmul.f32 %v440, %v421
      %v458 = vmul.f32 %v444, %v422
      %v459 = vmul.f32 %v444, %v423
      %v460 = vmul.f32 %v448, %v424
      %v461 = vmul.f32 %v448, %v425
      %v462 = vadd.f32 %v357, %v450
      %v463 = vadd.f32 %v358, %v451
      %v464 = vadd.f32 %v359, %v452
      %v465 = vadd.f32 %v360, %v453
      %v466 = vadd.f32 %v361, %v454
      %v467 = vadd.f32 %v362, %v455
      %v468 = vadd.f32 %v363, %v456
      %v469 = vadd.f32 %v364, %v457
      %v470 = vadd.f32 %v365, %v458
      %v471 = vadd.f32 %v366, %v459
      %v472 = vadd.f32 %v367, %v460
      %v473 = vadd.f32 %v368, %v461
      %474 = vrot.lane.b32.xlu0 %v198, 15
      %v475 = vpop.permute.xlu0 %474
      %476 = vrot.lane.b32.xlu0 %v200, 15
      %v477 = vpop.permute.xlu0 %476
      %478 = vrot.lane.b32.xlu0 %v202, 15
      %v479 = vpop.permute.xlu0 %478
      %480 = vrot.lane.b32.xlu0 %v204, 15
      %v481 = vpop.permute.xlu0 %480
      %482 = vrot.lane.b32.xlu0 %v206, 15
      %v483 = vpop.permute.xlu0 %482
      %484 = vrot.lane.b32.xlu0 %v208, 15
      %v485 = vpop.permute.xlu0 %484
      %486 = vrot.lane.b32.xlu0 %v199, 15
      %v487 = vpop.permute.xlu0 %486
      %488 = vrot.lane.b32.xlu0 %v201, 15
      %v489 = vpop.permute.xlu0 %488
      %490 = vrot.lane.b32.xlu0 %v203, 15
      %v491 = vpop.permute.xlu0 %490
      %492 = vrot.lane.b32.xlu0 %v205, 15
      %v493 = vpop.permute.xlu0 %492
      %494 = vrot.lane.b32.xlu0 %v207, 15
      %v495 = vpop.permute.xlu0 %494
      %496 = vrot.lane.b32.xlu0 %v209, 15
      %v497 = vpop.permute.xlu0 %496
      %vm498 = vcmp.lt.s32.totalorder %v287, 15
      %v499 = vsel %vm498, %v475, %v487
      %v500 = vsel %vm498, %v477, %v489
      %v501 = vsel %vm498, %v479, %v491
      %v502 = vsel %vm498, %v481, %v493
      %v503 = vsel %vm498, %v483, %v495
      %v504 = vsel %vm498, %v485, %v497
      %v505 = vsel %vm498, %v487, %v475
      %v506 = vsel %vm498, %v489, %v477
      %v507 = vsel %vm498, %v491, %v479
      %v508 = vsel %vm498, %v493, %v481
      %v509 = vsel %vm498, %v495, %v483
      %v510 = vsel %vm498, %v497, %v485
      %v511 = vlaneseq
      %v512 = vshrl.u32 %v511, 7
      %v513 = vsub.s32 2, %v512
      %v514 = vrot.slane %v216, %v513
      %v515 = vlaneseq
      %v516 = vshrl.u32 %v515, 7
      %v517 = vsub.s32 2, %v516
      %v518 = vrot.slane %v217, %v517
      %v519 = vmul.f32 %v505, %v514
      %v520 = vmul.f32 %v499, %v518
      %v521 = vmul.f32 %v506, %v514
      %v522 = vmul.f32 %v500, %v518
      %v523 = vmul.f32 %v507, %v514
      %v524 = vmul.f32 %v501, %v518
      %v525 = vmul.f32 %v508, %v514
      %v526 = vmul.f32 %v502, %v518
      %v527 = vmul.f32 %v509, %v514
      %v528 = vmul.f32 %v503, %v518
      %v529 = vmul.f32 %v510, %v514
      %v530 = vmul.f32 %v504, %v518
      %531 = vset.pattern.permute.xlu0 2
      %532 = vperm.xlu0 %531, %v210
      %v533 = vpop.permute.xlu0 %532
      %535 = vset.pattern.permute.xlu0 2
      %536 = vperm.xlu0 %535, %v211
      %v537 = vpop.permute.xlu0 %536
      %539 = vset.pattern.permute.xlu0 2
      %540 = vperm.xlu0 %539, %v212
      %v541 = vpop.permute.xlu0 %540
      %543 = vset.pattern.permute.xlu0 2
      %544 = vperm.xlu0 %543, %v213
      %v545 = vpop.permute.xlu0 %544
      %547 = vset.pattern.permute.xlu0 2
      %548 = vperm.xlu0 %547, %v214
      %v549 = vpop.permute.xlu0 %548
      %551 = vset.pattern.permute.xlu0 2
      %552 = vperm.xlu0 %551, %v215
      %v553 = vpop.permute.xlu0 %552
      %v555 = vmul.f32 %v533, %v519
      %v556 = vmul.f32 %v533, %v520
      %v557 = vmul.f32 %v537, %v521
      %v558 = vmul.f32 %v537, %v522
      %v559 = vmul.f32 %v541, %v523
      %v560 = vmul.f32 %v541, %v524
      %v561 = vmul.f32 %v545, %v525
      %v562 = vmul.f32 %v545, %v526
      %v563 = vmul.f32 %v549, %v527
      %v564 = vmul.f32 %v549, %v528
      %v565 = vmul.f32 %v553, %v529
      %v566 = vmul.f32 %v553, %v530
      %v567 = vadd.f32 %v462, %v555
      %v568 = vadd.f32 %v463, %v556
      %v569 = vadd.f32 %v464, %v557
      %v570 = vadd.f32 %v465, %v558
      %v571 = vadd.f32 %v466, %v559
      %v572 = vadd.f32 %v467, %v560
      %v573 = vadd.f32 %v468, %v561
      %v574 = vadd.f32 %v469, %v562
      %v575 = vadd.f32 %v470, %v563
      %v576 = vadd.f32 %v471, %v564
      %v577 = vadd.f32 %v472, %v565
      %v578 = vadd.f32 %v473, %v566
      %579 = vrot.lane.b32.xlu0 %v198, 1
      %v580 = vpop.permute.xlu0 %579
      %581 = vrot.lane.b32.xlu0 %v200, 1
      %v582 = vpop.permute.xlu0 %581
      %583 = vrot.lane.b32.xlu0 %v202, 1
      %v584 = vpop.permute.xlu0 %583
      %585 = vrot.lane.b32.xlu0 %v204, 1
      %v586 = vpop.permute.xlu0 %585
      %587 = vrot.lane.b32.xlu0 %v206, 1
      %v588 = vpop.permute.xlu0 %587
      %589 = vrot.lane.b32.xlu0 %v208, 1
      %v590 = vpop.permute.xlu0 %589
      %591 = vrot.lane.b32.xlu0 %v199, 1
      %v592 = vpop.permute.xlu0 %591
      %593 = vrot.lane.b32.xlu0 %v201, 1
      %v594 = vpop.permute.xlu0 %593
      %595 = vrot.lane.b32.xlu0 %v203, 1
      %v596 = vpop.permute.xlu0 %595
      %597 = vrot.lane.b32.xlu0 %v205, 1
      %v598 = vpop.permute.xlu0 %597
      %599 = vrot.lane.b32.xlu0 %v207, 1
      %v600 = vpop.permute.xlu0 %599
      %601 = vrot.lane.b32.xlu0 %v209, 1
      %v602 = vpop.permute.xlu0 %601
      %vm603 = vcmp.lt.s32.totalorder %v287, 1
      %v604 = vsel %vm603, %v580, %v592
      %v605 = vsel %vm603, %v582, %v594
      %v606 = vsel %vm603, %v584, %v596
      %v607 = vsel %vm603, %v586, %v598
      %v608 = vsel %vm603, %v588, %v600
      %v609 = vsel %vm603, %v590, %v602
      %v610 = vsel %vm603, %v592, %v580
      %v611 = vsel %vm603, %v594, %v582
      %v612 = vsel %vm603, %v596, %v584
      %v613 = vsel %vm603, %v598, %v586
      %v614 = vsel %vm603, %v600, %v588
      %v615 = vsel %vm603, %v602, %v590
      %v616 = vlaneseq
      %v617 = vshrl.u32 %v616, 7
      %v618 = vsub.s32 3, %v617
      %v619 = vrot.slane %v216, %v618
      %v620 = vlaneseq
      %v621 = vshrl.u32 %v620, 7
      %v622 = vsub.s32 3, %v621
      %v623 = vrot.slane %v217, %v622
      %v624 = vmul.f32 %v610, %v619
      %v625 = vmul.f32 %v604, %v623
      %v626 = vmul.f32 %v611, %v619
      %v627 = vmul.f32 %v605, %v623
      %v628 = vmul.f32 %v612, %v619
      %v629 = vmul.f32 %v606, %v623
      %v630 = vmul.f32 %v613, %v619
      %v631 = vmul.f32 %v607, %v623
      %v632 = vmul.f32 %v614, %v619
      %v633 = vmul.f32 %v608, %v623
      %v634 = vmul.f32 %v615, %v619
      %v635 = vmul.f32 %v609, %v623
      %636 = vset.pattern.permute.xlu0 3
      %637 = vperm.xlu0 %636, %v210
      %v638 = vpop.permute.xlu0 %637
      %640 = vset.pattern.permute.xlu0 3
      %641 = vperm.xlu0 %640, %v211
      %v642 = vpop.permute.xlu0 %641
      %644 = vset.pattern.permute.xlu0 3
      %645 = vperm.xlu0 %644, %v212
      %v646 = vpop.permute.xlu0 %645
      %648 = vset.pattern.permute.xlu0 3
      %649 = vperm.xlu0 %648, %v213
      %v650 = vpop.permute.xlu0 %649
      %652 = vset.pattern.permute.xlu0 3
      %653 = vperm.xlu0 %652, %v214
      %v654 = vpop.permute.xlu0 %653
      %656 = vset.pattern.permute.xlu0 3
      %657 = vperm.xlu0 %656, %v215
      %v658 = vpop.permute.xlu0 %657
      %v660 = vmul.f32 %v638, %v624
      %v661 = vmul.f32 %v638, %v625
      %v662 = vmul.f32 %v642, %v626
      %v663 = vmul.f32 %v642, %v627
      %v664 = vmul.f32 %v646, %v628
      %v665 = vmul.f32 %v646, %v629
      %v666 = vmul.f32 %v650, %v630
      %v667 = vmul.f32 %v650, %v631
      %v668 = vmul.f32 %v654, %v632
      %v669 = vmul.f32 %v654, %v633
      %v670 = vmul.f32 %v658, %v634
      %v671 = vmul.f32 %v658, %v635
      %v672 = vadd.f32 %v567, %v660
      %v673 = vadd.f32 %v568, %v661
      %v674 = vadd.f32 %v569, %v662
      %v675 = vadd.f32 %v570, %v663
      %v676 = vadd.f32 %v571, %v664
      %v677 = vadd.f32 %v572, %v665
      %v678 = vadd.f32 %v573, %v666
      %v679 = vadd.f32 %v574, %v667
      %v680 = vadd.f32 %v575, %v668
      %v681 = vadd.f32 %v576, %v669
      %v682 = vadd.f32 %v577, %v670
      %v683 = vadd.f32 %v578, %v671
      %684 = vrot.lane.b32.xlu0 %v198, 127
      %v685 = vpop.permute.xlu0 %684
      %686 = vrot.lane.b32.xlu0 %v200, 127
      %v687 = vpop.permute.xlu0 %686
      %688 = vrot.lane.b32.xlu0 %v202, 127
      %v689 = vpop.permute.xlu0 %688
      %690 = vrot.lane.b32.xlu0 %v204, 127
      %v691 = vpop.permute.xlu0 %690
      %692 = vrot.lane.b32.xlu0 %v206, 127
      %v693 = vpop.permute.xlu0 %692
      %694 = vrot.lane.b32.xlu0 %v208, 127
      %v695 = vpop.permute.xlu0 %694
      %696 = vrot.lane.b32.xlu0 %v199, 127
      %v697 = vpop.permute.xlu0 %696
      %698 = vrot.lane.b32.xlu0 %v201, 127
      %v699 = vpop.permute.xlu0 %698
      %700 = vrot.lane.b32.xlu0 %v203, 127
      %v701 = vpop.permute.xlu0 %700
      %702 = vrot.lane.b32.xlu0 %v205, 127
      %v703 = vpop.permute.xlu0 %702
      %704 = vrot.lane.b32.xlu0 %v207, 127
      %v705 = vpop.permute.xlu0 %704
      %706 = vrot.lane.b32.xlu0 %v209, 127
      %v707 = vpop.permute.xlu0 %706
      %vm708 = vcmp.lt.s32.totalorder %v287, 127
      %v709 = vsel %vm708, %v685, %v697
      %v710 = vsel %vm708, %v687, %v699
      %v711 = vsel %vm708, %v689, %v701
      %v712 = vsel %vm708, %v691, %v703
      %v713 = vsel %vm708, %v693, %v705
      %v714 = vsel %vm708, %v695, %v707
      %v715 = vsel %vm708, %v697, %v685
      %v716 = vsel %vm708, %v699, %v687
      %v717 = vsel %vm708, %v701, %v689
      %v718 = vsel %vm708, %v703, %v691
      %v719 = vsel %vm708, %v705, %v693
      %v720 = vsel %vm708, %v707, %v695
      %v721 = vlaneseq
      %v722 = vshrl.u32 %v721, 7
      %v723 = vsub.s32 5, %v722
      %v724 = vrot.slane %v216, %v723
      %v725 = vlaneseq
      %v726 = vshrl.u32 %v725, 7
      %v727 = vsub.s32 5, %v726
      %v728 = vrot.slane %v217, %v727
      %v729 = vmul.f32 %v709, %v724
      %v730 = vmul.f32 %v715, %v728
      %v731 = vmul.f32 %v710, %v724
      %v732 = vmul.f32 %v716, %v728
      %v733 = vmul.f32 %v711, %v724
      %v734 = vmul.f32 %v717, %v728
      %v735 = vmul.f32 %v712, %v724
      %v736 = vmul.f32 %v718, %v728
      %v737 = vmul.f32 %v713, %v724
      %v738 = vmul.f32 %v719, %v728
      %v739 = vmul.f32 %v714, %v724
      %v740 = vmul.f32 %v720, %v728
      %741 = vset.pattern.permute.xlu0 5
      %742 = vperm.xlu0 %741, %v210
      %v743 = vpop.permute.xlu0 %742
      %745 = vset.pattern.permute.xlu0 5
      %746 = vperm.xlu0 %745, %v211
      %v747 = vpop.permute.xlu0 %746
      %749 = vset.pattern.permute.xlu0 5
      %750 = vperm.xlu0 %749, %v212
      %v751 = vpop.permute.xlu0 %750
      %753 = vset.pattern.permute.xlu0 5
      %754 = vperm.xlu0 %753, %v213
      %v755 = vpop.permute.xlu0 %754
      %757 = vset.pattern.permute.xlu0 5
      %758 = vperm.xlu0 %757, %v214
      %v759 = vpop.permute.xlu0 %758
      %761 = vset.pattern.permute.xlu0 5
      %762 = vperm.xlu0 %761, %v215
      %v763 = vpop.permute.xlu0 %762
      %v765 = vmul.f32 %v743, %v729
      %v766 = vmul.f32 %v743, %v730
      %v767 = vmul.f32 %v747, %v731
      %v768 = vmul.f32 %v747, %v732
      %v769 = vmul.f32 %v751, %v733
      %v770 = vmul.f32 %v751, %v734
      %v771 = vmul.f32 %v755, %v735
      %v772 = vmul.f32 %v755, %v736
      %v773 = vmul.f32 %v759, %v737
      %v774 = vmul.f32 %v759, %v738
      %v775 = vmul.f32 %v763, %v739
      %v776 = vmul.f32 %v763, %v740
      %v777 = vadd.f32 %v672, %v765
      %v778 = vadd.f32 %v673, %v766
      %v779 = vadd.f32 %v674, %v767
      %v780 = vadd.f32 %v675, %v768
      %v781 = vadd.f32 %v676, %v769
      %v782 = vadd.f32 %v677, %v770
      %v783 = vadd.f32 %v678, %v771
      %v784 = vadd.f32 %v679, %v772
      %v785 = vadd.f32 %v680, %v773
      %v786 = vadd.f32 %v681, %v774
      %v787 = vadd.f32 %v682, %v775
      %v788 = vadd.f32 %v683, %v776
      %789 = vrot.lane.b32.xlu0 %v198, 113
      %v790 = vpop.permute.xlu0 %789
      %791 = vrot.lane.b32.xlu0 %v200, 113
      %v792 = vpop.permute.xlu0 %791
      %793 = vrot.lane.b32.xlu0 %v202, 113
      %v794 = vpop.permute.xlu0 %793
      %795 = vrot.lane.b32.xlu0 %v204, 113
      %v796 = vpop.permute.xlu0 %795
      %797 = vrot.lane.b32.xlu0 %v206, 113
      %v798 = vpop.permute.xlu0 %797
      %799 = vrot.lane.b32.xlu0 %v208, 113
      %v800 = vpop.permute.xlu0 %799
      %801 = vrot.lane.b32.xlu0 %v199, 113
      %v802 = vpop.permute.xlu0 %801
      %803 = vrot.lane.b32.xlu0 %v201, 113
      %v804 = vpop.permute.xlu0 %803
      %805 = vrot.lane.b32.xlu0 %v203, 113
      %v806 = vpop.permute.xlu0 %805
      %807 = vrot.lane.b32.xlu0 %v205, 113
      %v808 = vpop.permute.xlu0 %807
      %809 = vrot.lane.b32.xlu0 %v207, 113
      %v810 = vpop.permute.xlu0 %809
      %811 = vrot.lane.b32.xlu0 %v209, 113
      %v812 = vpop.permute.xlu0 %811
      %vm813 = vcmp.lt.s32.totalorder %v287, 113
      %v814 = vsel %vm813, %v790, %v802
      %v815 = vsel %vm813, %v792, %v804
      %v816 = vsel %vm813, %v794, %v806
      %v817 = vsel %vm813, %v796, %v808
      %v818 = vsel %vm813, %v798, %v810
      %v819 = vsel %vm813, %v800, %v812
      %v820 = vsel %vm813, %v802, %v790
      %v821 = vsel %vm813, %v804, %v792
      %v822 = vsel %vm813, %v806, %v794
      %v823 = vsel %vm813, %v808, %v796
      %v824 = vsel %vm813, %v810, %v798
      %v825 = vsel %vm813, %v812, %v800
      %v826 = vlaneseq
      %v827 = vshrl.u32 %v826, 7
      %v828 = vsub.s32 6, %v827
      %v829 = vrot.slane %v216, %v828
      %v830 = vlaneseq
      %v831 = vshrl.u32 %v830, 7
      %v832 = vsub.s32 6, %v831
      %v833 = vrot.slane %v217, %v832
      %v834 = vmul.f32 %v814, %v829
      %v835 = vmul.f32 %v820, %v833
      %v836 = vmul.f32 %v815, %v829
      %v837 = vmul.f32 %v821, %v833
      %v838 = vmul.f32 %v816, %v829
      %v839 = vmul.f32 %v822, %v833
      %v840 = vmul.f32 %v817, %v829
      %v841 = vmul.f32 %v823, %v833
      %v842 = vmul.f32 %v818, %v829
      %v843 = vmul.f32 %v824, %v833
      %v844 = vmul.f32 %v819, %v829
      %v845 = vmul.f32 %v825, %v833
      %846 = vset.pattern.permute.xlu0 6
      %847 = vperm.xlu0 %846, %v210
      %v848 = vpop.permute.xlu0 %847
      %850 = vset.pattern.permute.xlu0 6
      %851 = vperm.xlu0 %850, %v211
      %v852 = vpop.permute.xlu0 %851
      %854 = vset.pattern.permute.xlu0 6
      %855 = vperm.xlu0 %854, %v212
      %v856 = vpop.permute.xlu0 %855
      %858 = vset.pattern.permute.xlu0 6
      %859 = vperm.xlu0 %858, %v213
      %v860 = vpop.permute.xlu0 %859
      %862 = vset.pattern.permute.xlu0 6
      %863 = vperm.xlu0 %862, %v214
      %v864 = vpop.permute.xlu0 %863
      %866 = vset.pattern.permute.xlu0 6
      %867 = vperm.xlu0 %866, %v215
      %v868 = vpop.permute.xlu0 %867
      %v870 = vmul.f32 %v848, %v834
      %v871 = vmul.f32 %v848, %v835
      %v872 = vmul.f32 %v852, %v836
      %v873 = vmul.f32 %v852, %v837
      %v874 = vmul.f32 %v856, %v838
      %v875 = vmul.f32 %v856, %v839
      %v876 = vmul.f32 %v860, %v840
      %v877 = vmul.f32 %v860, %v841
      %v878 = vmul.f32 %v864, %v842
      %v879 = vmul.f32 %v864, %v843
      %v880 = vmul.f32 %v868, %v844
      %v881 = vmul.f32 %v868, %v845
      %v882 = vadd.f32 %v777, %v870
      %v883 = vadd.f32 %v778, %v871
      %v884 = vadd.f32 %v779, %v872
      %v885 = vadd.f32 %v780, %v873
      %v886 = vadd.f32 %v781, %v874
      %v887 = vadd.f32 %v782, %v875
      %v888 = vadd.f32 %v783, %v876
      %v889 = vadd.f32 %v784, %v877
      %v890 = vadd.f32 %v785, %v878
      %v891 = vadd.f32 %v786, %v879
      %v892 = vadd.f32 %v787, %v880
      %v893 = vadd.f32 %v788, %v881
      %894 = vrot.lane.b32.xlu0 %v198, 112
      %v895 = vpop.permute.xlu0 %894
      %896 = vrot.lane.b32.xlu0 %v200, 112
      %v897 = vpop.permute.xlu0 %896
      %898 = vrot.lane.b32.xlu0 %v202, 112
      %v899 = vpop.permute.xlu0 %898
      %900 = vrot.lane.b32.xlu0 %v204, 112
      %v901 = vpop.permute.xlu0 %900
      %902 = vrot.lane.b32.xlu0 %v206, 112
      %v903 = vpop.permute.xlu0 %902
      %904 = vrot.lane.b32.xlu0 %v208, 112
      %v905 = vpop.permute.xlu0 %904
      %906 = vrot.lane.b32.xlu0 %v199, 112
      %v907 = vpop.permute.xlu0 %906
      %908 = vrot.lane.b32.xlu0 %v201, 112
      %v909 = vpop.permute.xlu0 %908
      %910 = vrot.lane.b32.xlu0 %v203, 112
      %v911 = vpop.permute.xlu0 %910
      %912 = vrot.lane.b32.xlu0 %v205, 112
      %v913 = vpop.permute.xlu0 %912
      %914 = vrot.lane.b32.xlu0 %v207, 112
      %v915 = vpop.permute.xlu0 %914
      %916 = vrot.lane.b32.xlu0 %v209, 112
      %v917 = vpop.permute.xlu0 %916
      %vm918 = vcmp.lt.s32.totalorder %v287, 112
      %v919 = vsel %vm918, %v895, %v907
      %v920 = vsel %vm918, %v897, %v909
      %v921 = vsel %vm918, %v899, %v911
      %v922 = vsel %vm918, %v901, %v913
      %v923 = vsel %vm918, %v903, %v915
      %v924 = vsel %vm918, %v905, %v917
      %v925 = vsel %vm918, %v907, %v895
      %v926 = vsel %vm918, %v909, %v897
      %v927 = vsel %vm918, %v911, %v899
      %v928 = vsel %vm918, %v913, %v901
      %v929 = vsel %vm918, %v915, %v903
      %v930 = vsel %vm918, %v917, %v905
      %v931 = vlaneseq
      %v932 = vshrl.u32 %v931, 7
      %v933 = vsub.s32 7, %v932
      %v934 = vrot.slane %v216, %v933
      %v935 = vlaneseq
      %v936 = vshrl.u32 %v935, 7
      %v937 = vsub.s32 7, %v936
      %v938 = vrot.slane %v217, %v937
      %v939 = vmul.f32 %v919, %v934
      %v940 = vmul.f32 %v925, %v938
      %v941 = vmul.f32 %v920, %v934
      %v942 = vmul.f32 %v926, %v938
      %v943 = vmul.f32 %v921, %v934
      %v944 = vmul.f32 %v927, %v938
      %v945 = vmul.f32 %v922, %v934
      %v946 = vmul.f32 %v928, %v938
      %v947 = vmul.f32 %v923, %v934
      %v948 = vmul.f32 %v929, %v938
      %v949 = vmul.f32 %v924, %v934
      %v950 = vmul.f32 %v930, %v938
      %951 = vset.pattern.permute.xlu0 7
      %952 = vperm.xlu0 %951, %v210
      %v953 = vpop.permute.xlu0 %952
      %955 = vset.pattern.permute.xlu0 7
      %956 = vperm.xlu0 %955, %v211
      %v957 = vpop.permute.xlu0 %956
      %959 = vset.pattern.permute.xlu0 7
      %960 = vperm.xlu0 %959, %v212
      %v961 = vpop.permute.xlu0 %960
      %963 = vset.pattern.permute.xlu0 7
      %964 = vperm.xlu0 %963, %v213
      %v965 = vpop.permute.xlu0 %964
      %967 = vset.pattern.permute.xlu0 7
      %968 = vperm.xlu0 %967, %v214
      %v969 = vpop.permute.xlu0 %968
      %971 = vset.pattern.permute.xlu0 7
      %972 = vperm.xlu0 %971, %v215
      %v973 = vpop.permute.xlu0 %972
      %v975 = vmul.f32 %v953, %v939
      %v976 = vmul.f32 %v953, %v940
      %v977 = vmul.f32 %v957, %v941
      %v978 = vmul.f32 %v957, %v942
      %v979 = vmul.f32 %v961, %v943
      %v980 = vmul.f32 %v961, %v944
      %v981 = vmul.f32 %v965, %v945
      %v982 = vmul.f32 %v965, %v946
      %v983 = vmul.f32 %v969, %v947
      %v984 = vmul.f32 %v969, %v948
      %v985 = vmul.f32 %v973, %v949
      %v986 = vmul.f32 %v973, %v950
      %v987 = vadd.f32 %v882, %v975
      %v988 = vadd.f32 %v883, %v976
      %v989 = vadd.f32 %v884, %v977
      %v990 = vadd.f32 %v885, %v978
      %v991 = vadd.f32 %v886, %v979
      %v992 = vadd.f32 %v887, %v980
      %v993 = vadd.f32 %v888, %v981
      %v994 = vadd.f32 %v889, %v982
      %v995 = vadd.f32 %v890, %v983
      %v996 = vadd.f32 %v891, %v984
      %v997 = vadd.f32 %v892, %v985
      %v998 = vadd.f32 %v893, %v986
      %999 = vrot.lane.b32.xlu0 %v198, 111
      %v1000 = vpop.permute.xlu0 %999
      %1001 = vrot.lane.b32.xlu0 %v200, 111
      %v1002 = vpop.permute.xlu0 %1001
      %1003 = vrot.lane.b32.xlu0 %v202, 111
      %v1004 = vpop.permute.xlu0 %1003
      %1005 = vrot.lane.b32.xlu0 %v204, 111
      %v1006 = vpop.permute.xlu0 %1005
      %1007 = vrot.lane.b32.xlu0 %v206, 111
      %v1008 = vpop.permute.xlu0 %1007
      %1009 = vrot.lane.b32.xlu0 %v208, 111
      %v1010 = vpop.permute.xlu0 %1009
      %1011 = vrot.lane.b32.xlu0 %v199, 111
      %v1012 = vpop.permute.xlu0 %1011
      %1013 = vrot.lane.b32.xlu0 %v201, 111
      %v1014 = vpop.permute.xlu0 %1013
      %1015 = vrot.lane.b32.xlu0 %v203, 111
      %v1016 = vpop.permute.xlu0 %1015
      %1017 = vrot.lane.b32.xlu0 %v205, 111
      %v1018 = vpop.permute.xlu0 %1017
      %1019 = vrot.lane.b32.xlu0 %v207, 111
      %v1020 = vpop.permute.xlu0 %1019
      %1021 = vrot.lane.b32.xlu0 %v209, 111
      %v1022 = vpop.permute.xlu0 %1021
      %vm1023 = vcmp.lt.s32.totalorder %v287, 111
      %v1024 = vsel %vm1023, %v1000, %v1012
      %v1025 = vsel %vm1023, %v1002, %v1014
      %v1026 = vsel %vm1023, %v1004, %v1016
      %v1027 = vsel %vm1023, %v1006, %v1018
      %v1028 = vsel %vm1023, %v1008, %v1020
      %v1029 = vsel %vm1023, %v1010, %v1022
      %v1030 = vsel %vm1023, %v1012, %v1000
      %v1031 = vsel %vm1023, %v1014, %v1002
      %v1032 = vsel %vm1023, %v1016, %v1004
      %v1033 = vsel %vm1023, %v1018, %v1006
      %v1034 = vsel %vm1023, %v1020, %v1008
      %v1035 = vsel %vm1023, %v1022, %v1010
      %v1036 = vlaneseq
      %v1037 = vshrl.u32 %v1036, 7
      %v1038 = vsub.s32 0, %v1037
      %v1039 = vrot.slane %v218, %v1038
      %v1040 = vlaneseq
      %v1041 = vshrl.u32 %v1040, 7
      %v1042 = vsub.s32 0, %v1041
      %v1043 = vrot.slane %v219, %v1042
      %v1044 = vmul.f32 %v1024, %v1039
      %v1045 = vmul.f32 %v1030, %v1043
      %v1046 = vmul.f32 %v1025, %v1039
      %v1047 = vmul.f32 %v1031, %v1043
      %v1048 = vmul.f32 %v1026, %v1039
      %v1049 = vmul.f32 %v1032, %v1043
      %v1050 = vmul.f32 %v1027, %v1039
      %v1051 = vmul.f32 %v1033, %v1043
      %v1052 = vmul.f32 %v1028, %v1039
      %v1053 = vmul.f32 %v1034, %v1043
      %v1054 = vmul.f32 %v1029, %v1039
      %v1055 = vmul.f32 %v1035, %v1043
      %1056 = vset.pattern.permute.xlu0 8
      %1057 = vperm.xlu0 %1056, %v210
      %v1058 = vpop.permute.xlu0 %1057
      %1060 = vset.pattern.permute.xlu0 8
      %1061 = vperm.xlu0 %1060, %v211
      %v1062 = vpop.permute.xlu0 %1061
      %1064 = vset.pattern.permute.xlu0 8
      %1065 = vperm.xlu0 %1064, %v212
      %v1066 = vpop.permute.xlu0 %1065
      %1068 = vset.pattern.permute.xlu0 8
      %1069 = vperm.xlu0 %1068, %v213
      %v1070 = vpop.permute.xlu0 %1069
      %1072 = vset.pattern.permute.xlu0 8
      %1073 = vperm.xlu0 %1072, %v214
      %v1074 = vpop.permute.xlu0 %1073
      %1076 = vset.pattern.permute.xlu0 8
      %1077 = vperm.xlu0 %1076, %v215
      %v1078 = vpop.permute.xlu0 %1077
      %v1080 = vmul.f32 %v1058, %v1044
      %v1081 = vmul.f32 %v1058, %v1045
      %v1082 = vmul.f32 %v1062, %v1046
      %v1083 = vmul.f32 %v1062, %v1047
      %v1084 = vmul.f32 %v1066, %v1048
      %v1085 = vmul.f32 %v1066, %v1049
      %v1086 = vmul.f32 %v1070, %v1050
      %v1087 = vmul.f32 %v1070, %v1051
      %v1088 = vmul.f32 %v1074, %v1052
      %v1089 = vmul.f32 %v1074, %v1053
      %v1090 = vmul.f32 %v1078, %v1054
      %v1091 = vmul.f32 %v1078, %v1055
      %v1092 = vadd.f32 %v987, %v1080
      %v1093 = vadd.f32 %v988, %v1081
      %v1094 = vadd.f32 %v989, %v1082
      %v1095 = vadd.f32 %v990, %v1083
      %v1096 = vadd.f32 %v991, %v1084
      %v1097 = vadd.f32 %v992, %v1085
      %v1098 = vadd.f32 %v993, %v1086
      %v1099 = vadd.f32 %v994, %v1087
      %v1100 = vadd.f32 %v995, %v1088
      %v1101 = vadd.f32 %v996, %v1089
      %v1102 = vadd.f32 %v997, %v1090
      %v1103 = vadd.f32 %v998, %v1091
      %v1104 = vld [vmem:[%s2] sm:$0xff]
      %v1105 = vld [vmem:[%s2 + $0x8] sm:$0xff]
      %v1106 = vld [vmem:[%s2 + $0x10] sm:$0xff]
      %v1107 = vld [vmem:[%s2 + $0x18] sm:$0xff]
      %v1108 = vld [vmem:[%s2 + $0x20] sm:$0xff]
      %v1109 = vld [vmem:[%s2 + $0x28] sm:$0xff]
      %1111 = vset.pattern.permute.xlu0 0
      %1112 = vperm.xlu0 %1111, %v1104
      %v1113 = vpop.permute.xlu0 %1112
      %1116 = vset.pattern.permute.xlu0 0
      %1117 = vperm.xlu0 %1116, %v1105
      %v1118 = vpop.permute.xlu0 %1117
      %1121 = vset.pattern.permute.xlu0 0
      %1122 = vperm.xlu0 %1121, %v1106
      %v1123 = vpop.permute.xlu0 %1122
      %1126 = vset.pattern.permute.xlu0 0
      %1127 = vperm.xlu0 %1126, %v1107
      %v1128 = vpop.permute.xlu0 %1127
      %1131 = vset.pattern.permute.xlu0 0
      %1132 = vperm.xlu0 %1131, %v1108
      %v1133 = vpop.permute.xlu0 %1132
      %1136 = vset.pattern.permute.xlu0 0
      %1137 = vperm.xlu0 %1136, %v1109
      %v1138 = vpop.permute.xlu0 %1137
      %v1140 = vadd.f32 %v1092, %v1113
      %v1141 = vadd.f32 %v1093, %v1113
      %v1142 = vadd.f32 %v1094, %v1118
      %v1143 = vadd.f32 %v1095, %v1118
      %v1144 = vadd.f32 %v1096, %v1123
      %v1145 = vadd.f32 %v1097, %v1123
      %v1146 = vadd.f32 %v1098, %v1128
      %v1147 = vadd.f32 %v1099, %v1128
      %v1148 = vadd.f32 %v1100, %v1133
      %v1149 = vadd.f32 %v1101, %v1133
      %v1150 = vadd.f32 %v1102, %v1138
      %v1151 = vadd.f32 %v1103, %v1138
      %1152 = vst [vmem:[%s197] sm:$0xff] %v1140
      %1153 = vst [vmem:[%s197 + $0x8] sm:$0xff] %v1141
      %1154 = vst [vmem:[%s197 + $0x10] sm:$0xff] %v1142
      %1155 = vst [vmem:[%s197 + $0x18] sm:$0xff] %v1143
      %1156 = vst [vmem:[%s197 + $0x20] sm:$0xff] %v1144
      %1157 = vst [vmem:[%s197 + $0x28] sm:$0xff] %v1145
      %1158 = vst [vmem:[%s197 + $0x30] sm:$0xff] %v1146
      %1159 = vst [vmem:[%s197 + $0x38] sm:$0xff] %v1147
      %1160 = vst [vmem:[%s197 + $0x40] sm:$0xff] %v1148
      %1161 = vst [vmem:[%s197 + $0x48] sm:$0xff] %v1149
      %1162 = vst [vmem:[%s197 + $0x50] sm:$0xff] %v1150
      %1163 = vst [vmem:[%s197 + $0x58] sm:$0xff] %v1151
      %p1164 = scmp.lt.s32.totalorder %s15, 1
      %s1165 = scalar_select %p1164, %s15, 1
      %s1166 = smul.addr %s1165, 12
      %s1167 = smul.addr %s1166, 8
      %s1168 = scalar_lea.vmem %s4, %s1167
      // Predicated region
      $region37: #{attention_forward.5} parent=35 // pred_check
        %p1169 = pneg %p122
      $region38: #{attention_forward.5} parent=35 // pred_check_branch
        %1171 = sbr.rel (%p1169) target = $region40
      $region39: #{attention_forward.5} parent=35 // pred_region
        _
      $region40: #{attention_forward.5} parent=35 // pred_fallthru
        _
    $region36: #{attention_forward.5} parent=5 // pred_fallthru
      _
    %p1172 = scmp.le.s32.totalorder 2, %s10
    // Predicated region
    $region41: #{attention_forward.5} parent=5 // pred_check
      %p1173 = pneg %p1172
    $region42: #{attention_forward.5} parent=5 // pred_check_branch
      %1175 = sbr.rel (%p1173) target = $region44
    $region43: #{attention_forward.5} parent=5 // pred_region
      %s1176 = ssub.s32 %s10, 2
      // Predicated region
      $region45: #{attention_forward.5} parent=43 // pred_check
        %p1177 = pneg %p128
      $region46: #{attention_forward.5} parent=43 // pred_check_branch
        %1179 = sbr.rel (%p1177) target = $region48
      $region47: #{attention_forward.5} parent=43 // pred_region
        %p1180 = scmp.lt.s32.totalorder %s16, 1
        %s1181 = scalar_select %p1180, %s16, 1
        %s1182 = smul.addr %s1181, 12
        %s1183 = smul.addr %s1182, 8
        %s1184 = scalar_lea.vmem %s4, %s1183
      $region48: #{attention_forward.5} parent=43 // pred_fallthru
        _
    $region44: #{attention_forward.5} parent=5 // pred_fallthru
      _
  $region6: #{attention_forward.5} parent=0 // loop_footer
    %s14 = sadd.s32 1, %s10
  $region7: #{attention_forward.5} parent=0 // loop_footer_branch
    %9 = sbr.rel target = $region3
  $region8: #{attention_forward.5} parent=0 // loop_exit
    _

</llo_original>
